<compile_context>
chip_gen: v7x
topology: tpu7x:2x2x1
jax: 0.10.0
libtpu: 0.0.40
codegen_flags: <defaults>
</compile_context>

<pallas_src>
import jax
import jax.numpy as jnp
from jax.experimental import pallas as pl
from jax.experimental.pallas import tpu as pltpu

# ---------------- model dims (small, synthetic "bert") ----------------
VOCAB = 50
VOCAB_PAD = 64                    # pad vocab to a multiple of 8 for the one-hot matmul
SEQ = 8                           # power of two (kernel uses & masks for row->position math)
HIDDEN = 32
NUM_HEADS = 2
HEAD_DIM = HIDDEN // NUM_HEADS
FFN = 64
NUM_CLASSES = 2
LANE = 128                        # lane-dense padded classifier width
EMB_ROWS = VOCAB_PAD + SEQ + 2    # fused word | positional | segment embedding rows
EMB_PAD = 80                      # padded row count for the fused embedding table
HEAD_BLOCK = 3 * HIDDEN + 8       # per-head rows in packed attention slab (wq|wk|wv|bias blk)
NEG_INF = -1e9
DR_RATE = 0.1                     # nn.Dropout(p=dr_rate) in eval mode == identity


# ---------------- fused forward kernel (B_TILE sequences per grid step) ----------------
def _fused_bert_kernel(tok_ref, seg_ref, kbias_ref, emb_ref, vec_ref,
                       qkvh_ref, w32_ref, ffn_ref, cls_ref, out_ref):
    rt = tok_ref.shape[0]                        # == B_TILE * SEQ rows in this slab
    b_tile = rt // SEQ

    def layernorm(x, g, b):
        mu = jnp.mean(x, axis=-1, keepdims=True)
        var = jnp.mean((x - mu) ** 2, axis=-1, keepdims=True)
        return (x - mu) * jax.lax.rsqrt(var + 1e-12) * g + b

    # ---- embeddings: ONE combined one-hot matmul (word + positional + segment) ----
    col = jax.lax.broadcasted_iota(jnp.int32, (rt, EMB_PAD), 1)
    row = jax.lax.broadcasted_iota(jnp.int32, (rt, EMB_PAD), 0)
    pos = row & (SEQ - 1)                        # position within its sequence (SEQ = 2^k)
    tok = tok_ref[...]                           # (rt, 1) int32
    seg = seg_ref[...]                           # (rt, 1) int32
    onehot = ((col == tok)
              | (col == VOCAB_PAD + pos)
              | (col == VOCAB_PAD + SEQ + seg)).astype(jnp.float32)
    x = jnp.dot(onehot, emb_ref[...], preferred_element_type=jnp.float32)
    x = layernorm(x, vec_ref[0:1, :], vec_ref[1:2, :])

    # ---- block-diagonal attention bias + precomputed per-key valid_length bias ----
    rr = jax.lax.broadcasted_iota(jnp.int32, (rt, rt), 0)
    cc = jax.lax.broadcasted_iota(jnp.int32, (rt, rt), 1)
    same_seq = (rr & ~(SEQ - 1)) == (cc & ~(SEQ - 1))
    bias = jnp.where(same_seq, 0.0, NEG_INF) + kbias_ref[0]      # (rt, rt) + (1, rt)

    # ---- self-attention: per-head weight slabs, no lane slicing, no concat ----
    attn = jnp.zeros((rt, HIDDEN), jnp.float32)
    for h in range(NUM_HEADS):
        base = h * HEAD_BLOCK
        wq = qkvh_ref[base:base + HIDDEN, :]                     # 1/sqrt(d) pre-folded
        wk = qkvh_ref[base + HIDDEN:base + 2 * HIDDEN, :]
        wv = qkvh_ref[base + 2 * HIDDEN:base + 3 * HIDDEN, :]
        bqkv = qkvh_ref[base + 3 * HIDDEN:base + HEAD_BLOCK, :]  # (8, HEAD_DIM) bias block
        qh = jnp.dot(x, wq, preferred_element_type=jnp.float32) + bqkv[0:1, :]
        kh = jnp.dot(x, wk, preferred_element_type=jnp.float32) + bqkv[1:2, :]
        vh = jnp.dot(x, wv, preferred_element_type=jnp.float32) + bqkv[2:3, :]
        scores = jax.lax.dot_general(qh, kh, (((1,), (1,)), ((), ())),
                                     preferred_element_type=jnp.float32) + bias
        m = jnp.max(scores, axis=-1, keepdims=True)
        p = jnp.exp(scores - m)
        p = p * pl.reciprocal(jnp.sum(p, axis=-1, keepdims=True), approx=True)
        ctx = jnp.dot(p, vh, preferred_element_type=jnp.float32)            # (rt, HEAD_DIM)
        attn = attn + jnp.dot(ctx, w32_ref[h * HEAD_DIM:(h + 1) * HEAD_DIM, :],
                              preferred_element_type=jnp.float32)           # fold wo per head
    attn = attn + vec_ref[2:3, :]                                            # bo
    x = layernorm(x + attn, vec_ref[3:4, :], vec_ref[4:5, :])

    # ---- only the CLS row of each sequence feeds pooler/classifier (single layer):
    #      extract rows 0, SEQ, 2*SEQ, ... with a small selection matmul (pure MXU) ----
    srow = jax.lax.broadcasted_iota(jnp.int32, (b_tile, rt), 0) * SEQ
    scol = jax.lax.broadcasted_iota(jnp.int32, (b_tile, rt), 1)
    sel = (scol == srow).astype(jnp.float32)
    xc = jnp.dot(sel, x, preferred_element_type=jnp.float32)                 # (b_tile, HIDDEN)

    # ---- feed-forward + LN2 on CLS rows only ----
    # TODO(synk): exact erf-GELU (PyTorch nn.GELU default) not emitted; tanh approx used.
    h1 = jnp.dot(xc, ffn_ref[0:HIDDEN, :],
                 preferred_element_type=jnp.float32) + ffn_ref[HIDDEN:HIDDEN + 1, :]
    h1 = jax.nn.gelu(h1, approximate=True)
    h2 = jnp.dot(h1, w32_ref[HIDDEN:HIDDEN + FFN, :],
                 preferred_element_type=jnp.float32) + vec_ref[5:6, :]
    xc = layernorm(xc + h2, vec_ref[6:7, :], vec_ref[7:8, :])

    # ---- pooler (tanh) + dropout (eval == identity) + classifier, lane-dense output ----
    # TODO(synk): train-mode stochastic dropout (pltpu.prng_*) not emitted.
    pooled = jnp.tanh(jnp.dot(xc, w32_ref[HIDDEN + FFN:, :],
                              preferred_element_type=jnp.float32) + vec_ref[8:9, :])
    logits = jnp.dot(pooled, cls_ref[0:HIDDEN, :],
                     preferred_element_type=jnp.float32) + cls_ref[HIDDEN:HIDDEN + 1, :]
    out_ref[...] = logits                                # (b_tile, LANE) unmasked 128-lane vst


# ---------------- parameters (deterministic, in-script) ----------------
def init_params(key):
    ks = jax.random.split(key, 19)

    def nrm(k, shape):
        return jax.random.normal(k, shape, jnp.float32) * 0.02

    return {
        "word_emb": nrm(ks[0], (VOCAB, HIDDEN)),
        "pos_emb": nrm(ks[1], (SEQ, HIDDEN)),
        "seg_emb": nrm(ks[2], (2, HIDDEN)),
        "ln_emb_g": jnp.ones((HIDDEN,), jnp.float32),
        "ln_emb_b": jnp.zeros((HIDDEN,), jnp.float32),
        "wq": nrm(ks[3], (HIDDEN, HIDDEN)), "bq": nrm(ks[4], (HIDDEN,)),
        "wk": nrm(ks[5], (HIDDEN, HIDDEN)), "bk": nrm(ks[6], (HIDDEN,)),
        "wv": nrm(ks[7], (HIDDEN, HIDDEN)), "bv": nrm(ks[8], (HIDDEN,)),
        "wo": nrm(ks[9], (HIDDEN, HIDDEN)), "bo": nrm(ks[10], (HIDDEN,)),
        "ln1_g": jnp.ones((HIDDEN,), jnp.float32),
        "ln1_b": jnp.zeros((HIDDEN,), jnp.float32),
        "w1": nrm(ks[11], (HIDDEN, FFN)), "b1": nrm(ks[12], (FFN,)),
        "w2": nrm(ks[13], (FFN, HIDDEN)), "b2": nrm(ks[14], (HIDDEN,)),
        "ln2_g": jnp.ones((HIDDEN,), jnp.float32),
        "ln2_b": jnp.zeros((HIDDEN,), jnp.float32),
        "wp": nrm(ks[15], (HIDDEN, HIDDEN)), "bp": nrm(ks[16], (HIDDEN,)),
        "wc": nrm(ks[17], (HIDDEN, NUM_CLASSES)), "bc": nrm(ks[18], (NUM_CLASSES,)),
    }


def prepare_params(p):
    """One-time prep: fuse tables, split per-head attention weights, pack small operands."""
    scale = 1.0 / (HEAD_DIM ** 0.5)

    # fused word | positional | segment embedding table (one-hot indices are disjoint)
    emb = jnp.zeros((EMB_PAD, HIDDEN), jnp.float32)
    emb = emb.at[:VOCAB].set(p["word_emb"])
    emb = emb.at[VOCAB_PAD:VOCAB_PAD + SEQ].set(p["pos_emb"])
    emb = emb.at[VOCAB_PAD + SEQ:VOCAB_PAD + SEQ + 2].set(p["seg_emb"])

    # all (HIDDEN,)-wide gammas/betas and row biases in one slab (row order fixed by kernel)
    vecs = jnp.stack([p["ln_emb_g"], p["ln_emb_b"], p["bo"], p["ln1_g"], p["ln1_b"],
                      p["b2"], p["ln2_g"], p["ln2_b"], p["bp"]], axis=0)       # (9, HIDDEN)

    # per-head Q/K/V weights (scale folded into Q) packed along sublanes
    blocks = []
    for h in range(NUM_HEADS):
        sl = slice(h * HEAD_DIM, (h + 1) * HEAD_DIM)
        bias_blk = jnp.zeros((8, HEAD_DIM), jnp.float32)
        bias_blk = bias_blk.at[0].set(p["bq"][sl] * scale)
        bias_blk = bias_blk.at[1].set(p["bk"][sl])
        bias_blk = bias_blk.at[2].set(p["bv"][sl])
        blocks += [p["wq"][:, sl] * scale, p["wk"][:, sl], p["wv"][:, sl], bias_blk]
    qkv_heads = jnp.concatenate(blocks, axis=0)            # (NUM_HEADS*HEAD_BLOCK, HEAD_DIM)

    w32 = jnp.concatenate([p["wo"], p["w2"], p["wp"]], axis=0)            # (128, HIDDEN)
    ffn_up = jnp.concatenate([p["w1"], p["b1"][None, :]], axis=0)         # (HIDDEN+1, FFN)
    wc_pad = jnp.zeros((HIDDEN, LANE), jnp.float32).at[:, :NUM_CLASSES].set(p["wc"])
    bc_pad = jnp.zeros((1, LANE), jnp.float32).at[0, :NUM_CLASSES].set(p["bc"])
    cls_head = jnp.concatenate([wc_pad, bc_pad], axis=0)                  # (HIDDEN+1, LANE)

    return {"emb_table": emb, "vecs": vecs, "qkv_heads": qkv_heads,
            "w32": w32, "ffn_up": ffn_up, "cls_head": cls_head}


def _choose_b_tile(batch):
    # Multiple of 8 (sublane-friendly blocks); keep >=2 grid steps when the batch allows so
    # both v7x TensorCores get a full slab (v5e/v6e have one TC and just see fewer steps).
    return 16 if batch >= 32 else 8


def _const_spec(shape):
    """Full-array BlockSpec with a constant index_map: stays VMEM-resident across steps."""
    nz = (0,) * len(shape)
    return pl.BlockSpec(shape, lambda g, _nz=nz: _nz)


# ---------------- forward (== BERTClassifier.forward, eval mode) ----------------
@jax.jit
def bert_classifier_forward(prep, token_ids, valid_length, segment_ids):
    B, S = token_ids.shape
    assert S == SEQ
    b_tile = _choose_b_tile(B)
    grid_n = pl.cdiv(B, b_tile)
    b_pad = grid_n * b_tile
    rt = b_tile * SEQ

    tok = jnp.zeros((b_pad, SEQ), jnp.int32).at[:B].set(token_ids.astype(jnp.int32))
    seg = jnp.zeros((b_pad, SEQ), jnp.int32).at[:B].set(segment_ids.astype(jnp.int32))
    valid = jnp.zeros((b_pad,), jnp.int32).at[:B].set(valid_length.astype(jnp.int32))

    # per-key additive bias from valid_length (== gen_attention_mask), one (1,1,rt) row/step
    kbias = jnp.where(jnp.arange(SEQ)[None, :] < valid[:, None], 0.0, NEG_INF)
    kbias = kbias.astype(jnp.float32).reshape(grid_n, 1, rt)

    tok2d = tok.reshape(b_pad * SEQ, 1)
    seg2d = seg.reshape(b_pad * SEQ, 1)

    in_specs = [
        pl.BlockSpec((rt, 1), lambda g: (g, 0)),            # token ids slab
        pl.BlockSpec((rt, 1), lambda g: (g, 0)),            # segment ids slab
        pl.BlockSpec((1, 1, rt), lambda g: (g, 0, 0)),      # per-key valid_length bias
        _const_spec((EMB_PAD, HIDDEN)),                     # fused word/pos/seg table
        _const_spec((9, HIDDEN)),                           # packed LN params + row biases
        _const_spec((NUM_HEADS * HEAD_BLOCK, HEAD_DIM)),    # per-head wq|wk|wv|bias blocks
        _const_spec((HIDDEN + FFN + HIDDEN, HIDDEN)),       # wo | w2 | wp
        _const_spec((HIDDEN + 1, FFN)),                     # w1 | b1
        _const_spec((HIDDEN + 1, LANE)),                    # wc | bc (lane padded)
    ]

    out = pl.pallas_call(
        _fused_bert_kernel,
        out_shape=jax.ShapeDtypeStruct((b_pad, LANE), jnp.float32),
        grid=(grid_n,),
        in_specs=in_specs,
        out_specs=pl.BlockSpec((b_tile, LANE), lambda g: (g, 0)),
        compiler_params=pltpu.CompilerParams(dimension_semantics=("parallel",)),
    )(tok2d, seg2d, kbias,
      prep["emb_table"], prep["vecs"], prep["qkv_heads"],
      prep["w32"], prep["ffn_up"], prep["cls_head"])

    return out[:B, :NUM_CLASSES]


# ---------------- pure-JAX reference (for correctness check) ----------------
def _reference_forward(params, token_ids, valid_length, segment_ids):
    B, S = token_ids.shape
    col = jnp.arange(S)[None, :]
    mask = (col < valid_length[:, None]).astype(jnp.float32)

    def ln(x, g, b):
        mu = jnp.mean(x, -1, keepdims=True)
        var = jnp.mean((x - mu) ** 2, -1, keepdims=True)
        return (x - mu) * jax.lax.rsqrt(var + 1e-12) * g + b

    tok_e = jnp.take(params["word_emb"], token_ids, axis=0)
    seg_e = jnp.take(params["seg_emb"], segment_ids.astype(jnp.int32), axis=0)
    x = tok_e + seg_e + params["pos_emb"][None, :S, :]
    x = ln(x, params["ln_emb_g"], params["ln_emb_b"])

    q = x @ params["wq"] + params["bq"]
    k = x @ params["wk"] + params["bk"]
    v = x @ params["wv"] + params["bv"]

    def split(t):
        return t.reshape(B, S, NUM_HEADS, HEAD_DIM).transpose(0, 2, 1, 3)

    q, k, v = split(q), split(k), split(v)
    s = jnp.einsum("bhqd,bhkd->bhqk", q, k) / jnp.sqrt(jnp.float32(HEAD_DIM))
    s = s + (1.0 - mask)[:, None, None, :] * NEG_INF
    p = jax.nn.softmax(s, axis=-1)
    ctx = jnp.einsum("bhqk,bhkd->bhqd", p, v).transpose(0, 2, 1, 3).reshape(B, S, HIDDEN)
    x = ln(x + (ctx @ params["wo"] + params["bo"]), params["ln1_g"], params["ln1_b"])
    h = jax.nn.gelu(x @ params["w1"] + params["b1"], approximate=True)
    h = h @ params["w2"] + params["b2"]
    x = ln(x + h, params["ln2_g"], params["ln2_b"])
    pooler = jnp.tanh(x[:, 0, :] @ params["wp"] + params["bp"])
    return pooler @ params["wc"] + params["bc"]


if __name__ == "__main__":
    key = jax.random.PRNGKey(0)
    pkey, tkey, skey, vkey, tkey2, skey2 = jax.random.split(key, 6)

    params = init_params(pkey)
    prep = prepare_params(params)

    # main case: 32 sequences -> B_TILE=16, grid=(2,): two 128-row slabs (one per v7x TC)
    B = 32
    token_ids = jax.random.randint(tkey, (B, SEQ), 0, VOCAB, dtype=jnp.int32)
    segment_ids = jax.random.randint(skey, (B, SEQ), 0, 2, dtype=jnp.int32)
    valid_length = jax.random.randint(vkey, (B,), 1, SEQ + 1, dtype=jnp.int32)

    logits = bert_classifier_forward(prep, token_ids, valid_length, segment_ids)
    jax.block_until_ready(logits)
    assert logits.shape == (B, NUM_CLASSES) and logits.dtype == jnp.float32
    ref = _reference_forward(params, token_ids, valid_length, segment_ids)
    assert bool(jnp.allclose(logits, ref, atol=2e-3, rtol=2e-3)), "mismatch vs reference (B=32)"

    # ragged case: batch not a multiple of the tile (exercises the padding path)
    B2 = 3
    token_ids2 = jax.random.randint(tkey2, (B2, SEQ), 0, VOCAB, dtype=jnp.int32)
    segment_ids2 = jax.random.randint(skey2, (B2, SEQ), 0, 2, dtype=jnp.int32)
    valid_length2 = jnp.array([5, 8, 1], dtype=jnp.int32)

    logits2 = bert_classifier_forward(prep, token_ids2, valid_length2, segment_ids2)
    jax.block_until_ready(logits2)
    ref2 = _reference_forward(params, token_ids2, valid_length2, segment_ids2)
    assert bool(jnp.allclose(logits2, ref2, atol=2e-3, rtol=2e-3)), "mismatch vs reference (B=3)"

    print("KERNEL_OK")
</pallas_src>

<mosaic_0001>
module attributes {stable_mosaic.version = 11 : i64} {
  func.func @_fused_bert_kernel(%arg0: i32, %arg1: memref<128x1xi32, #tpu.memory_space<vmem>>, %arg2: memref<128x1xi32, #tpu.memory_space<vmem>>, %arg3: memref<1x1x128xf32, #tpu.memory_space<vmem>>, %arg4: memref<80x32xf32, #tpu.memory_space<vmem>>, %arg5: memref<9x32xf32, #tpu.memory_space<vmem>>, %arg6: memref<208x16xf32, #tpu.memory_space<vmem>>, %arg7: memref<128x32xf32, #tpu.memory_space<vmem>>, %arg8: memref<33x64xf32, #tpu.memory_space<vmem>>, %arg9: memref<33x128xf32, #tpu.memory_space<vmem>>, %arg10: memref<16x128xf32, #tpu.memory_space<vmem>>) attributes {dimension_semantics = [#tpu.dimension_semantics<parallel>], iteration_bounds = array<i64: 2>, scalar_prefetch = 0 : i64, scratch_operands = 0 : i64, tpu.core_type = #tpu.core_type<tc>, window_params = [{transform_indices = @transform_0, window_bounds = array<i64: 128, 1>}, {transform_indices = @transform_1, window_bounds = array<i64: 128, 1>}, {transform_indices = @transform_2, window_bounds = array<i64: 1, 1, 128>}, {pipeline_mode = #tpu.pipeline_mode<synchronous>, transform_indices = @transform_3, window_bounds = array<i64: 80, 32>}, {pipeline_mode = #tpu.pipeline_mode<synchronous>, transform_indices = @transform_4, window_bounds = array<i64: 9, 32>}, {pipeline_mode = #tpu.pipeline_mode<synchronous>, transform_indices = @transform_5, window_bounds = array<i64: 208, 16>}, {pipeline_mode = #tpu.pipeline_mode<synchronous>, transform_indices = @transform_6, window_bounds = array<i64: 128, 32>}, {pipeline_mode = #tpu.pipeline_mode<synchronous>, transform_indices = @transform_7, window_bounds = array<i64: 33, 64>}, {pipeline_mode = #tpu.pipeline_mode<synchronous>, transform_indices = @transform_8, window_bounds = array<i64: 33, 128>}, {transform_indices = @transform_9, window_bounds = array<i64: 16, 128>}]} {
    %0 = tpu.iota {dimensions = array<i32: 1>} : vector<128x80xi32>
    %1 = tpu.iota {dimensions = array<i32: 0>} : vector<128x80xi32>
    %c7_i32 = arith.constant 7 : i32
    %2 = vector.broadcast %c7_i32 : i32 to vector<128x80xi32>
    %3 = arith.andi %1, %2 : vector<128x80xi32>
    %c0 = arith.constant 0 : index
    %c0_0 = arith.constant 0 : index
    %4 = vector.load %arg1[%c0, %c0_0] : memref<128x1xi32, #tpu.memory_space<vmem>>, vector<128x1xi32>
    %c0_1 = arith.constant 0 : index
    %c0_2 = arith.constant 0 : index
    %5 = vector.load %arg2[%c0_1, %c0_2] : memref<128x1xi32, #tpu.memory_space<vmem>>, vector<128x1xi32>
    %6 = vector.broadcast %4 : vector<128x1xi32> to vector<128x80xi32>
    %7 = arith.cmpi eq, %0, %6 : vector<128x80xi32>
    %c64_i32 = arith.constant 64 : i32
    %8 = vector.broadcast %c64_i32 : i32 to vector<128x80xi32>
    %9 = arith.addi %8, %3 : vector<128x80xi32>
    %10 = arith.cmpi eq, %0, %9 : vector<128x80xi32>
    %11 = arith.ori %7, %10 : vector<128x80xi1>
    %c72_i32 = arith.constant 72 : i32
    %12 = vector.broadcast %c72_i32 : i32 to vector<128x1xi32>
    %13 = arith.addi %12, %5 : vector<128x1xi32>
    %14 = vector.broadcast %13 : vector<128x1xi32> to vector<128x80xi32>
    %15 = arith.cmpi eq, %0, %14 : vector<128x80xi32>
    %16 = arith.ori %11, %15 : vector<128x80xi1>
    %17 = arith.extui %16 : vector<128x80xi1> to vector<128x80xi32>
    %18 = arith.sitofp %17 : vector<128x80xi32> to vector<128x80xf32>
    %c0_3 = arith.constant 0 : index
    %c0_4 = arith.constant 0 : index
    %19 = vector.load %arg4[%c0_3, %c0_4] : memref<80x32xf32, #tpu.memory_space<vmem>>, vector<80x32xf32>
    %cst = arith.constant dense<0.000000e+00> : vector<128x32xf32>
    %20 = tpu.matmul %18, %19, %cst {dimension_numbers = #tpu.dot_dimension_numbers<[1], [0], [0], [1], [0, 0, 1, 1], [], []>} : vector<128x80xf32>, vector<80x32xf32>, vector<128x32xf32> -> vector<128x32xf32>
    %c0_5 = arith.constant 0 : index
    %c0_6 = arith.constant 0 : index
    %21 = vector.load %arg5[%c0_5, %c0_6] : memref<9x32xf32, #tpu.memory_space<vmem>>, vector<1x32xf32>
    %c1 = arith.constant 1 : index
    %c0_7 = arith.constant 0 : index
    %22 = vector.load %arg5[%c1, %c0_7] : memref<9x32xf32, #tpu.memory_space<vmem>>, vector<1x32xf32>
    %cst_8 = arith.constant dense<0.000000e+00> : vector<128xf32>
    %23 = vector.multi_reduction <add>, %20, %cst_8 [1] : vector<128x32xf32> to vector<128xf32>
    %24 = vector.shape_cast %23 : vector<128xf32> to vector<128x1xf32>
    %cst_9 = arith.constant 3.200000e+01 : f32
    %25 = vector.broadcast %cst_9 : f32 to vector<128x1xf32>
    %26 = arith.divf %24, %25 : vector<128x1xf32>
    %27 = vector.broadcast %26 : vector<128x1xf32> to vector<128x32xf32>
    %28 = arith.subf %20, %27 : vector<128x32xf32>
    %29 = arith.mulf %28, %28 : vector<128x32xf32>
    %cst_10 = arith.constant dense<0.000000e+00> : vector<128xf32>
    %30 = vector.multi_reduction <add>, %29, %cst_10 [1] : vector<128x32xf32> to vector<128xf32>
    %31 = vector.shape_cast %30 : vector<128xf32> to vector<128x1xf32>
    %cst_11 = arith.constant 3.200000e+01 : f32
    %32 = vector.broadcast %cst_11 : f32 to vector<128x1xf32>
    %33 = arith.divf %31, %32 : vector<128x1xf32>
    %34 = vector.broadcast %26 : vector<128x1xf32> to vector<128x32xf32>
    %35 = arith.subf %20, %34 : vector<128x32xf32>
    %cst_12 = arith.constant 9.99999996E-13 : f32
    %36 = vector.broadcast %cst_12 : f32 to vector<128x1xf32>
    %37 = arith.addf %33, %36 : vector<128x1xf32>
    %38 = math.rsqrt %37 : vector<128x1xf32>
    %39 = vector.broadcast %38 : vector<128x1xf32> to vector<128x32xf32>
    %40 = arith.mulf %35, %39 : vector<128x32xf32>
    %41 = vector.broadcast %21 : vector<1x32xf32> to vector<128x32xf32>
    %42 = arith.mulf %40, %41 : vector<128x32xf32>
    %43 = vector.broadcast %22 : vector<1x32xf32> to vector<128x32xf32>
    %44 = arith.addf %42, %43 : vector<128x32xf32>
    %45 = tpu.iota {dimensions = array<i32: 0>} : vector<128x128xi32>
    %46 = tpu.iota {dimensions = array<i32: 1>} : vector<128x128xi32>
    %c-8_i32 = arith.constant -8 : i32
    %47 = vector.broadcast %c-8_i32 : i32 to vector<128x128xi32>
    %48 = arith.andi %45, %47 : vector<128x128xi32>
    %c-8_i32_13 = arith.constant -8 : i32
    %49 = vector.broadcast %c-8_i32_13 : i32 to vector<128x128xi32>
    %50 = arith.andi %46, %49 : vector<128x128xi32>
    %51 = arith.cmpi eq, %48, %50 : vector<128x128xi32>
    %cst_14 = arith.constant 0.000000e+00 : f32
    %cst_15 = arith.constant -1.000000e+09 : f32
    %52 = vector.broadcast %cst_14 : f32 to vector<128x128xf32>
    %53 = vector.broadcast %cst_15 : f32 to vector<128x128xf32>
    %54 = arith.select %51, %52, %53 : vector<128x128xi1>, vector<128x128xf32>
    %c0_16 = arith.constant 0 : index
    %c0_17 = arith.constant 0 : index
    %c0_18 = arith.constant 0 : index
    %55 = vector.load %arg3[%c0_16, %c0_17, %c0_18] : memref<1x1x128xf32, #tpu.memory_space<vmem>>, vector<1x1x128xf32>
    %56 = vector.shape_cast %55 : vector<1x1x128xf32> to vector<1x128xf32>
    %57 = vector.broadcast %56 : vector<1x128xf32> to vector<128x128xf32>
    %58 = arith.addf %54, %57 : vector<128x128xf32>
    %cst_19 = arith.constant 0.000000e+00 : f32
    %59 = vector.broadcast %cst_19 : f32 to vector<128x32xf32>
    %c0_20 = arith.constant 0 : index
    %c0_21 = arith.constant 0 : index
    %60 = vector.load %arg6[%c0_20, %c0_21] : memref<208x16xf32, #tpu.memory_space<vmem>>, vector<32x16xf32>
    %c32 = arith.constant 32 : index
    %c0_22 = arith.constant 0 : index
    %61 = vector.load %arg6[%c32, %c0_22] : memref<208x16xf32, #tpu.memory_space<vmem>>, vector<32x16xf32>
    %c64 = arith.constant 64 : index
    %c0_23 = arith.constant 0 : index
    %62 = vector.load %arg6[%c64, %c0_23] : memref<208x16xf32, #tpu.memory_space<vmem>>, vector<32x16xf32>
    %c96 = arith.constant 96 : index
    %c0_24 = arith.constant 0 : index
    %63 = vector.load %arg6[%c96, %c0_24] : memref<208x16xf32, #tpu.memory_space<vmem>>, vector<8x16xf32>
    %cst_25 = arith.constant dense<0.000000e+00> : vector<128x16xf32>
    %64 = tpu.matmul %44, %60, %cst_25 {dimension_numbers = #tpu.dot_dimension_numbers<[1], [0], [0], [1], [0, 0, 1, 1], [], []>} : vector<128x32xf32>, vector<32x16xf32>, vector<128x16xf32> -> vector<128x16xf32>
    %65 = vector.extract_strided_slice %63 {offsets = [0, 0], sizes = [1, 16], strides = [1, 1]} : vector<8x16xf32> to vector<1x16xf32>
    %66 = vector.broadcast %65 : vector<1x16xf32> to vector<128x16xf32>
    %67 = arith.addf %64, %66 : vector<128x16xf32>
    %cst_26 = arith.constant dense<0.000000e+00> : vector<128x16xf32>
    %68 = tpu.matmul %44, %61, %cst_26 {dimension_numbers = #tpu.dot_dimension_numbers<[1], [0], [0], [1], [0, 0, 1, 1], [], []>} : vector<128x32xf32>, vector<32x16xf32>, vector<128x16xf32> -> vector<128x16xf32>
    %69 = vector.extract_strided_slice %63 {offsets = [1, 0], sizes = [1, 16], strides = [1, 1]} : vector<8x16xf32> to vector<1x16xf32>
    %70 = vector.broadcast %69 : vector<1x16xf32> to vector<128x16xf32>
    %71 = arith.addf %68, %70 : vector<128x16xf32>
    %cst_27 = arith.constant dense<0.000000e+00> : vector<128x16xf32>
    %72 = tpu.matmul %44, %62, %cst_27 {dimension_numbers = #tpu.dot_dimension_numbers<[1], [0], [0], [1], [0, 0, 1, 1], [], []>} : vector<128x32xf32>, vector<32x16xf32>, vector<128x16xf32> -> vector<128x16xf32>
    %73 = vector.extract_strided_slice %63 {offsets = [2, 0], sizes = [1, 16], strides = [1, 1]} : vector<8x16xf32> to vector<1x16xf32>
    %74 = vector.broadcast %73 : vector<1x16xf32> to vector<128x16xf32>
    %75 = arith.addf %72, %74 : vector<128x16xf32>
    %cst_28 = arith.constant dense<0.000000e+00> : vector<128x128xf32>
    %76 = tpu.matmul %67, %71, %cst_28 {dimension_numbers = #tpu.dot_dimension_numbers<[1], [1], [0], [0], [0, 0, 1, 0], [], []>} : vector<128x16xf32>, vector<128x16xf32>, vector<128x128xf32> -> vector<128x128xf32>
    %77 = arith.addf %76, %58 : vector<128x128xf32>
    %cst_29 = arith.constant dense<0xFF800000> : vector<128xf32>
    %78 = vector.multi_reduction <maximumf>, %77, %cst_29 [1] : vector<128x128xf32> to vector<128xf32>
    %79 = vector.shape_cast %78 : vector<128xf32> to vector<128x1xf32>
    %80 = vector.broadcast %79 : vector<128x1xf32> to vector<128x128xf32>
    %81 = arith.subf %77, %80 : vector<128x128xf32>
    %82 = math.exp %81 : vector<128x128xf32>
    %cst_30 = arith.constant dense<0.000000e+00> : vector<128xf32>
    %83 = vector.multi_reduction <add>, %82, %cst_30 [1] : vector<128x128xf32> to vector<128xf32>
    %84 = vector.shape_cast %83 : vector<128xf32> to vector<128x1xf32>
    %85 = tpu.reciprocal %84 {approx = true} : vector<128x1xf32> -> vector<128x1xf32>
    %86 = vector.broadcast %85 : vector<128x1xf32> to vector<128x128xf32>
    %87 = arith.mulf %82, %86 : vector<128x128xf32>
    %cst_31 = arith.constant dense<0.000000e+00> : vector<128x16xf32>
    %88 = tpu.matmul %87, %75, %cst_31 {dimension_numbers = #tpu.dot_dimension_numbers<[1], [0], [0], [1], [0, 0, 1, 1], [], []>} : vector<128x128xf32>, vector<128x16xf32>, vector<128x16xf32> -> vector<128x16xf32>
    %c0_32 = arith.constant 0 : index
    %c0_33 = arith.constant 0 : index
    %89 = vector.load %arg7[%c0_32, %c0_33] : memref<128x32xf32, #tpu.memory_space<vmem>>, vector<16x32xf32>
    %cst_34 = arith.constant dense<0.000000e+00> : vector<128x32xf32>
    %90 = tpu.matmul %88, %89, %cst_34 {dimension_numbers = #tpu.dot_dimension_numbers<[1], [0], [0], [1], [0, 0, 1, 1], [], []>} : vector<128x16xf32>, vector<16x32xf32>, vector<128x32xf32> -> vector<128x32xf32>
    %91 = arith.addf %59, %90 : vector<128x32xf32>
    %c104 = arith.constant 104 : index
    %c0_35 = arith.constant 0 : index
    %92 = vector.load %arg6[%c104, %c0_35] : memref<208x16xf32, #tpu.memory_space<vmem>>, vector<32x16xf32>
    %c136 = arith.constant 136 : index
    %c0_36 = arith.constant 0 : index
    %93 = vector.load %arg6[%c136, %c0_36] : memref<208x16xf32, #tpu.memory_space<vmem>>, vector<32x16xf32>
    %c168 = arith.constant 168 : index
    %c0_37 = arith.constant 0 : index
    %94 = vector.load %arg6[%c168, %c0_37] : memref<208x16xf32, #tpu.memory_space<vmem>>, vector<32x16xf32>
    %c200 = arith.constant 200 : index
    %c0_38 = arith.constant 0 : index
    %95 = vector.load %arg6[%c200, %c0_38] : memref<208x16xf32, #tpu.memory_space<vmem>>, vector<8x16xf32>
    %cst_39 = arith.constant dense<0.000000e+00> : vector<128x16xf32>
    %96 = tpu.matmul %44, %92, %cst_39 {dimension_numbers = #tpu.dot_dimension_numbers<[1], [0], [0], [1], [0, 0, 1, 1], [], []>} : vector<128x32xf32>, vector<32x16xf32>, vector<128x16xf32> -> vector<128x16xf32>
    %97 = vector.extract_strided_slice %95 {offsets = [0, 0], sizes = [1, 16], strides = [1, 1]} : vector<8x16xf32> to vector<1x16xf32>
    %98 = vector.broadcast %97 : vector<1x16xf32> to vector<128x16xf32>
    %99 = arith.addf %96, %98 : vector<128x16xf32>
    %cst_40 = arith.constant dense<0.000000e+00> : vector<128x16xf32>
    %100 = tpu.matmul %44, %93, %cst_40 {dimension_numbers = #tpu.dot_dimension_numbers<[1], [0], [0], [1], [0, 0, 1, 1], [], []>} : vector<128x32xf32>, vector<32x16xf32>, vector<128x16xf32> -> vector<128x16xf32>
    %101 = vector.extract_strided_slice %95 {offsets = [1, 0], sizes = [1, 16], strides = [1, 1]} : vector<8x16xf32> to vector<1x16xf32>
    %102 = vector.broadcast %101 : vector<1x16xf32> to vector<128x16xf32>
    %103 = arith.addf %100, %102 : vector<128x16xf32>
    %cst_41 = arith.constant dense<0.000000e+00> : vector<128x16xf32>
    %104 = tpu.matmul %44, %94, %cst_41 {dimension_numbers = #tpu.dot_dimension_numbers<[1], [0], [0], [1], [0, 0, 1, 1], [], []>} : vector<128x32xf32>, vector<32x16xf32>, vector<128x16xf32> -> vector<128x16xf32>
    %105 = vector.extract_strided_slice %95 {offsets = [2, 0], sizes = [1, 16], strides = [1, 1]} : vector<8x16xf32> to vector<1x16xf32>
    %106 = vector.broadcast %105 : vector<1x16xf32> to vector<128x16xf32>
    %107 = arith.addf %104, %106 : vector<128x16xf32>
    %cst_42 = arith.constant dense<0.000000e+00> : vector<128x128xf32>
    %108 = tpu.matmul %99, %103, %cst_42 {dimension_numbers = #tpu.dot_dimension_numbers<[1], [1], [0], [0], [0, 0, 1, 0], [], []>} : vector<128x16xf32>, vector<128x16xf32>, vector<128x128xf32> -> vector<128x128xf32>
    %109 = arith.addf %108, %58 : vector<128x128xf32>
    %cst_43 = arith.constant dense<0xFF800000> : vector<128xf32>
    %110 = vector.multi_reduction <maximumf>, %109, %cst_43 [1] : vector<128x128xf32> to vector<128xf32>
    %111 = vector.shape_cast %110 : vector<128xf32> to vector<128x1xf32>
    %112 = vector.broadcast %111 : vector<128x1xf32> to vector<128x128xf32>
    %113 = arith.subf %109, %112 : vector<128x128xf32>
    %114 = math.exp %113 : vector<128x128xf32>
    %cst_44 = arith.constant dense<0.000000e+00> : vector<128xf32>
    %115 = vector.multi_reduction <add>, %114, %cst_44 [1] : vector<128x128xf32> to vector<128xf32>
    %116 = vector.shape_cast %115 : vector<128xf32> to vector<128x1xf32>
    %117 = tpu.reciprocal %116 {approx = true} : vector<128x1xf32> -> vector<128x1xf32>
    %118 = vector.broadcast %117 : vector<128x1xf32> to vector<128x128xf32>
    %119 = arith.mulf %114, %118 : vector<128x128xf32>
    %cst_45 = arith.constant dense<0.000000e+00> : vector<128x16xf32>
    %120 = tpu.matmul %119, %107, %cst_45 {dimension_numbers = #tpu.dot_dimension_numbers<[1], [0], [0], [1], [0, 0, 1, 1], [], []>} : vector<128x128xf32>, vector<128x16xf32>, vector<128x16xf32> -> vector<128x16xf32>
    %c16 = arith.constant 16 : index
    %c0_46 = arith.constant 0 : index
    %121 = vector.load %arg7[%c16, %c0_46] : memref<128x32xf32, #tpu.memory_space<vmem>>, vector<16x32xf32>
    %cst_47 = arith.constant dense<0.000000e+00> : vector<128x32xf32>
    %122 = tpu.matmul %120, %121, %cst_47 {dimension_numbers = #tpu.dot_dimension_numbers<[1], [0], [0], [1], [0, 0, 1, 1], [], []>} : vector<128x16xf32>, vector<16x32xf32>, vector<128x32xf32> -> vector<128x32xf32>
    %123 = arith.addf %91, %122 : vector<128x32xf32>
    %c2 = arith.constant 2 : index
    %c0_48 = arith.constant 0 : index
    %124 = vector.load %arg5[%c2, %c0_48] : memref<9x32xf32, #tpu.memory_space<vmem>>, vector<1x32xf32>
    %125 = vector.broadcast %124 : vector<1x32xf32> to vector<128x32xf32>
    %126 = arith.addf %123, %125 : vector<128x32xf32>
    %127 = arith.addf %44, %126 : vector<128x32xf32>
    %c3 = arith.constant 3 : index
    %c0_49 = arith.constant 0 : index
    %128 = vector.load %arg5[%c3, %c0_49] : memref<9x32xf32, #tpu.memory_space<vmem>>, vector<1x32xf32>
    %c4 = arith.constant 4 : index
    %c0_50 = arith.constant 0 : index
    %129 = vector.load %arg5[%c4, %c0_50] : memref<9x32xf32, #tpu.memory_space<vmem>>, vector<1x32xf32>
    %cst_51 = arith.constant dense<0.000000e+00> : vector<128xf32>
    %130 = vector.multi_reduction <add>, %127, %cst_51 [1] : vector<128x32xf32> to vector<128xf32>
    %131 = vector.shape_cast %130 : vector<128xf32> to vector<128x1xf32>
    %cst_52 = arith.constant 3.200000e+01 : f32
    %132 = vector.broadcast %cst_52 : f32 to vector<128x1xf32>
    %133 = arith.divf %131, %132 : vector<128x1xf32>
    %134 = vector.broadcast %133 : vector<128x1xf32> to vector<128x32xf32>
    %135 = arith.subf %127, %134 : vector<128x32xf32>
    %136 = arith.mulf %135, %135 : vector<128x32xf32>
    %cst_53 = arith.constant dense<0.000000e+00> : vector<128xf32>
    %137 = vector.multi_reduction <add>, %136, %cst_53 [1] : vector<128x32xf32> to vector<128xf32>
    %138 = vector.shape_cast %137 : vector<128xf32> to vector<128x1xf32>
    %cst_54 = arith.constant 3.200000e+01 : f32
    %139 = vector.broadcast %cst_54 : f32 to vector<128x1xf32>
    %140 = arith.divf %138, %139 : vector<128x1xf32>
    %141 = vector.broadcast %133 : vector<128x1xf32> to vector<128x32xf32>
    %142 = arith.subf %127, %141 : vector<128x32xf32>
    %cst_55 = arith.constant 9.99999996E-13 : f32
    %143 = vector.broadcast %cst_55 : f32 to vector<128x1xf32>
    %144 = arith.addf %140, %143 : vector<128x1xf32>
    %145 = math.rsqrt %144 : vector<128x1xf32>
    %146 = vector.broadcast %145 : vector<128x1xf32> to vector<128x32xf32>
    %147 = arith.mulf %142, %146 : vector<128x32xf32>
    %148 = vector.broadcast %128 : vector<1x32xf32> to vector<128x32xf32>
    %149 = arith.mulf %147, %148 : vector<128x32xf32>
    %150 = vector.broadcast %129 : vector<1x32xf32> to vector<128x32xf32>
    %151 = arith.addf %149, %150 : vector<128x32xf32>
    %152 = tpu.iota {dimensions = array<i32: 0>} : vector<16x128xi32>
    %c8_i32 = arith.constant 8 : i32
    %153 = vector.broadcast %c8_i32 : i32 to vector<16x128xi32>
    %154 = arith.muli %152, %153 : vector<16x128xi32>
    %155 = tpu.iota {dimensions = array<i32: 1>} : vector<16x128xi32>
    %156 = arith.cmpi eq, %155, %154 : vector<16x128xi32>
    %157 = arith.extui %156 : vector<16x128xi1> to vector<16x128xi32>
    %158 = arith.sitofp %157 : vector<16x128xi32> to vector<16x128xf32>
    %cst_56 = arith.constant dense<0.000000e+00> : vector<16x32xf32>
    %159 = tpu.matmul %158, %151, %cst_56 {dimension_numbers = #tpu.dot_dimension_numbers<[1], [0], [0], [1], [0, 0, 1, 1], [], []>} : vector<16x128xf32>, vector<128x32xf32>, vector<16x32xf32> -> vector<16x32xf32>
    %c0_57 = arith.constant 0 : index
    %c0_58 = arith.constant 0 : index
    %160 = vector.load %arg8[%c0_57, %c0_58] : memref<33x64xf32, #tpu.memory_space<vmem>>, vector<32x64xf32>
    %cst_59 = arith.constant dense<0.000000e+00> : vector<16x64xf32>
    %161 = tpu.matmul %159, %160, %cst_59 {dimension_numbers = #tpu.dot_dimension_numbers<[1], [0], [0], [1], [0, 0, 1, 1], [], []>} : vector<16x32xf32>, vector<32x64xf32>, vector<16x64xf32> -> vector<16x64xf32>
    %c32_60 = arith.constant 32 : index
    %c0_61 = arith.constant 0 : index
    %162 = vector.load %arg8[%c32_60, %c0_61] : memref<33x64xf32, #tpu.memory_space<vmem>>, vector<1x64xf32>
    %163 = vector.broadcast %162 : vector<1x64xf32> to vector<16x64xf32>
    %164 = arith.addf %161, %163 : vector<16x64xf32>
    %165 = arith.mulf %164, %164 : vector<16x64xf32>
    %166 = arith.mulf %164, %165 : vector<16x64xf32>
    %cst_62 = arith.constant 4.471500e-02 : f32
    %167 = vector.broadcast %cst_62 : f32 to vector<16x64xf32>
    %168 = arith.mulf %167, %166 : vector<16x64xf32>
    %169 = arith.addf %164, %168 : vector<16x64xf32>
    %cst_63 = arith.constant 0.797884583 : f32
    %170 = vector.broadcast %cst_63 : f32 to vector<16x64xf32>
    %171 = arith.mulf %170, %169 : vector<16x64xf32>
    %172 = math.tanh %171 : vector<16x64xf32>
    %cst_64 = arith.constant 1.000000e+00 : f32
    %173 = vector.broadcast %cst_64 : f32 to vector<16x64xf32>
    %174 = arith.addf %173, %172 : vector<16x64xf32>
    %cst_65 = arith.constant 5.000000e-01 : f32
    %175 = vector.broadcast %cst_65 : f32 to vector<16x64xf32>
    %176 = arith.mulf %175, %174 : vector<16x64xf32>
    %177 = arith.mulf %164, %176 : vector<16x64xf32>
    %c32_66 = arith.constant 32 : index
    %c0_67 = arith.constant 0 : index
    %178 = vector.load %arg7[%c32_66, %c0_67] : memref<128x32xf32, #tpu.memory_space<vmem>>, vector<64x32xf32>
    %cst_68 = arith.constant dense<0.000000e+00> : vector<16x32xf32>
    %179 = tpu.matmul %177, %178, %cst_68 {dimension_numbers = #tpu.dot_dimension_numbers<[1], [0], [0], [1], [0, 0, 1, 1], [], []>} : vector<16x64xf32>, vector<64x32xf32>, vector<16x32xf32> -> vector<16x32xf32>
    %c5 = arith.constant 5 : index
    %c0_69 = arith.constant 0 : index
    %180 = vector.load %arg5[%c5, %c0_69] : memref<9x32xf32, #tpu.memory_space<vmem>>, vector<1x32xf32>
    %181 = vector.broadcast %180 : vector<1x32xf32> to vector<16x32xf32>
    %182 = arith.addf %179, %181 : vector<16x32xf32>
    %183 = arith.addf %159, %182 : vector<16x32xf32>
    %c6 = arith.constant 6 : index
    %c0_70 = arith.constant 0 : index
    %184 = vector.load %arg5[%c6, %c0_70] : memref<9x32xf32, #tpu.memory_space<vmem>>, vector<1x32xf32>
    %c7 = arith.constant 7 : index
    %c0_71 = arith.constant 0 : index
    %185 = vector.load %arg5[%c7, %c0_71] : memref<9x32xf32, #tpu.memory_space<vmem>>, vector<1x32xf32>
    %cst_72 = arith.constant dense<0.000000e+00> : vector<16xf32>
    %186 = vector.multi_reduction <add>, %183, %cst_72 [1] : vector<16x32xf32> to vector<16xf32>
    %187 = vector.shape_cast %186 : vector<16xf32> to vector<16x1xf32>
    %cst_73 = arith.constant 3.200000e+01 : f32
    %188 = vector.broadcast %cst_73 : f32 to vector<16x1xf32>
    %189 = arith.divf %187, %188 : vector<16x1xf32>
    %190 = vector.broadcast %189 : vector<16x1xf32> to vector<16x32xf32>
    %191 = arith.subf %183, %190 : vector<16x32xf32>
    %192 = arith.mulf %191, %191 : vector<16x32xf32>
    %cst_74 = arith.constant dense<0.000000e+00> : vector<16xf32>
    %193 = vector.multi_reduction <add>, %192, %cst_74 [1] : vector<16x32xf32> to vector<16xf32>
    %194 = vector.shape_cast %193 : vector<16xf32> to vector<16x1xf32>
    %cst_75 = arith.constant 3.200000e+01 : f32
    %195 = vector.broadcast %cst_75 : f32 to vector<16x1xf32>
    %196 = arith.divf %194, %195 : vector<16x1xf32>
    %197 = vector.broadcast %189 : vector<16x1xf32> to vector<16x32xf32>
    %198 = arith.subf %183, %197 : vector<16x32xf32>
    %cst_76 = arith.constant 9.99999996E-13 : f32
    %199 = vector.broadcast %cst_76 : f32 to vector<16x1xf32>
    %200 = arith.addf %196, %199 : vector<16x1xf32>
    %201 = math.rsqrt %200 : vector<16x1xf32>
    %202 = vector.broadcast %201 : vector<16x1xf32> to vector<16x32xf32>
    %203 = arith.mulf %198, %202 : vector<16x32xf32>
    %204 = vector.broadcast %184 : vector<1x32xf32> to vector<16x32xf32>
    %205 = arith.mulf %203, %204 : vector<16x32xf32>
    %206 = vector.broadcast %185 : vector<1x32xf32> to vector<16x32xf32>
    %207 = arith.addf %205, %206 : vector<16x32xf32>
    %c96_77 = arith.constant 96 : index
    %c0_78 = arith.constant 0 : index
    %208 = vector.load %arg7[%c96_77, %c0_78] : memref<128x32xf32, #tpu.memory_space<vmem>>, vector<32x32xf32>
    %cst_79 = arith.constant dense<0.000000e+00> : vector<16x32xf32>
    %209 = tpu.matmul %207, %208, %cst_79 {dimension_numbers = #tpu.dot_dimension_numbers<[1], [0], [0], [1], [0, 0, 1, 1], [], []>} : vector<16x32xf32>, vector<32x32xf32>, vector<16x32xf32> -> vector<16x32xf32>
    %c8 = arith.constant 8 : index
    %c0_80 = arith.constant 0 : index
    %210 = vector.load %arg5[%c8, %c0_80] : memref<9x32xf32, #tpu.memory_space<vmem>>, vector<1x32xf32>
    %211 = vector.broadcast %210 : vector<1x32xf32> to vector<16x32xf32>
    %212 = arith.addf %209, %211 : vector<16x32xf32>
    %213 = math.tanh %212 : vector<16x32xf32>
    %c0_81 = arith.constant 0 : index
    %c0_82 = arith.constant 0 : index
    %214 = vector.load %arg9[%c0_81, %c0_82] : memref<33x128xf32, #tpu.memory_space<vmem>>, vector<32x128xf32>
    %cst_83 = arith.constant dense<0.000000e+00> : vector<16x128xf32>
    %215 = tpu.matmul %213, %214, %cst_83 {dimension_numbers = #tpu.dot_dimension_numbers<[1], [0], [0], [1], [0, 0, 1, 1], [], []>} : vector<16x32xf32>, vector<32x128xf32>, vector<16x128xf32> -> vector<16x128xf32>
    %c32_84 = arith.constant 32 : index
    %c0_85 = arith.constant 0 : index
    %216 = vector.load %arg9[%c32_84, %c0_85] : memref<33x128xf32, #tpu.memory_space<vmem>>, vector<1x128xf32>
    %217 = vector.broadcast %216 : vector<1x128xf32> to vector<16x128xf32>
    %218 = arith.addf %215, %217 : vector<16x128xf32>
    %c0_86 = arith.constant 0 : index
    %c0_87 = arith.constant 0 : index
    %219 = vector.load %arg10[%c0_86, %c0_87] : memref<16x128xf32, #tpu.memory_space<vmem>>, vector<16x128xf32>
    tpu.vector_store %arg10[%c0_86, %c0_87], %218 {strides = array<i32>} : memref<16x128xf32, #tpu.memory_space<vmem>>, vector<16x128xf32>,
    return
  }
  func.func @transform_0(%arg0: i32) -> (i32, i32) {
    %c0_i32 = arith.constant 0 : i32
    %c0_i32_0 = arith.constant 0 : i32
    return %arg0, %c0_i32 : i32, i32
  }
  func.func @transform_1(%arg0: i32) -> (i32, i32) {
    %c0_i32 = arith.constant 0 : i32
    %c0_i32_0 = arith.constant 0 : i32
    return %arg0, %c0_i32 : i32, i32
  }
  func.func @transform_2(%arg0: i32) -> (i32, i32, i32) {
    %c0_i32 = arith.constant 0 : i32
    %c0_i32_0 = arith.constant 0 : i32
    %c0_i32_1 = arith.constant 0 : i32
    return %arg0, %c0_i32, %c0_i32_0 : i32, i32, i32
  }
  func.func @transform_3(%arg0: i32) -> (i32, i32) {
    %c0_i32 = arith.constant 0 : i32
    %c0_i32_0 = arith.constant 0 : i32
    %c0_i32_1 = arith.constant 0 : i32
    return %c0_i32, %c0_i32_0 : i32, i32
  }
  func.func @transform_4(%arg0: i32) -> (i32, i32) {
    %c0_i32 = arith.constant 0 : i32
    %c0_i32_0 = arith.constant 0 : i32
    %c0_i32_1 = arith.constant 0 : i32
    return %c0_i32, %c0_i32_0 : i32, i32
  }
  func.func @transform_5(%arg0: i32) -> (i32, i32) {
    %c0_i32 = arith.constant 0 : i32
    %c0_i32_0 = arith.constant 0 : i32
    %c0_i32_1 = arith.constant 0 : i32
    return %c0_i32, %c0_i32_0 : i32, i32
  }
  func.func @transform_6(%arg0: i32) -> (i32, i32) {
    %c0_i32 = arith.constant 0 : i32
    %c0_i32_0 = arith.constant 0 : i32
    %c0_i32_1 = arith.constant 0 : i32
    return %c0_i32, %c0_i32_0 : i32, i32
  }
  func.func @transform_7(%arg0: i32) -> (i32, i32) {
    %c0_i32 = arith.constant 0 : i32
    %c0_i32_0 = arith.constant 0 : i32
    %c0_i32_1 = arith.constant 0 : i32
    return %c0_i32, %c0_i32_0 : i32, i32
  }
  func.func @transform_8(%arg0: i32) -> (i32, i32) {
    %c0_i32 = arith.constant 0 : i32
    %c0_i32_0 = arith.constant 0 : i32
    %c0_i32_1 = arith.constant 0 : i32
    return %c0_i32, %c0_i32_0 : i32, i32
  }
  func.func @transform_9(%arg0: i32) -> (i32, i32) {
    %c0_i32 = arith.constant 0 : i32
    %c0_i32_0 = arith.constant 0 : i32
    return %arg0, %c0_i32 : i32, i32
  }
}

</mosaic_0001>

<llo_original>
// kernel: bert_classifier_forward.1
$region0: #{bert_classifier_forward.1}
  #allocation0 [shape = 'u32[]', space=smem, size = 0x4, offset = 0x4, fixed_abs, tag = 'smem constant byte address 0x4 - core index']
  #allocation1 [shape = 'u32[144,128]{1,0:T(1,128)}', space=vmem, size = 0x12000, scoped, tag = 'internal scratch']
  %s0 = inlined_call_operand.vmem [shape: s32[256,1], index: 0, kind: input, shape index: {}]
  %s1 = inlined_call_operand.vmem [shape: s32[256,1], index: 1, kind: input, shape index: {}]
  %s2 = inlined_call_operand.vmem [shape: f32[2,1,128], index: 2, kind: input, shape index: {}]
  %s3 = inlined_call_operand.vmem [shape: f32[80,32], index: 3, kind: input, shape index: {}]
  %s4 = inlined_call_operand.vmem [shape: f32[9,32], index: 4, kind: input, shape index: {}]
  %s5 = inlined_call_operand.vmem [shape: f32[208,16], index: 5, kind: input, shape index: {}]
  %s6 = inlined_call_operand.vmem [shape: f32[128,32], index: 6, kind: input, shape index: {}]
  %s7 = inlined_call_operand.vmem [shape: f32[33,64], index: 7, kind: input, shape index: {}]
  %s8 = inlined_call_operand.vmem [shape: f32[33,128], index: 8, kind: input, shape index: {}]
  %s9 = inlined_call_operand.vmem [shape: f32[32,128], index: 9, kind: output, shape index: {}]
  %s10 = sld [smem:[#allocation0]]
  $region69: #{bert_classifier_forward.1} parent=0
    _
  %s12 = ssub.s32 1, %s10
  %s13 = scalar_select 0, %s12, %s10
  loop: start=0, step=1, limit=4
  $region2: #{bert_classifier_forward.1} parent=0 // loop_pre_header
    _
  $region3: #{bert_classifier_forward.1} parent=0 // loop_header
    %s15 = sphi 0, %s19
    %p16 = scmp.ge.s32.totalorder %s15, 4
    %s25 = sphi 0, %s27
    %s28 = sphi 0, %s25
    %s29 = sphi 0, %s28
    %s45 = sphi 0, %s29
    %s51 = sphi 0, %s53
    %s54 = sphi 0, %s51
    %s55 = sphi 0, %s54
    %s71 = sphi 0, %s55
    %s77 = sphi 0, %s79
    %s80 = sphi 0, %s77
    %s81 = sphi 0, %s80
    %s97 = sphi 0, %s81
    %s101 = sphi 0, %s101
    %s103 = sphi 0, %s101
    %s104 = sphi 0, %s103
    %s118 = sphi 0, %s104
    %s122 = sphi 0, %s122
    %s124 = sphi 0, %s122
    %s125 = sphi 0, %s124
    %s139 = sphi 0, %s125
    %s143 = sphi 0, %s143
    %s145 = sphi 0, %s143
    %s146 = sphi 0, %s145
    %s160 = sphi 0, %s146
    %s164 = sphi 0, %s164
    %s166 = sphi 0, %s164
    %s167 = sphi 0, %s166
    %s181 = sphi 0, %s167
    %s185 = sphi 0, %s185
    %s187 = sphi 0, %s185
    %s188 = sphi 0, %s187
    %s202 = sphi 0, %s188
    %s206 = sphi 0, %s206
    %s208 = sphi 0, %s206
    %s209 = sphi 0, %s208
    %s223 = sphi 0, %s209
    %s229 = sphi 0, %s231
    %s232 = sphi 0, %s229
    %s233 = sphi 0, %s232
    %s249 = sphi 0, %s233
  $region4: #{bert_classifier_forward.1} parent=0 // loop_header_branch
    %18 = sbr.rel (%p16) target = $region8
  $region5: #{bert_classifier_forward.1} parent=0 // loop_body
    %s20 = ssub.s32 %s15, 1
    %s21 = ssub.s32 %s15, 2
    %s22 = sadd.s32 %s15, 1
    %s23 = ssub.s32 %s15, %s22
    %p24 = scmp.eq.s32.totalorder %s23, 0
    %s26 = sadd.s32 %s25, 1
    %s27 = scalar_select %p24, %s25, %s26
    %p30 = pneg %p24
    %p31 = scmp.eq.s32.totalorder %s15, 1
    %p32 = por %p30, %p31
    %p33 = scmp.ne.s32.totalorder %s25, %s28
    %p34 = scmp.eq.s32.totalorder %s15, 0
    %p35 = por %p33, %p34
    %p36 = scmp.ne.s32.totalorder %s25, %s28
    %p37 = scmp.eq.s32.totalorder %s20, 1
    %p38 = por %p36, %p37
    %p39 = scmp.ne.s32.totalorder %s28, %s29
    %p40 = scmp.eq.s32.totalorder %s20, 0
    %p41 = por %p39, %p40
    %p42 = scmp.ne.s32.totalorder %s28, %s29
    %p43 = scmp.eq.s32.totalorder %s21, 1
    %p44 = por %p42, %p43
    %p46 = scmp.ne.s32.totalorder %s29, %s45
    %p47 = scmp.eq.s32.totalorder %s21, 0
    %p48 = por %p46, %p47
    %s49 = ssub.s32 %s15, %s22
    %p50 = scmp.eq.s32.totalorder %s49, 0
    %s52 = sadd.s32 %s51, 1
    %s53 = scalar_select %p50, %s51, %s52
    %p56 = pneg %p50
    %p57 = scmp.eq.s32.totalorder %s15, 1
    %p58 = por %p56, %p57
    %p59 = scmp.ne.s32.totalorder %s51, %s54
    %p60 = scmp.eq.s32.totalorder %s15, 0
    %p61 = por %p59, %p60
    %p62 = scmp.ne.s32.totalorder %s51, %s54
    %p63 = scmp.eq.s32.totalorder %s20, 1
    %p64 = por %p62, %p63
    %p65 = scmp.ne.s32.totalorder %s54, %s55
    %p66 = scmp.eq.s32.totalorder %s20, 0
    %p67 = por %p65, %p66
    %p68 = scmp.ne.s32.totalorder %s54, %s55
    %p69 = scmp.eq.s32.totalorder %s21, 1
    %p70 = por %p68, %p69
    %p72 = scmp.ne.s32.totalorder %s55, %s71
    %p73 = scmp.eq.s32.totalorder %s21, 0
    %p74 = por %p72, %p73
    %s75 = ssub.s32 %s15, %s22
    %p76 = scmp.eq.s32.totalorder %s75, 0
    %s78 = sadd.s32 %s77, 1
    %s79 = scalar_select %p76, %s77, %s78
    %p82 = pneg %p76
    %p83 = scmp.eq.s32.totalorder %s15, 1
    %p84 = por %p82, %p83
    %p85 = scmp.ne.s32.totalorder %s77, %s80
    %p86 = scmp.eq.s32.totalorder %s15, 0
    %p87 = por %p85, %p86
    %p88 = scmp.ne.s32.totalorder %s77, %s80
    %p89 = scmp.eq.s32.totalorder %s20, 1
    %p90 = por %p88, %p89
    %p91 = scmp.ne.s32.totalorder %s80, %s81
    %p92 = scmp.eq.s32.totalorder %s20, 0
    %p93 = por %p91, %p92
    %p94 = scmp.ne.s32.totalorder %s80, %s81
    %p95 = scmp.eq.s32.totalorder %s21, 1
    %p96 = por %p94, %p95
    %p98 = scmp.ne.s32.totalorder %s81, %s97
    %p99 = scmp.eq.s32.totalorder %s21, 0
    %p100 = por %p98, %p99
    %s102 = sadd.s32 %s101, 1
    %p105 = scmp.eq.s32.totalorder %s15, 1
    %p106 = scmp.ne.s32.totalorder %s101, %s103
    %p107 = scmp.eq.s32.totalorder %s15, 0
    %p108 = por %p106, %p107
    %p109 = scmp.ne.s32.totalorder %s101, %s103
    %p110 = scmp.eq.s32.totalorder %s20, 1
    %p111 = por %p109, %p110
    %p112 = scmp.ne.s32.totalorder %s103, %s104
    %p113 = scmp.eq.s32.totalorder %s20, 0
    %p114 = por %p112, %p113
    %p115 = scmp.ne.s32.totalorder %s103, %s104
    %p116 = scmp.eq.s32.totalorder %s21, 1
    %p117 = por %p115, %p116
    %p119 = scmp.ne.s32.totalorder %s104, %s118
    %p120 = scmp.eq.s32.totalorder %s21, 0
    %p121 = por %p119, %p120
    %s123 = sadd.s32 %s122, 1
    %p126 = scmp.eq.s32.totalorder %s15, 1
    %p127 = scmp.ne.s32.totalorder %s122, %s124
    %p128 = scmp.eq.s32.totalorder %s15, 0
    %p129 = por %p127, %p128
    %p130 = scmp.ne.s32.totalorder %s122, %s124
    %p131 = scmp.eq.s32.totalorder %s20, 1
    %p132 = por %p130, %p131
    %p133 = scmp.ne.s32.totalorder %s124, %s125
    %p134 = scmp.eq.s32.totalorder %s20, 0
    %p135 = por %p133, %p134
    %p136 = scmp.ne.s32.totalorder %s124, %s125
    %p137 = scmp.eq.s32.totalorder %s21, 1
    %p138 = por %p136, %p137
    %p140 = scmp.ne.s32.totalorder %s125, %s139
    %p141 = scmp.eq.s32.totalorder %s21, 0
    %p142 = por %p140, %p141
    %s144 = sadd.s32 %s143, 1
    %p147 = scmp.eq.s32.totalorder %s15, 1
    %p148 = scmp.ne.s32.totalorder %s143, %s145
    %p149 = scmp.eq.s32.totalorder %s15, 0
    %p150 = por %p148, %p149
    %p151 = scmp.ne.s32.totalorder %s143, %s145
    %p152 = scmp.eq.s32.totalorder %s20, 1
    %p153 = por %p151, %p152
    %p154 = scmp.ne.s32.totalorder %s145, %s146
    %p155 = scmp.eq.s32.totalorder %s20, 0
    %p156 = por %p154, %p155
    %p157 = scmp.ne.s32.totalorder %s145, %s146
    %p158 = scmp.eq.s32.totalorder %s21, 1
    %p159 = por %p157, %p158
    %p161 = scmp.ne.s32.totalorder %s146, %s160
    %p162 = scmp.eq.s32.totalorder %s21, 0
    %p163 = por %p161, %p162
    %s165 = sadd.s32 %s164, 1
    %p168 = scmp.eq.s32.totalorder %s15, 1
    %p169 = scmp.ne.s32.totalorder %s164, %s166
    %p170 = scmp.eq.s32.totalorder %s15, 0
    %p171 = por %p169, %p170
    %p172 = scmp.ne.s32.totalorder %s164, %s166
    %p173 = scmp.eq.s32.totalorder %s20, 1
    %p174 = por %p172, %p173
    %p175 = scmp.ne.s32.totalorder %s166, %s167
    %p176 = scmp.eq.s32.totalorder %s20, 0
    %p177 = por %p175, %p176
    %p178 = scmp.ne.s32.totalorder %s166, %s167
    %p179 = scmp.eq.s32.totalorder %s21, 1
    %p180 = por %p178, %p179
    %p182 = scmp.ne.s32.totalorder %s167, %s181
    %p183 = scmp.eq.s32.totalorder %s21, 0
    %p184 = por %p182, %p183
    %s186 = sadd.s32 %s185, 1
    %p189 = scmp.eq.s32.totalorder %s15, 1
    %p190 = scmp.ne.s32.totalorder %s185, %s187
    %p191 = scmp.eq.s32.totalorder %s15, 0
    %p192 = por %p190, %p191
    %p193 = scmp.ne.s32.totalorder %s185, %s187
    %p194 = scmp.eq.s32.totalorder %s20, 1
    %p195 = por %p193, %p194
    %p196 = scmp.ne.s32.totalorder %s187, %s188
    %p197 = scmp.eq.s32.totalorder %s20, 0
    %p198 = por %p196, %p197
    %p199 = scmp.ne.s32.totalorder %s187, %s188
    %p200 = scmp.eq.s32.totalorder %s21, 1
    %p201 = por %p199, %p200
    %p203 = scmp.ne.s32.totalorder %s188, %s202
    %p204 = scmp.eq.s32.totalorder %s21, 0
    %p205 = por %p203, %p204
    %s207 = sadd.s32 %s206, 1
    %p210 = scmp.eq.s32.totalorder %s15, 1
    %p211 = scmp.ne.s32.totalorder %s206, %s208
    %p212 = scmp.eq.s32.totalorder %s15, 0
    %p213 = por %p211, %p212
    %p214 = scmp.ne.s32.totalorder %s206, %s208
    %p215 = scmp.eq.s32.totalorder %s20, 1
    %p216 = por %p214, %p215
    %p217 = scmp.ne.s32.totalorder %s208, %s209
    %p218 = scmp.eq.s32.totalorder %s20, 0
    %p219 = por %p217, %p218
    %p220 = scmp.ne.s32.totalorder %s208, %s209
    %p221 = scmp.eq.s32.totalorder %s21, 1
    %p222 = por %p220, %p221
    %p224 = scmp.ne.s32.totalorder %s209, %s223
    %p225 = scmp.eq.s32.totalorder %s21, 0
    %p226 = por %p224, %p225
    %s227 = ssub.s32 %s15, %s22
    %p228 = scmp.eq.s32.totalorder %s227, 0
    %s230 = sadd.s32 %s229, 1
    %s231 = scalar_select %p228, %s229, %s230
    %p234 = pneg %p228
    %p235 = scmp.eq.s32.totalorder %s15, 1
    %p236 = por %p234, %p235
    %p237 = scmp.ne.s32.totalorder %s229, %s232
    %p238 = scmp.eq.s32.totalorder %s15, 0
    %p239 = por %p237, %p238
    %p240 = scmp.ne.s32.totalorder %s229, %s232
    %p241 = scmp.eq.s32.totalorder %s20, 1
    %p242 = por %p240, %p241
    %p243 = scmp.ne.s32.totalorder %s232, %s233
    %p244 = scmp.eq.s32.totalorder %s20, 0
    %p245 = por %p243, %p244
    %p246 = scmp.ne.s32.totalorder %s232, %s233
    %p247 = scmp.eq.s32.totalorder %s21, 1
    %p248 = por %p246, %p247
    %p250 = scmp.ne.s32.totalorder %s233, %s249
    %p251 = scmp.eq.s32.totalorder %s21, 0
    %p252 = por %p250, %p251
    %p253 = scmp.le.s32.totalorder 1, %s15
    %p254 = scmp.lt.s32.totalorder %s15, 3
    %p255 = pnand %p253, %p254
    %p256 = pneg %p255
    // Predicated region
    $region9: #{bert_classifier_forward.1} parent=5 // pred_check
      _
    $region10: #{bert_classifier_forward.1} parent=5 // pred_check_branch
      %258 = sbr.rel (%p255) target = $region12
    $region11: #{bert_classifier_forward.1} parent=5 // pred_region
      %s259 = ssub.s32 %s15, 1
      // Predicated region
      $region13: #{bert_classifier_forward.1} parent=11 // pred_check
        %p260 = pneg %p114
      $region14: #{bert_classifier_forward.1} parent=11 // pred_check_branch
        %262 = sbr.rel (%p260) target = $region16
      $region15: #{bert_classifier_forward.1} parent=11 // pred_region
        _
      $region16: #{bert_classifier_forward.1} parent=11 // pred_fallthru
        _
      // Predicated region
      $region17: #{bert_classifier_forward.1} parent=11 // pred_check
        %p263 = pneg %p135
      $region18: #{bert_classifier_forward.1} parent=11 // pred_check_branch
        %265 = sbr.rel (%p263) target = $region20
      $region19: #{bert_classifier_forward.1} parent=11 // pred_region
        _
      $region20: #{bert_classifier_forward.1} parent=11 // pred_fallthru
        _
      // Predicated region
      $region21: #{bert_classifier_forward.1} parent=11 // pred_check
        %p266 = pneg %p156
      $region22: #{bert_classifier_forward.1} parent=11 // pred_check_branch
        %268 = sbr.rel (%p266) target = $region24
      $region23: #{bert_classifier_forward.1} parent=11 // pred_region
        _
      $region24: #{bert_classifier_forward.1} parent=11 // pred_fallthru
        _
      // Predicated region
      $region25: #{bert_classifier_forward.1} parent=11 // pred_check
        %p269 = pneg %p177
      $region26: #{bert_classifier_forward.1} parent=11 // pred_check_branch
        %271 = sbr.rel (%p269) target = $region28
      $region27: #{bert_classifier_forward.1} parent=11 // pred_region
        _
      $region28: #{bert_classifier_forward.1} parent=11 // pred_fallthru
        _
      // Predicated region
      $region29: #{bert_classifier_forward.1} parent=11 // pred_check
        %p272 = pneg %p198
      $region30: #{bert_classifier_forward.1} parent=11 // pred_check_branch
        %274 = sbr.rel (%p272) target = $region32
      $region31: #{bert_classifier_forward.1} parent=11 // pred_region
        _
      $region32: #{bert_classifier_forward.1} parent=11 // pred_fallthru
        _
      // Predicated region
      $region33: #{bert_classifier_forward.1} parent=11 // pred_check
        %p275 = pneg %p219
      $region34: #{bert_classifier_forward.1} parent=11 // pred_check_branch
        %277 = sbr.rel (%p275) target = $region36
      $region35: #{bert_classifier_forward.1} parent=11 // pred_region
        _
      $region36: #{bert_classifier_forward.1} parent=11 // pred_fallthru
        _
    $region12: #{bert_classifier_forward.1} parent=5 // pred_fallthru
      _
    %p278 = scmp.lt.s32.totalorder %s15, 2
    // Predicated region
    $region37: #{bert_classifier_forward.1} parent=5 // pred_check
      %p279 = pneg %p278
    $region38: #{bert_classifier_forward.1} parent=5 // pred_check_branch
      %281 = sbr.rel (%p279) target = $region40
    $region39: #{bert_classifier_forward.1} parent=5 // pred_region
      // Predicated region
      $region41: #{bert_classifier_forward.1} parent=39 // pred_check
        %p282 = pneg %p35
      $region42: #{bert_classifier_forward.1} parent=39 // pred_check_branch
        %284 = sbr.rel (%p282) target = $region44
      $region43: #{bert_classifier_forward.1} parent=39 // pred_region
        %s285 = smul.u32 16, %s15
        %p286 = scmp.lt.s32.totalorder %s285, 31
        %s287 = scalar_select %p286, %s285, 31
        %s288 = smul.addr %s287, 8
        %s289 = scalar_lea.vmem %s0, %s288
        %s290 = smul.u32 16, %s15
      $region44: #{bert_classifier_forward.1} parent=39 // pred_fallthru
        _
      // Predicated region
      $region45: #{bert_classifier_forward.1} parent=39 // pred_check
        %p291 = pneg %p61
      $region46: #{bert_classifier_forward.1} parent=39 // pred_check_branch
        %293 = sbr.rel (%p291) target = $region48
      $region47: #{bert_classifier_forward.1} parent=39 // pred_region
        %s294 = smul.u32 16, %s15
        %p295 = scmp.lt.s32.totalorder %s294, 31
        %s296 = scalar_select %p295, %s294, 31
        %s297 = smul.addr %s296, 8
        %s298 = scalar_lea.vmem %s1, %s297
        %s299 = smul.u32 16, %s15
      $region48: #{bert_classifier_forward.1} parent=39 // pred_fallthru
        _
      // Predicated region
      $region49: #{bert_classifier_forward.1} parent=39 // pred_check
        %p300 = pneg %p87
      $region50: #{bert_classifier_forward.1} parent=39 // pred_check_branch
        %302 = sbr.rel (%p300) target = $region52
      $region51: #{bert_classifier_forward.1} parent=39 // pred_region
        %p303 = scmp.lt.s32.totalorder %s15, 1
        %s304 = scalar_select %p303, %s15, 1
        %s305 = scalar_lea.vmem %s2, %s304
      $region52: #{bert_classifier_forward.1} parent=39 // pred_fallthru
        _
    $region40: #{bert_classifier_forward.1} parent=5 // pred_fallthru
      _
    %p306 = scmp.le.s32.totalorder 1, %s15
    %p307 = scmp.lt.s32.totalorder %s15, 3
    %p308 = pnand %p306, %p307
    %p309 = pneg %p308
    // Predicated region
    $region53: #{bert_classifier_forward.1} parent=5 // pred_check
      _
    $region54: #{bert_classifier_forward.1} parent=5 // pred_check_branch
      %311 = sbr.rel (%p308) target = $region56
    $region55: #{bert_classifier_forward.1} parent=5 // pred_region
      %s312 = ssub.s32 %s15, 1
      %s313 = smul.u32 16, %s20
      %p314 = scmp.lt.s32.totalorder %s313, 31
      %s315 = scalar_select %p314, %s313, 31
      %s316 = smul.addr %s315, 8
      %s317 = scalar_lea.vmem %s0, %s316
      %p318 = pneg %p41
      %p319 = pneg %p38
      %s320 = smul.u32 16, %s20
      %p321 = scmp.lt.s32.totalorder %s320, 31
      %s322 = scalar_select %p321, %s320, 31
      %s323 = smul.addr %s322, 8
      %s324 = scalar_lea.vmem %s1, %s323
      %p325 = pneg %p67
      %p326 = pneg %p64
      %p327 = scmp.lt.s32.totalorder %s20, 1
      %s328 = scalar_select %p327, %s20, 1
      %s329 = scalar_lea.vmem %s2, %s328
      %p330 = pneg %p93
      %p331 = pneg %p90
      %p332 = pneg %p114
      %p333 = pneg %p111
      %p334 = pneg %p135
      %p335 = pneg %p132
      %p336 = pneg %p156
      %p337 = pneg %p153
      %p338 = pneg %p177
      %p339 = pneg %p174
      %p340 = pneg %p198
      %p341 = pneg %p195
      %p342 = pneg %p219
      %p343 = pneg %p216
      %p344 = pneg %p245
      %p345 = pneg %p242
      %s346 = smul.u32 2, %s20
      %p347 = scmp.lt.s32.totalorder %s346, 3
      %s348 = scalar_select %p347, %s346, 3
      %s349 = smul.addr %s348, 8
      %s350 = scalar_lea.vmem %s9, %s349
      %s351 = smul.u32 16, %s20
      %p352 = scmp.lt.s32.totalorder %s351, 31
      %s353 = scalar_select %p352, %s351, 31
      %s354 = smul.addr %s353, 8
      %s355 = scalar_lea.vmem %s0, %s354
      %s356 = smul.u32 16, %s20
      %s357 = smul.u32 16, %s20
      %p358 = scmp.lt.s32.totalorder %s357, 31
      %s359 = scalar_select %p358, %s357, 31
      %s360 = smul.addr %s359, 8
      %s361 = scalar_lea.vmem %s1, %s360
      %s362 = smul.u32 16, %s20
      %p363 = scmp.lt.s32.totalorder %s20, 1
      %s364 = scalar_select %p363, %s20, 1
      %s365 = scalar_lea.vmem %s2, %s364
      %s366 = smul.u32 2, %s20
      %p367 = scmp.lt.s32.totalorder %s366, 3
      %s368 = scalar_select %p367, %s366, 3
      %s369 = smul.addr %s368, 8
      %s370 = scalar_lea.vmem %s9, %s369
      %s371 = smul.u32 2, %s20
      %v372 = vlaneseq
      %v373 = vand.u32 %v372, 127
      %v374 = vlaneseq
      %v375 = vshrl.u32 %v374, 7
      %v376 = vadd.s32 %v375, 8
      %v377 = vadd.s32 %v375, 16
      %v378 = vadd.s32 %v375, 24
      %v379 = vadd.s32 %v375, 32
      %v380 = vadd.s32 %v375, 40
      %v381 = vadd.s32 %v375, 48
      %v382 = vadd.s32 %v375, 56
      %v383 = vadd.s32 %v375, 64
      %v384 = vadd.s32 %v375, 72
      %v385 = vadd.s32 %v375, 80
      %v386 = vadd.s32 %v375, 88
      %v387 = vadd.s32 %v375, 96
      %v388 = vadd.s32 %v375, 104
      %v389 = vadd.s32 %v375, 112
      %v390 = vadd.s32 %v375, 120
      %v391 = vand.u32 %v375, 7
      %v392 = vand.u32 %v376, 7
      %v393 = vand.u32 %v377, 7
      %v394 = vand.u32 %v378, 7
      %v395 = vand.u32 %v379, 7
      %v396 = vand.u32 %v380, 7
      %v397 = vand.u32 %v381, 7
      %v398 = vand.u32 %v382, 7
      %v399 = vand.u32 %v383, 7
      %v400 = vand.u32 %v384, 7
      %v401 = vand.u32 %v385, 7
      %v402 = vand.u32 %v386, 7
      %v403 = vand.u32 %v387, 7
      %v404 = vand.u32 %v388, 7
      %v405 = vand.u32 %v389, 7
      %v406 = vand.u32 %v390, 7
      %v407 = vld [vmem:[%s355] sm:$0xff]
      %v408 = vld [vmem:[%s355 + $0x8] sm:$0xff]
      %v409 = vld [vmem:[%s355 + $0x10] sm:$0xff]
      %v410 = vld [vmem:[%s355 + $0x18] sm:$0xff]
      %v411 = vld [vmem:[%s355 + $0x20] sm:$0xff]
      %v412 = vld [vmem:[%s355 + $0x28] sm:$0xff]
      %v413 = vld [vmem:[%s355 + $0x30] sm:$0xff]
      %v414 = vld [vmem:[%s355 + $0x38] sm:$0xff]
      %v415 = vld [vmem:[%s355 + $0x40] sm:$0xff]
      %v416 = vld [vmem:[%s355 + $0x48] sm:$0xff]
      %v417 = vld [vmem:[%s355 + $0x50] sm:$0xff]
      %v418 = vld [vmem:[%s355 + $0x58] sm:$0xff]
      %v419 = vld [vmem:[%s355 + $0x60] sm:$0xff]
      %v420 = vld [vmem:[%s355 + $0x68] sm:$0xff]
      %v421 = vld [vmem:[%s355 + $0x70] sm:$0xff]
      %v422 = vld [vmem:[%s355 + $0x78] sm:$0xff]
      %v423 = vld [vmem:[%s361] sm:$0xff]
      %v424 = vld [vmem:[%s361 + $0x8] sm:$0xff]
      %v425 = vld [vmem:[%s361 + $0x10] sm:$0xff]
      %v426 = vld [vmem:[%s361 + $0x18] sm:$0xff]
      %v427 = vld [vmem:[%s361 + $0x20] sm:$0xff]
      %v428 = vld [vmem:[%s361 + $0x28] sm:$0xff]
      %v429 = vld [vmem:[%s361 + $0x30] sm:$0xff]
      %v430 = vld [vmem:[%s361 + $0x38] sm:$0xff]
      %v431 = vld [vmem:[%s361 + $0x40] sm:$0xff]
      %v432 = vld [vmem:[%s361 + $0x48] sm:$0xff]
      %v433 = vld [vmem:[%s361 + $0x50] sm:$0xff]
      %v434 = vld [vmem:[%s361 + $0x58] sm:$0xff]
      %v435 = vld [vmem:[%s361 + $0x60] sm:$0xff]
      %v436 = vld [vmem:[%s361 + $0x68] sm:$0xff]
      %v437 = vld [vmem:[%s361 + $0x70] sm:$0xff]
      %v438 = vld [vmem:[%s361 + $0x78] sm:$0xff]
      %439 = vset.pattern.permute.xlu0 0
      %440 = vperm.xlu0 %439, %v407
      %v441 = vpop.permute.xlu0 %440
      %442 = vset.pattern.permute.xlu0 0
      %443 = vperm.xlu0 %442, %v408
      %v444 = vpop.permute.xlu0 %443
      %445 = vset.pattern.permute.xlu0 0
      %446 = vperm.xlu0 %445, %v409
      %v447 = vpop.permute.xlu0 %446
      %448 = vset.pattern.permute.xlu0 0
      %449 = vperm.xlu0 %448, %v410
      %v450 = vpop.permute.xlu0 %449
      %451 = vset.pattern.permute.xlu0 0
      %452 = vperm.xlu0 %451, %v411
      %v453 = vpop.permute.xlu0 %452
      %454 = vset.pattern.permute.xlu0 0
      %455 = vperm.xlu0 %454, %v412
      %v456 = vpop.permute.xlu0 %455
      %457 = vset.pattern.permute.xlu0 0
      %458 = vperm.xlu0 %457, %v413
      %v459 = vpop.permute.xlu0 %458
      %460 = vset.pattern.permute.xlu0 0
      %461 = vperm.xlu0 %460, %v414
      %v462 = vpop.permute.xlu0 %461
      %463 = vset.pattern.permute.xlu0 0
      %464 = vperm.xlu0 %463, %v415
      %v465 = vpop.permute.xlu0 %464
      %466 = vset.pattern.permute.xlu0 0
      %467 = vperm.xlu0 %466, %v416
      %v468 = vpop.permute.xlu0 %467
      %469 = vset.pattern.permute.xlu0 0
      %470 = vperm.xlu0 %469, %v417
      %v471 = vpop.permute.xlu0 %470
      %472 = vset.pattern.permute.xlu0 0
      %473 = vperm.xlu0 %472, %v418
      %v474 = vpop.permute.xlu0 %473
      %475 = vset.pattern.permute.xlu0 0
      %476 = vperm.xlu0 %475, %v419
      %v477 = vpop.permute.xlu0 %476
      %478 = vset.pattern.permute.xlu0 0
      %479 = vperm.xlu0 %478, %v420
      %v480 = vpop.permute.xlu0 %479
      %481 = vset.pattern.permute.xlu0 0
      %482 = vperm.xlu0 %481, %v421
      %v483 = vpop.permute.xlu0 %482
      %484 = vset.pattern.permute.xlu0 0
      %485 = vperm.xlu0 %484, %v422
      %v486 = vpop.permute.xlu0 %485
      %vm487 = vcmp.eq.s32.totalorder %v373, %v441
      %vm488 = vcmp.eq.s32.totalorder %v373, %v444
      %vm489 = vcmp.eq.s32.totalorder %v373, %v447
      %vm490 = vcmp.eq.s32.totalorder %v373, %v450
      %vm491 = vcmp.eq.s32.totalorder %v373, %v453
      %vm492 = vcmp.eq.s32.totalorder %v373, %v456
      %vm493 = vcmp.eq.s32.totalorder %v373, %v459
      %vm494 = vcmp.eq.s32.totalorder %v373, %v462
      %vm495 = vcmp.eq.s32.totalorder %v373, %v465
      %vm496 = vcmp.eq.s32.totalorder %v373, %v468
      %vm497 = vcmp.eq.s32.totalorder %v373, %v471
      %vm498 = vcmp.eq.s32.totalorder %v373, %v474
      %vm499 = vcmp.eq.s32.totalorder %v373, %v477
      %vm500 = vcmp.eq.s32.totalorder %v373, %v480
      %vm501 = vcmp.eq.s32.totalorder %v373, %v483
      %vm502 = vcmp.eq.s32.totalorder %v373, %v486
      %v503 = vadd.s32 %v391, 64
      %v504 = vadd.s32 %v392, 64
      %v505 = vadd.s32 %v393, 64
      %v506 = vadd.s32 %v394, 64
      %v507 = vadd.s32 %v395, 64
      %v508 = vadd.s32 %v396, 64
      %v509 = vadd.s32 %v397, 64
      %v510 = vadd.s32 %v398, 64
      %v511 = vadd.s32 %v399, 64
      %v512 = vadd.s32 %v400, 64
      %v513 = vadd.s32 %v401, 64
      %v514 = vadd.s32 %v402, 64
      %v515 = vadd.s32 %v403, 64
      %v516 = vadd.s32 %v404, 64
      %v517 = vadd.s32 %v405, 64
      %v518 = vadd.s32 %v406, 64
      %vm519 = vcmp.eq.s32.totalorder %v373, %v503
      %vm520 = vcmp.eq.s32.totalorder %v373, %v504
      %vm521 = vcmp.eq.s32.totalorder %v373, %v505
      %vm522 = vcmp.eq.s32.totalorder %v373, %v506
      %vm523 = vcmp.eq.s32.totalorder %v373, %v507
      %vm524 = vcmp.eq.s32.totalorder %v373, %v508
      %vm525 = vcmp.eq.s32.totalorder %v373, %v509
      %vm526 = vcmp.eq.s32.totalorder %v373, %v510
      %vm527 = vcmp.eq.s32.totalorder %v373, %v511
      %vm528 = vcmp.eq.s32.totalorder %v373, %v512
      %vm529 = vcmp.eq.s32.totalorder %v373, %v513
      %vm530 = vcmp.eq.s32.totalorder %v373, %v514
      %vm531 = vcmp.eq.s32.totalorder %v373, %v515
      %vm532 = vcmp.eq.s32.totalorder %v373, %v516
      %vm533 = vcmp.eq.s32.totalorder %v373, %v517
      %vm534 = vcmp.eq.s32.totalorder %v373, %v518
      %vm535 = vmor %vm487, %vm519
      %vm536 = vmor %vm488, %vm520
      %vm537 = vmor %vm489, %vm521
      %vm538 = vmor %vm490, %vm522
      %vm539 = vmor %vm491, %vm523
      %vm540 = vmor %vm492, %vm524
      %vm541 = vmor %vm493, %vm525
      %vm542 = vmor %vm494, %vm526
      %vm543 = vmor %vm495, %vm527
      %vm544 = vmor %vm496, %vm528
      %vm545 = vmor %vm497, %vm529
      %vm546 = vmor %vm498, %vm530
      %vm547 = vmor %vm499, %vm531
      %vm548 = vmor %vm500, %vm532
      %vm549 = vmor %vm501, %vm533
      %vm550 = vmor %vm502, %vm534
      %v551 = vadd.s32 %v423, 72
      %v552 = vadd.s32 %v424, 72
      %v553 = vadd.s32 %v425, 72
      %v554 = vadd.s32 %v426, 72
      %v555 = vadd.s32 %v427, 72
      %v556 = vadd.s32 %v428, 72
      %v557 = vadd.s32 %v429, 72
      %v558 = vadd.s32 %v430, 72
      %v559 = vadd.s32 %v431, 72
      %v560 = vadd.s32 %v432, 72
      %v561 = vadd.s32 %v433, 72
      %v562 = vadd.s32 %v434, 72
      %v563 = vadd.s32 %v435, 72
      %v564 = vadd.s32 %v436, 72
      %v565 = vadd.s32 %v437, 72
      %v566 = vadd.s32 %v438, 72
      %567 = vset.pattern.permute.xlu0 0
      %568 = vperm.xlu0 %567, %v551
      %v569 = vpop.permute.xlu0 %568
      %570 = vset.pattern.permute.xlu0 0
      %571 = vperm.xlu0 %570, %v552
      %v572 = vpop.permute.xlu0 %571
      %573 = vset.pattern.permute.xlu0 0
      %574 = vperm.xlu0 %573, %v553
      %v575 = vpop.permute.xlu0 %574
      %576 = vset.pattern.permute.xlu0 0
      %577 = vperm.xlu0 %576, %v554
      %v578 = vpop.permute.xlu0 %577
      %579 = vset.pattern.permute.xlu0 0
      %580 = vperm.xlu0 %579, %v555
      %v581 = vpop.permute.xlu0 %580
      %582 = vset.pattern.permute.xlu0 0
      %583 = vperm.xlu0 %582, %v556
      %v584 = vpop.permute.xlu0 %583
      %585 = vset.pattern.permute.xlu0 0
      %586 = vperm.xlu0 %585, %v557
      %v587 = vpop.permute.xlu0 %586
      %588 = vset.pattern.permute.xlu0 0
      %589 = vperm.xlu0 %588, %v558
      %v590 = vpop.permute.xlu0 %589
      %591 = vset.pattern.permute.xlu0 0
      %592 = vperm.xlu0 %591, %v559
      %v593 = vpop.permute.xlu0 %592
      %594 = vset.pattern.permute.xlu0 0
      %595 = vperm.xlu0 %594, %v560
      %v596 = vpop.permute.xlu0 %595
      %597 = vset.pattern.permute.xlu0 0
      %598 = vperm.xlu0 %597, %v561
      %v599 = vpop.permute.xlu0 %598
      %600 = vset.pattern.permute.xlu0 0
      %601 = vperm.xlu0 %600, %v562
      %v602 = vpop.permute.xlu0 %601
      %603 = vset.pattern.permute.xlu0 0
      %604 = vperm.xlu0 %603, %v563
      %v605 = vpop.permute.xlu0 %604
      %606 = vset.pattern.permute.xlu0 0
      %607 = vperm.xlu0 %606, %v564
      %v608 = vpop.permute.xlu0 %607
      %609 = vset.pattern.permute.xlu0 0
      %610 = vperm.xlu0 %609, %v565
      %v611 = vpop.permute.xlu0 %610
      %612 = vset.pattern.permute.xlu0 0
      %613 = vperm.xlu0 %612, %v566
      %v614 = vpop.permute.xlu0 %613
      %vm615 = vcmp.eq.s32.totalorder %v373, %v569
      %vm616 = vcmp.eq.s32.totalorder %v373, %v572
      %vm617 = vcmp.eq.s32.totalorder %v373, %v575
      %vm618 = vcmp.eq.s32.totalorder %v373, %v578
      %vm619 = vcmp.eq.s32.totalorder %v373, %v581
      %vm620 = vcmp.eq.s32.totalorder %v373, %v584
      %vm621 = vcmp.eq.s32.totalorder %v373, %v587
      %vm622 = vcmp.eq.s32.totalorder %v373, %v590
      %vm623 = vcmp.eq.s32.totalorder %v373, %v593
      %vm624 = vcmp.eq.s32.totalorder %v373, %v596
      %vm625 = vcmp.eq.s32.totalorder %v373, %v599
      %vm626 = vcmp.eq.s32.totalorder %v373, %v602
      %vm627 = vcmp.eq.s32.totalorder %v373, %v605
      %vm628 = vcmp.eq.s32.totalorder %v373, %v608
      %vm629 = vcmp.eq.s32.totalorder %v373, %v611
      %vm630 = vcmp.eq.s32.totalorder %v373, %v614
      %vm631 = vmor %vm535, %vm615
      %vm632 = vmor %vm536, %vm616
      %vm633 = vmor %vm537, %vm617
      %vm634 = vmor %vm538, %vm618
      %vm635 = vmor %vm539, %vm619
      %vm636 = vmor %vm540, %vm620
      %vm637 = vmor %vm541, %vm621
      %vm638 = vmor %vm542, %vm622
      %vm639 = vmor %vm543, %vm623
      %vm640 = vmor %vm544, %vm624
      %vm641 = vmor %vm545, %vm625
      %vm642 = vmor %vm546, %vm626
      %vm643 = vmor %vm547, %vm627
      %vm644 = vmor %vm548, %vm628
      %vm645 = vmor %vm549, %vm629
      %vm646 = vmor %vm550, %vm630
      %v647 = vsel %vm631, 1, 0
      %v648 = vsel %vm632, 1, 0
      %v649 = vsel %vm633, 1, 0
      %v650 = vsel %vm634, 1, 0
      %v651 = vsel %vm635, 1, 0
      %v652 = vsel %vm636, 1, 0
      %v653 = vsel %vm637, 1, 0
      %v654 = vsel %vm638, 1, 0
      %v655 = vsel %vm639, 1, 0
      %v656 = vsel %vm640, 1, 0
      %v657 = vsel %vm641, 1, 0
      %v658 = vsel %vm642, 1, 0
      %v659 = vsel %vm643, 1, 0
      %v660 = vsel %vm644, 1, 0
      %v661 = vsel %vm645, 1, 0
      %v662 = vsel %vm646, 1, 0
      %v663 = vcvt.s32.f32 %v647
      %v664 = vcvt.s32.f32 %v648
      %v665 = vcvt.s32.f32 %v649
      %v666 = vcvt.s32.f32 %v650
      %v667 = vcvt.s32.f32 %v651
      %v668 = vcvt.s32.f32 %v652
      %v669 = vcvt.s32.f32 %v653
      %v670 = vcvt.s32.f32 %v654
      %v671 = vcvt.s32.f32 %v655
      %v672 = vcvt.s32.f32 %v656
      %v673 = vcvt.s32.f32 %v657
      %v674 = vcvt.s32.f32 %v658
      %v675 = vcvt.s32.f32 %v659
      %v676 = vcvt.s32.f32 %v660
      %v677 = vcvt.s32.f32 %v661
      %v678 = vcvt.s32.f32 %v662
      %v679 = vld [vmem:[%s3] sm:$0xff]
      %v680 = vld [vmem:[%s3 + $0x8] sm:$0xff]
      %v681 = vld [vmem:[%s3 + $0x10] sm:$0xff]
      %v682 = vld [vmem:[%s3 + $0x18] sm:$0xff]
      %v683 = vld [vmem:[%s3 + $0x20] sm:$0xff]
      %v684 = vld [vmem:[%s3 + $0x28] sm:$0xff]
      %v685 = vld [vmem:[%s3 + $0x30] sm:$0xff]
      %v686 = vld [vmem:[%s3 + $0x38] sm:$0xff]
      %v687 = vld [vmem:[%s3 + $0x40] sm:$0xff]
      %v688 = vld [vmem:[%s3 + $0x48] sm:$0xff]
      %vm689 = vcmask 654336
      %v691 = vsel %vm689, %v663, 0
      %v694 = vsel %vm689, %v664, 0
      %v697 = vsel %vm689, %v665, 0
      %v700 = vsel %vm689, %v666, 0
      %v703 = vsel %vm689, %v667, 0
      %v706 = vsel %vm689, %v668, 0
      %v709 = vsel %vm689, %v669, 0
      %v712 = vsel %vm689, %v670, 0
      %v715 = vsel %vm689, %v671, 0
      %v718 = vsel %vm689, %v672, 0
      %v721 = vsel %vm689, %v673, 0
      %v724 = vsel %vm689, %v674, 0
      %v727 = vsel %vm689, %v675, 0
      %v730 = vsel %vm689, %v676, 0
      %v733 = vsel %vm689, %v677, 0
      %v736 = vsel %vm689, %v678, 0
      %738 = vmatprep.subr.mxu0 0.0
      %739 = vmatpush1.msra.mxu0 %v679
      %740 = vmatprep.subr.mxu0 0.0
      %741 = vmatpush1.msra.mxu0 %v680
      %742 = vmatprep.subr.mxu0 0.0
      %743 = vmatpush1.msra.mxu0 %v681
      %744 = vmatprep.subr.mxu0 0.0
      %745 = vmatpush1.msra.mxu0 %v682
      %746 = vmatprep.subr.mxu0 0.0
      %747 = vmatpush1.msra.mxu0 %v683
      %748 = vmatprep.subr.mxu0 0.0
      %749 = vmatpush1.msra.mxu0 %v684
      %750 = vmatprep.subr.mxu0 0.0
      %751 = vmatpush1.msra.mxu0 %v685
      %752 = vmatprep.subr.mxu0 0.0
      %753 = vmatpush1.msra.mxu0 %v686
      %754 = vmatprep.subr.mxu0 0.0
      %755 = vmatpush1.msra.mxu0 %v687
      %756 = vmatprep.subr.mxu0 0.0
      %757 = vmatpush1.msra.mxu0 %v688
      %758 = vmatprep.subr.mxu0 0.0
      %759 = vmatpush1.msra.mxu0 0.0
      %760 = vmatprep.subr.mxu0 0.0
      %761 = vmatpush1.msra.mxu0 0.0
      %762 = vmatprep.subr.mxu0 0.0
      %763 = vmatpush1.msra.mxu0 0.0
      %764 = vmatprep.subr.mxu0 0.0
      %765 = vmatpush1.msra.mxu0 0.0
      %766 = vmatprep.subr.mxu0 0.0
      %767 = vmatpush1.msra.mxu0 0.0
      %768 = vmatprep.subr.mxu0 0.0
      %769 = vmatpush1.msra.mxu0 0.0
      %770 = vmatprep.subr.mxu0 0.0
      %771 = vmatpush1.msra.mxu0 0.0
      %772 = vmatprep.subr.mxu0 0.0
      %773 = vmatpush1.msra.mxu0 0.0
      %774 = vmatprep.subr.mxu0 0.0
      %775 = vmatpush1.msra.mxu0 0.0
      %776 = vmatprep.subr.mxu0 0.0
      %777 = vmatpush1.msra.mxu0 0.0
      %778 = vmatprep.subr.mxu0 0.0
      %779 = vmatpush1.msra.mxu0 0.0
      %780 = vmatprep.subr.mxu0 0.0
      %781 = vmatpush1.msra.mxu0 0.0
      %782 = vmatprep.subr.mxu0 0.0
      %783 = vmatpush1.msra.mxu0 0.0
      %784 = vmatprep.subr.mxu0 0.0
      %785 = vmatpush1.msra.mxu0 0.0
      %786 = vmatprep.subr.mxu0 0.0
      %787 = vmatpush1.msra.mxu0 0.0
      %788 = vmatprep.subr.mxu0 0.0
      %789 = vmatpush1.msra.mxu0 0.0
      %790 = vmatprep.subr.mxu0 0.0
      %791 = vmatpush1.msra.mxu0 0.0
      %792 = vmatprep.subr.mxu0 0.0
      %793 = vmatpush1.msra.mxu0 0.0
      %794 = vmatprep.subr.mxu0 0.0
      %795 = vmatpush1.msra.mxu0 0.0
      %796 = vmatprep.subr.mxu0 0.0
      %797 = vmatpush1.msra.mxu0 0.0
      %798 = vmatprep.subr.mxu0 0.0
      %799 = vmatpush1.msra.mxu0 0.0
      %800 = vmatprep.subr.mxu0 0.0
      %801 = vmatpush1.msra.mxu0 0.0
      %802 = vmatprep.mubr.f32.mxu0 0.0
      %803 = vmatmul.mubr.f32.gmra.mrb[0].mxu0 %v691
      %v804 = vpop.f32.mrb[0].mxu0
      %v805 = vadd.f32 0.0, %v804
      %v806 = vpop.f32.mrb[0].mxu0
      %807 = vmatprep.mubr.f32.mxu0 0.0
      %808 = vmatmul.mubr.f32.gmra.mrb[0].mxu0 %v694
      %v809 = vpop.f32.mrb[0].mxu0
      %v810 = vadd.f32 0.0, %v809
      %v811 = vpop.f32.mrb[0].mxu0
      %812 = vmatprep.mubr.f32.mxu0 0.0
      %813 = vmatmul.mubr.f32.gmra.mrb[0].mxu0 %v697
      %v814 = vpop.f32.mrb[0].mxu0
      %v815 = vadd.f32 0.0, %v814
      %v816 = vpop.f32.mrb[0].mxu0
      %817 = vmatprep.mubr.f32.mxu0 0.0
      %818 = vmatmul.mubr.f32.gmra.mrb[0].mxu0 %v700
      %v819 = vpop.f32.mrb[0].mxu0
      %v820 = vadd.f32 0.0, %v819
      %v821 = vpop.f32.mrb[0].mxu0
      %822 = vmatprep.mubr.f32.mxu0 0.0
      %823 = vmatmul.mubr.f32.gmra.mrb[0].mxu0 %v703
      %v824 = vpop.f32.mrb[0].mxu0
      %v825 = vadd.f32 0.0, %v824
      %v826 = vpop.f32.mrb[0].mxu0
      %827 = vmatprep.mubr.f32.mxu0 0.0
      %828 = vmatmul.mubr.f32.gmra.mrb[0].mxu0 %v706
      %v829 = vpop.f32.mrb[0].mxu0
      %v830 = vadd.f32 0.0, %v829
      %v831 = vpop.f32.mrb[0].mxu0
      %832 = vmatprep.mubr.f32.mxu0 0.0
      %833 = vmatmul.mubr.f32.gmra.mrb[0].mxu0 %v709
      %v834 = vpop.f32.mrb[0].mxu0
      %v835 = vadd.f32 0.0, %v834
      %v836 = vpop.f32.mrb[0].mxu0
      %837 = vmatprep.mubr.f32.mxu0 0.0
      %838 = vmatmul.mubr.f32.gmra.mrb[0].mxu0 %v712
      %v839 = vpop.f32.mrb[0].mxu0
      %v840 = vadd.f32 0.0, %v839
      %v841 = vpop.f32.mrb[0].mxu0
      %842 = vmatprep.mubr.f32.mxu0 0.0
      %843 = vmatmul.mubr.f32.gmra.mrb[0].mxu0 %v715
      %v844 = vpop.f32.mrb[0].mxu0
      %v845 = vadd.f32 0.0, %v844
      %v846 = vpop.f32.mrb[0].mxu0
      %847 = vmatprep.mubr.f32.mxu0 0.0
      %848 = vmatmul.mubr.f32.gmra.mrb[0].mxu0 %v718
      %v849 = vpop.f32.mrb[0].mxu0
      %v850 = vadd.f32 0.0, %v849
      %v851 = vpop.f32.mrb[0].mxu0
      %852 = vmatprep.mubr.f32.mxu0 0.0
      %853 = vmatmul.mubr.f32.gmra.mrb[0].mxu0 %v721
      %v854 = vpop.f32.mrb[0].mxu0
      %v855 = vadd.f32 0.0, %v854
      %v856 = vpop.f32.mrb[0].mxu0
      %857 = vmatprep.mubr.f32.mxu0 0.0
      %858 = vmatmul.mubr.f32.gmra.mrb[0].mxu0 %v724
      %v859 = vpop.f32.mrb[0].mxu0
      %v860 = vadd.f32 0.0, %v859
      %v861 = vpop.f32.mrb[0].mxu0
      %862 = vmatprep.mubr.f32.mxu0 0.0
      %863 = vmatmul.mubr.f32.gmra.mrb[0].mxu0 %v727
      %v864 = vpop.f32.mrb[0].mxu0
      %v865 = vadd.f32 0.0, %v864
      %v866 = vpop.f32.mrb[0].mxu0
      %867 = vmatprep.mubr.f32.mxu0 0.0
      %868 = vmatmul.mubr.f32.gmra.mrb[0].mxu0 %v730
      %v869 = vpop.f32.mrb[0].mxu0
      %v870 = vadd.f32 0.0, %v869
      %v871 = vpop.f32.mrb[0].mxu0
      %872 = vmatprep.mubr.f32.mxu0 0.0
      %873 = vmatmul.mubr.f32.gmra.mrb[0].mxu0 %v733
      %v874 = vpop.f32.mrb[0].mxu0
      %v875 = vadd.f32 0.0, %v874
      %v876 = vpop.f32.mrb[0].mxu0
      %877 = vmatprep.mubr.f32.mxu0 0.0
      %878 = vmatmul.mubr.f32.gmra.mrb[0].mxu0 %v736
      %v879 = vpop.f32.mrb[0].mxu0
      %v880 = vadd.f32 0.0, %v879
      %v881 = vpop.f32.mrb[0].mxu0
      %882 = vdwg.mxu0
      %v883 = vld [vmem:[%s4] sm:$0x1]
      %v884 = vld [vmem:[%s4 + $0x1] sm:$0x1]
      %vm885 = vcmask 261120
      %v886 = vsel %vm885, %v805, 0.0
      %887 = vadd.xlane.f32.xlu0 %v886
      %v888 = vpop.xlane.xlu0 %887
      %v889 = vsel %vm885, %v810, 0.0
      %890 = vadd.xlane.f32.xlu0 %v889
      %v891 = vpop.xlane.xlu0 %890
      %v892 = vsel %vm885, %v815, 0.0
      %893 = vadd.xlane.f32.xlu0 %v892
      %v894 = vpop.xlane.xlu0 %893
      %v895 = vsel %vm885, %v820, 0.0
      %896 = vadd.xlane.f32.xlu0 %v895
      %v897 = vpop.xlane.xlu0 %896
      %v898 = vsel %vm885, %v825, 0.0
      %899 = vadd.xlane.f32.xlu0 %v898
      %v900 = vpop.xlane.xlu0 %899
      %v901 = vsel %vm885, %v830, 0.0
      %902 = vadd.xlane.f32.xlu0 %v901
      %v903 = vpop.xlane.xlu0 %902
      %v904 = vsel %vm885, %v835, 0.0
      %905 = vadd.xlane.f32.xlu0 %v904
      %v906 = vpop.xlane.xlu0 %905
      %v907 = vsel %vm885, %v840, 0.0
      %908 = vadd.xlane.f32.xlu0 %v907
      %v909 = vpop.xlane.xlu0 %908
      %v910 = vsel %vm885, %v845, 0.0
      %911 = vadd.xlane.f32.xlu0 %v910
      %v912 = vpop.xlane.xlu0 %911
      %v913 = vsel %vm885, %v850, 0.0
      %914 = vadd.xlane.f32.xlu0 %v913
      %v915 = vpop.xlane.xlu0 %914
      %v916 = vsel %vm885, %v855, 0.0
      %917 = vadd.xlane.f32.xlu0 %v916
      %v918 = vpop.xlane.xlu0 %917
      %v919 = vsel %vm885, %v860, 0.0
      %920 = vadd.xlane.f32.xlu0 %v919
      %v921 = vpop.xlane.xlu0 %920
      %v922 = vsel %vm885, %v865, 0.0
      %923 = vadd.xlane.f32.xlu0 %v922
      %v924 = vpop.xlane.xlu0 %923
      %v925 = vsel %vm885, %v870, 0.0
      %926 = vadd.xlane.f32.xlu0 %v925
      %v927 = vpop.xlane.xlu0 %926
      %v928 = vsel %vm885, %v875, 0.0
      %929 = vadd.xlane.f32.xlu0 %v928
      %v930 = vpop.xlane.xlu0 %929
      %v931 = vsel %vm885, %v880, 0.0
      %932 = vadd.xlane.f32.xlu0 %v931
      %v933 = vpop.xlane.xlu0 %932
      %v934 = vrcp.pop 32.0
      %v935 = vmul.f32 %v888, %v934
      %v936 = vmul.f32 %v891, %v934
      %v937 = vmul.f32 %v894, %v934
      %v938 = vmul.f32 %v897, %v934
      %v939 = vmul.f32 %v900, %v934
      %v940 = vmul.f32 %v903, %v934
      %v941 = vmul.f32 %v906, %v934
      %v942 = vmul.f32 %v909, %v934
      %v943 = vmul.f32 %v912, %v934
      %v944 = vmul.f32 %v915, %v934
      %v945 = vmul.f32 %v918, %v934
      %v946 = vmul.f32 %v921, %v934
      %v947 = vmul.f32 %v924, %v934
      %v948 = vmul.f32 %v927, %v934
      %v949 = vmul.f32 %v930, %v934
      %v950 = vmul.f32 %v933, %v934
      %v951 = vsub.f32 %v805, %v935
      %v952 = vsub.f32 %v810, %v936
      %v953 = vsub.f32 %v815, %v937
      %v954 = vsub.f32 %v820, %v938
      %v955 = vsub.f32 %v825, %v939
      %v956 = vsub.f32 %v830, %v940
      %v957 = vsub.f32 %v835, %v941
      %v958 = vsub.f32 %v840, %v942
      %v959 = vsub.f32 %v845, %v943
      %v960 = vsub.f32 %v850, %v944
      %v961 = vsub.f32 %v855, %v945
      %v962 = vsub.f32 %v860, %v946
      %v963 = vsub.f32 %v865, %v947
      %v964 = vsub.f32 %v870, %v948
      %v965 = vsub.f32 %v875, %v949
      %v966 = vsub.f32 %v880, %v950
      %v967 = vmul.f32 %v951, %v951
      %v968 = vmul.f32 %v952, %v952
      %v969 = vmul.f32 %v953, %v953
      %v970 = vmul.f32 %v954, %v954
      %v971 = vmul.f32 %v955, %v955
      %v972 = vmul.f32 %v956, %v956
      %v973 = vmul.f32 %v957, %v957
      %v974 = vmul.f32 %v958, %v958
      %v975 = vmul.f32 %v959, %v959
      %v976 = vmul.f32 %v960, %v960
      %v977 = vmul.f32 %v961, %v961
      %v978 = vmul.f32 %v962, %v962
      %v979 = vmul.f32 %v963, %v963
      %v980 = vmul.f32 %v964, %v964
      %v981 = vmul.f32 %v965, %v965
      %v982 = vmul.f32 %v966, %v966
      %v983 = vsel %vm885, %v967, 0.0
      %984 = vadd.xlane.f32.xlu0 %v983
      %v985 = vpop.xlane.xlu0 %984
      %v986 = vsel %vm885, %v968, 0.0
      %987 = vadd.xlane.f32.xlu0 %v986
      %v988 = vpop.xlane.xlu0 %987
      %v989 = vsel %vm885, %v969, 0.0
      %990 = vadd.xlane.f32.xlu0 %v989
      %v991 = vpop.xlane.xlu0 %990
      %v992 = vsel %vm885, %v970, 0.0
      %993 = vadd.xlane.f32.xlu0 %v992
      %v994 = vpop.xlane.xlu0 %993
      %v995 = vsel %vm885, %v971, 0.0
      %996 = vadd.xlane.f32.xlu0 %v995
      %v997 = vpop.xlane.xlu0 %996
      %v998 = vsel %vm885, %v972, 0.0
      %999 = vadd.xlane.f32.xlu0 %v998
      %v1000 = vpop.xlane.xlu0 %999
      %v1001 = vsel %vm885, %v973, 0.0
      %1002 = vadd.xlane.f32.xlu0 %v1001
      %v1003 = vpop.xlane.xlu0 %1002
      %v1004 = vsel %vm885, %v974, 0.0
      %1005 = vadd.xlane.f32.xlu0 %v1004
      %v1006 = vpop.xlane.xlu0 %1005
      %v1007 = vsel %vm885, %v975, 0.0
      %1008 = vadd.xlane.f32.xlu0 %v1007
      %v1009 = vpop.xlane.xlu0 %1008
      %v1010 = vsel %vm885, %v976, 0.0
      %1011 = vadd.xlane.f32.xlu0 %v1010
      %v1012 = vpop.xlane.xlu0 %1011
      %v1013 = vsel %vm885, %v977, 0.0
      %1014 = vadd.xlane.f32.xlu0 %v1013
      %v1015 = vpop.xlane.xlu0 %1014
      %v1016 = vsel %vm885, %v978, 0.0
      %1017 = vadd.xlane.f32.xlu0 %v1016
      %v1018 = vpop.xlane.xlu0 %1017
      %v1019 = vsel %vm885, %v979, 0.0
      %1020 = vadd.xlane.f32.xlu0 %v1019
      %v1021 = vpop.xlane.xlu0 %1020
      %v1022 = vsel %vm885, %v980, 0.0
      %1023 = vadd.xlane.f32.xlu0 %v1022
      %v1024 = vpop.xlane.xlu0 %1023
      %v1025 = vsel %vm885, %v981, 0.0
      %1026 = vadd.xlane.f32.xlu0 %v1025
      %v1027 = vpop.xlane.xlu0 %1026
      %v1028 = vsel %vm885, %v982, 0.0
      %1029 = vadd.xlane.f32.xlu0 %v1028
      %v1030 = vpop.xlane.xlu0 %1029
      %v1031 = vmul.f32 %v985, %v934
      %v1032 = vmul.f32 %v988, %v934
      %v1033 = vmul.f32 %v991, %v934
      %v1034 = vmul.f32 %v994, %v934
      %v1035 = vmul.f32 %v997, %v934
      %v1036 = vmul.f32 %v1000, %v934
      %v1037 = vmul.f32 %v1003, %v934
      %v1038 = vmul.f32 %v1006, %v934
      %v1039 = vmul.f32 %v1009, %v934
      %v1040 = vmul.f32 %v1012, %v934
      %v1041 = vmul.f32 %v1015, %v934
      %v1042 = vmul.f32 %v1018, %v934
      %v1043 = vmul.f32 %v1021, %v934
      %v1044 = vmul.f32 %v1024, %v934
      %v1045 = vmul.f32 %v1027, %v934
      %v1046 = vmul.f32 %v1030, %v934
      %v1047 = vadd.f32 %v1031, 1e-12
      %v1048 = vadd.f32 %v1032, 1e-12
      %v1049 = vadd.f32 %v1033, 1e-12
      %v1050 = vadd.f32 %v1034, 1e-12
      %v1051 = vadd.f32 %v1035, 1e-12
      %v1052 = vadd.f32 %v1036, 1e-12
      %v1053 = vadd.f32 %v1037, 1e-12
      %v1054 = vadd.f32 %v1038, 1e-12
      %v1055 = vadd.f32 %v1039, 1e-12
      %v1056 = vadd.f32 %v1040, 1e-12
      %v1057 = vadd.f32 %v1041, 1e-12
      %v1058 = vadd.f32 %v1042, 1e-12
      %v1059 = vadd.f32 %v1043, 1e-12
      %v1060 = vadd.f32 %v1044, 1e-12
      %v1061 = vadd.f32 %v1045, 1e-12
      %v1062 = vadd.f32 %v1046, 1e-12
      %v1063 = vrsqrt.pop %v1047
      %v1064 = vrsqrt.pop %v1048
      %v1065 = vrsqrt.pop %v1049
      %v1066 = vrsqrt.pop %v1050
      %v1067 = vrsqrt.pop %v1051
      %v1068 = vrsqrt.pop %v1052
      %v1069 = vrsqrt.pop %v1053
      %v1070 = vrsqrt.pop %v1054
      %v1071 = vrsqrt.pop %v1055
      %v1072 = vrsqrt.pop %v1056
      %v1073 = vrsqrt.pop %v1057
      %v1074 = vrsqrt.pop %v1058
      %v1075 = vrsqrt.pop %v1059
      %v1076 = vrsqrt.pop %v1060
      %v1077 = vrsqrt.pop %v1061
      %v1078 = vrsqrt.pop %v1062
      %v1079 = vmul.f32 %v951, %v1063
      %v1080 = vmul.f32 %v952, %v1064
      %v1081 = vmul.f32 %v953, %v1065
      %v1082 = vmul.f32 %v954, %v1066
      %v1083 = vmul.f32 %v955, %v1067
      %v1084 = vmul.f32 %v956, %v1068
      %v1085 = vmul.f32 %v957, %v1069
      %v1086 = vmul.f32 %v958, %v1070
      %v1087 = vmul.f32 %v959, %v1071
      %v1088 = vmul.f32 %v960, %v1072
      %v1089 = vmul.f32 %v961, %v1073
      %v1090 = vmul.f32 %v962, %v1074
      %v1091 = vmul.f32 %v963, %v1075
      %v1092 = vmul.f32 %v964, %v1076
      %v1093 = vmul.f32 %v965, %v1077
      %v1094 = vmul.f32 %v966, %v1078
      %v1095 = vlaneseq
      %v1096 = vshrl.u32 %v1095, 7
      %v1097 = vsub.s32 0, %v1096
      %v1098 = vrot.slane %v883, %v1097
      %v1099 = vmul.f32 %v1079, %v1098
      %v1100 = vmul.f32 %v1080, %v1098
      %v1101 = vmul.f32 %v1081, %v1098
      %v1102 = vmul.f32 %v1082, %v1098
      %v1103 = vmul.f32 %v1083, %v1098
      %v1104 = vmul.f32 %v1084, %v1098
      %v1105 = vmul.f32 %v1085, %v1098
      %v1106 = vmul.f32 %v1086, %v1098
      %v1107 = vmul.f32 %v1087, %v1098
      %v1108 = vmul.f32 %v1088, %v1098
      %v1109 = vmul.f32 %v1089, %v1098
      %v1110 = vmul.f32 %v1090, %v1098
      %v1111 = vmul.f32 %v1091, %v1098
      %v1112 = vmul.f32 %v1092, %v1098
      %v1113 = vmul.f32 %v1093, %v1098
      %v1114 = vmul.f32 %v1094, %v1098
      %v1115 = vlaneseq
      %v1116 = vshrl.u32 %v1115, 7
      %v1117 = vsub.s32 0, %v1116
      %v1118 = vrot.slane %v884, %v1117
      %v1119 = vadd.f32 %v1099, %v1118
      %v1120 = vadd.f32 %v1100, %v1118
      %v1121 = vadd.f32 %v1101, %v1118
      %v1122 = vadd.f32 %v1102, %v1118
      %v1123 = vadd.f32 %v1103, %v1118
      %v1124 = vadd.f32 %v1104, %v1118
      %v1125 = vadd.f32 %v1105, %v1118
      %v1126 = vadd.f32 %v1106, %v1118
      %v1127 = vadd.f32 %v1107, %v1118
      %v1128 = vadd.f32 %v1108, %v1118
      %v1129 = vadd.f32 %v1109, %v1118
      %v1130 = vadd.f32 %v1110, %v1118
      %v1131 = vadd.f32 %v1111, %v1118
      %v1132 = vadd.f32 %v1112, %v1118
      %v1133 = vadd.f32 %v1113, %v1118
      %v1134 = vadd.f32 %v1114, %v1118
      %v1135 = vand.u32 %v375, 4294967288
      %v1136 = vand.u32 %v376, 4294967288
      %v1137 = vand.u32 %v377, 4294967288
      %v1138 = vand.u32 %v378, 4294967288
      %v1139 = vand.u32 %v379, 4294967288
      %v1140 = vand.u32 %v380, 4294967288
      %v1141 = vand.u32 %v381, 4294967288
      %v1142 = vand.u32 %v382, 4294967288
      %v1143 = vand.u32 %v383, 4294967288
      %v1144 = vand.u32 %v384, 4294967288
      %v1145 = vand.u32 %v385, 4294967288
      %v1146 = vand.u32 %v386, 4294967288
      %v1147 = vand.u32 %v387, 4294967288
      %v1148 = vand.u32 %v388, 4294967288
      %v1149 = vand.u32 %v389, 4294967288
      %v1150 = vand.u32 %v390, 4294967288
      %v1151 = vand.u32 %v373, 4294967288
      %vm1152 = vcmp.eq.s32.totalorder %v1135, %v1151
      %vm1153 = vcmp.eq.s32.totalorder %v1136, %v1151
      %vm1154 = vcmp.eq.s32.totalorder %v1137, %v1151
      %vm1155 = vcmp.eq.s32.totalorder %v1138, %v1151
      %vm1156 = vcmp.eq.s32.totalorder %v1139, %v1151
      %vm1157 = vcmp.eq.s32.totalorder %v1140, %v1151
      %vm1158 = vcmp.eq.s32.totalorder %v1141, %v1151
      %vm1159 = vcmp.eq.s32.totalorder %v1142, %v1151
      %vm1160 = vcmp.eq.s32.totalorder %v1143, %v1151
      %vm1161 = vcmp.eq.s32.totalorder %v1144, %v1151
      %vm1162 = vcmp.eq.s32.totalorder %v1145, %v1151
      %vm1163 = vcmp.eq.s32.totalorder %v1146, %v1151
      %vm1164 = vcmp.eq.s32.totalorder %v1147, %v1151
      %vm1165 = vcmp.eq.s32.totalorder %v1148, %v1151
      %vm1166 = vcmp.eq.s32.totalorder %v1149, %v1151
      %vm1167 = vcmp.eq.s32.totalorder %v1150, %v1151
      %v1168 = vsel %vm1152, 0.0, -1e+09
      %v1169 = vsel %vm1153, 0.0, -1e+09
      %v1170 = vsel %vm1154, 0.0, -1e+09
      %v1171 = vsel %vm1155, 0.0, -1e+09
      %v1172 = vsel %vm1156, 0.0, -1e+09
      %v1173 = vsel %vm1157, 0.0, -1e+09
      %v1174 = vsel %vm1158, 0.0, -1e+09
      %v1175 = vsel %vm1159, 0.0, -1e+09
      %v1176 = vsel %vm1160, 0.0, -1e+09
      %v1177 = vsel %vm1161, 0.0, -1e+09
      %v1178 = vsel %vm1162, 0.0, -1e+09
      %v1179 = vsel %vm1163, 0.0, -1e+09
      %v1180 = vsel %vm1164, 0.0, -1e+09
      %v1181 = vsel %vm1165, 0.0, -1e+09
      %v1182 = vsel %vm1166, 0.0, -1e+09
      %v1183 = vsel %vm1167, 0.0, -1e+09
      %v1184 = vld [vmem:[%s365] sm:$0x1]
      %v1186 = vlaneseq
      %v1187 = vshrl.u32 %v1186, 7
      %v1188 = vsub.s32 0, %v1187
      %v1189 = vrot.slane %v1184, %v1188
      %v1191 = vadd.f32 %v1168, %v1189
      %v1192 = vadd.f32 %v1169, %v1189
      %v1193 = vadd.f32 %v1170, %v1189
      %v1194 = vadd.f32 %v1171, %v1189
      %v1195 = vadd.f32 %v1172, %v1189
      %v1196 = vadd.f32 %v1173, %v1189
      %v1197 = vadd.f32 %v1174, %v1189
      %v1198 = vadd.f32 %v1175, %v1189
      %v1199 = vadd.f32 %v1176, %v1189
      %v1200 = vadd.f32 %v1177, %v1189
      %v1201 = vadd.f32 %v1178, %v1189
      %v1202 = vadd.f32 %v1179, %v1189
      %v1203 = vadd.f32 %v1180, %v1189
      %v1204 = vadd.f32 %v1181, %v1189
      %v1205 = vadd.f32 %v1182, %v1189
      %v1206 = vadd.f32 %v1183, %v1189
      %v1207 = vld [vmem:[%s5] sm:$0xff]
      %v1208 = vld [vmem:[%s5 + $0x8] sm:$0xff]
      %v1209 = vld [vmem:[%s5 + $0x10] sm:$0xff]
      %v1210 = vld [vmem:[%s5 + $0x18] sm:$0xff]
      %v1211 = vld [vmem:[%s5 + $0x20] sm:$0xff]
      %v1212 = vld [vmem:[%s5 + $0x28] sm:$0xff]
      %v1213 = vld [vmem:[%s5 + $0x30] sm:$0xff]
      %v1214 = vld [vmem:[%s5 + $0x38] sm:$0xff]
      %v1215 = vld [vmem:[%s5 + $0x40] sm:$0xff]
      %v1216 = vld [vmem:[%s5 + $0x48] sm:$0xff]
      %v1217 = vld [vmem:[%s5 + $0x50] sm:$0xff]
      %v1218 = vld [vmem:[%s5 + $0x58] sm:$0xff]
      %v1219 = vld [vmem:[%s5 + $0x60] sm:$0xff]
      %v1220 = vlaneseq
      %v1221 = vshrl.u32 %v1220, 7
      %v1222 = vsub.s32 0, %v1221
      %v1223 = vrot.slane %v1219, %v1222
      %v1225 = vsel %vm885, %v1119, 0
      %v1228 = vsel %vm885, %v1120, 0
      %v1231 = vsel %vm885, %v1121, 0
      %v1234 = vsel %vm885, %v1122, 0
      %v1237 = vsel %vm885, %v1123, 0
      %v1240 = vsel %vm885, %v1124, 0
      %v1243 = vsel %vm885, %v1125, 0
      %v1246 = vsel %vm885, %v1126, 0
      %v1249 = vsel %vm885, %v1127, 0
      %v1252 = vsel %vm885, %v1128, 0
      %v1255 = vsel %vm885, %v1129, 0
      %v1258 = vsel %vm885, %v1130, 0
      %v1261 = vsel %vm885, %v1131, 0
      %v1264 = vsel %vm885, %v1132, 0
      %v1267 = vsel %vm885, %v1133, 0
      %v1270 = vsel %vm885, %v1134, 0
      %1272 = vmatprep.subr.mxu0 0.0
      %1273 = vmatpush1.msra.mxu0 %v1207
      %1274 = vmatprep.subr.mxu0 0.0
      %1275 = vmatpush1.msra.mxu0 %v1208
      %1276 = vmatprep.subr.mxu0 0.0
      %1277 = vmatpush1.msra.mxu0 %v1209
      %1278 = vmatprep.subr.mxu0 0.0
      %1279 = vmatpush1.msra.mxu0 %v1210
      %1280 = vmatprep.subr.mxu0 0.0
      %1281 = vmatpush1.msra.mxu0 0.0
      %1282 = vmatprep.subr.mxu0 0.0
      %1283 = vmatpush1.msra.mxu0 0.0
      %1284 = vmatprep.subr.mxu0 0.0
      %1285 = vmatpush1.msra.mxu0 0.0
      %1286 = vmatprep.subr.mxu0 0.0
      %1287 = vmatpush1.msra.mxu0 0.0
      %1288 = vmatprep.subr.mxu0 0.0
      %1289 = vmatpush1.msra.mxu0 0.0
      %1290 = vmatprep.subr.mxu0 0.0
      %1291 = vmatpush1.msra.mxu0 0.0
      %1292 = vmatprep.subr.mxu0 0.0
      %1293 = vmatpush1.msra.mxu0 0.0
      %1294 = vmatprep.subr.mxu0 0.0
      %1295 = vmatpush1.msra.mxu0 0.0
      %1296 = vmatprep.subr.mxu0 0.0
      %1297 = vmatpush1.msra.mxu0 0.0
      %1298 = vmatprep.subr.mxu0 0.0
      %1299 = vmatpush1.msra.mxu0 0.0
      %1300 = vmatprep.subr.mxu0 0.0
      %1301 = vmatpush1.msra.mxu0 0.0
      %1302 = vmatprep.subr.mxu0 0.0
      %1303 = vmatpush1.msra.mxu0 0.0
      %1304 = vmatprep.subr.mxu0 0.0
      %1305 = vmatpush1.msra.mxu0 0.0
      %1306 = vmatprep.subr.mxu0 0.0
      %1307 = vmatpush1.msra.mxu0 0.0
      %1308 = vmatprep.subr.mxu0 0.0
      %1309 = vmatpush1.msra.mxu0 0.0
      %1310 = vmatprep.subr.mxu0 0.0
      %1311 = vmatpush1.msra.mxu0 0.0
      %1312 = vmatprep.subr.mxu0 0.0
      %1313 = vmatpush1.msra.mxu0 0.0
      %1314 = vmatprep.subr.mxu0 0.0
      %1315 = vmatpush1.msra.mxu0 0.0
      %1316 = vmatprep.subr.mxu0 0.0
      %1317 = vmatpush1.msra.mxu0 0.0
      %1318 = vmatprep.subr.mxu0 0.0
      %1319 = vmatpush1.msra.mxu0 0.0
      %1320 = vmatprep.subr.mxu0 0.0
      %1321 = vmatpush1.msra.mxu0 0.0
      %1322 = vmatprep.subr.mxu0 0.0
      %1323 = vmatpush1.msra.mxu0 0.0
      %1324 = vmatprep.subr.mxu0 0.0
      %1325 = vmatpush1.msra.mxu0 0.0
      %1326 = vmatprep.subr.mxu0 0.0
      %1327 = vmatpush1.msra.mxu0 0.0
      %1328 = vmatprep.subr.mxu0 0.0
      %1329 = vmatpush1.msra.mxu0 0.0
      %1330 = vmatprep.subr.mxu0 0.0
      %1331 = vmatpush1.msra.mxu0 0.0
      %1332 = vmatprep.subr.mxu0 0.0
      %1333 = vmatpush1.msra.mxu0 0.0
      %1334 = vmatprep.subr.mxu0 0.0
      %1335 = vmatpush1.msra.mxu0 0.0
      %1336 = vmatprep.mubr.f32.mxu0 0.0
      %1337 = vmatmul.mubr.f32.gmra.mrb[0].mxu0 %v1225
      %v1338 = vpop.f32.mrb[0].mxu0
      %v1339 = vadd.f32 %v1223, %v1338
      %v1340 = vpop.f32.mrb[0].mxu0
      %1341 = vmatprep.mubr.f32.mxu0 0.0
      %1342 = vmatmul.mubr.f32.gmra.mrb[0].mxu0 %v1228
      %v1343 = vpop.f32.mrb[0].mxu0
      %v1344 = vadd.f32 %v1223, %v1343
      %v1345 = vpop.f32.mrb[0].mxu0
      %1346 = vmatprep.mubr.f32.mxu0 0.0
      %1347 = vmatmul.mubr.f32.gmra.mrb[0].mxu0 %v1231
      %v1348 = vpop.f32.mrb[0].mxu0
      %v1349 = vadd.f32 %v1223, %v1348
      %v1350 = vpop.f32.mrb[0].mxu0
      %1351 = vmatprep.mubr.f32.mxu0 0.0
      %1352 = vmatmul.mubr.f32.gmra.mrb[0].mxu0 %v1234
      %v1353 = vpop.f32.mrb[0].mxu0
      %v1354 = vadd.f32 %v1223, %v1353
      %v1355 = vpop.f32.mrb[0].mxu0
      %1356 = vmatprep.mubr.f32.mxu0 0.0
      %1357 = vmatmul.mubr.f32.gmra.mrb[0].mxu0 %v1237
      %v1358 = vpop.f32.mrb[0].mxu0
      %v1359 = vadd.f32 %v1223, %v1358
      %v1360 = vpop.f32.mrb[0].mxu0
      %1361 = vmatprep.mubr.f32.mxu0 0.0
      %1362 = vmatmul.mubr.f32.gmra.mrb[0].mxu0 %v1240
      %v1363 = vpop.f32.mrb[0].mxu0
      %v1364 = vadd.f32 %v1223, %v1363
      %v1365 = vpop.f32.mrb[0].mxu0
      %1366 = vmatprep.mubr.f32.mxu0 0.0
      %1367 = vmatmul.mubr.f32.gmra.mrb[0].mxu0 %v1243
      %v1368 = vpop.f32.mrb[0].mxu0
      %v1369 = vadd.f32 %v1223, %v1368
      %v1370 = vpop.f32.mrb[0].mxu0
      %1371 = vmatprep.mubr.f32.mxu0 0.0
      %1372 = vmatmul.mubr.f32.gmra.mrb[0].mxu0 %v1246
      %v1373 = vpop.f32.mrb[0].mxu0
      %v1374 = vadd.f32 %v1223, %v1373
      %v1375 = vpop.f32.mrb[0].mxu0
      %1376 = vmatprep.mubr.f32.mxu0 0.0
      %1377 = vmatmul.mubr.f32.gmra.mrb[0].mxu0 %v1249
      %v1378 = vpop.f32.mrb[0].mxu0
      %v1379 = vadd.f32 %v1223, %v1378
      %v1380 = vpop.f32.mrb[0].mxu0
      %1381 = vmatprep.mubr.f32.mxu0 0.0
      %1382 = vmatmul.mubr.f32.gmra.mrb[0].mxu0 %v1252
      %v1383 = vpop.f32.mrb[0].mxu0
      %v1384 = vadd.f32 %v1223, %v1383
      %v1385 = vpop.f32.mrb[0].mxu0
      %1386 = vmatprep.mubr.f32.mxu0 0.0
      %1387 = vmatmul.mubr.f32.gmra.mrb[0].mxu0 %v1255
      %v1388 = vpop.f32.mrb[0].mxu0
      %v1389 = vadd.f32 %v1223, %v1388
      %v1390 = vpop.f32.mrb[0].mxu0
      %1391 = vmatprep.mubr.f32.mxu0 0.0
      %1392 = vmatmul.mubr.f32.gmra.mrb[0].mxu0 %v1258
      %v1393 = vpop.f32.mrb[0].mxu0
      %v1394 = vadd.f32 %v1223, %v1393
      %v1395 = vpop.f32.mrb[0].mxu0
      %1396 = vmatprep.mubr.f32.mxu0 0.0
      %1397 = vmatmul.mubr.f32.gmra.mrb[0].mxu0 %v1261
      %v1398 = vpop.f32.mrb[0].mxu0
      %v1399 = vadd.f32 %v1223, %v1398
      %v1400 = vpop.f32.mrb[0].mxu0
      %1401 = vmatprep.mubr.f32.mxu0 0.0
      %1402 = vmatmul.mubr.f32.gmra.mrb[0].mxu0 %v1264
      %v1403 = vpop.f32.mrb[0].mxu0
      %v1404 = vadd.f32 %v1223, %v1403
      %v1405 = vpop.f32.mrb[0].mxu0
      %1406 = vmatprep.mubr.f32.mxu0 0.0
      %1407 = vmatmul.mubr.f32.gmra.mrb[0].mxu0 %v1267
      %v1408 = vpop.f32.mrb[0].mxu0
      %v1409 = vadd.f32 %v1223, %v1408
      %v1410 = vpop.f32.mrb[0].mxu0
      %1411 = vmatprep.mubr.f32.mxu0 0.0
      %1412 = vmatmul.mubr.f32.gmra.mrb[0].mxu0 %v1270
      %v1413 = vpop.f32.mrb[0].mxu0
      %v1414 = vadd.f32 %v1223, %v1413
      %v1415 = vpop.f32.mrb[0].mxu0
      %1416 = vdwg.mxu0
      %v1417 = vlaneseq
      %v1418 = vshrl.u32 %v1417, 7
      %v1419 = vsub.s32 1, %v1418
      %v1420 = vrot.slane %v1219, %v1419
      %1421 = vmatprep.subr.mxu0 0.0
      %1422 = vmatpush1.msra.mxu0 %v1211
      %1423 = vmatprep.subr.mxu0 0.0
      %1424 = vmatpush1.msra.mxu0 %v1212
      %1425 = vmatprep.subr.mxu0 0.0
      %1426 = vmatpush1.msra.mxu0 %v1213
      %1427 = vmatprep.subr.mxu0 0.0
      %1428 = vmatpush1.msra.mxu0 %v1214
      %1429 = vmatprep.subr.mxu0 0.0
      %1430 = vmatpush1.msra.mxu0 0.0
      %1431 = vmatprep.subr.mxu0 0.0
      %1432 = vmatpush1.msra.mxu0 0.0
      %1433 = vmatprep.subr.mxu0 0.0
      %1434 = vmatpush1.msra.mxu0 0.0
      %1435 = vmatprep.subr.mxu0 0.0
      %1436 = vmatpush1.msra.mxu0 0.0
      %1437 = vmatprep.subr.mxu0 0.0
      %1438 = vmatpush1.msra.mxu0 0.0
      %1439 = vmatprep.subr.mxu0 0.0
      %1440 = vmatpush1.msra.mxu0 0.0
      %1441 = vmatprep.subr.mxu0 0.0
      %1442 = vmatpush1.msra.mxu0 0.0
      %1443 = vmatprep.subr.mxu0 0.0
      %1444 = vmatpush1.msra.mxu0 0.0
      %1445 = vmatprep.subr.mxu0 0.0
      %1446 = vmatpush1.msra.mxu0 0.0
      %1447 = vmatprep.subr.mxu0 0.0
      %1448 = vmatpush1.msra.mxu0 0.0
      %1449 = vmatprep.subr.mxu0 0.0
      %1450 = vmatpush1.msra.mxu0 0.0
      %1451 = vmatprep.subr.mxu0 0.0
      %1452 = vmatpush1.msra.mxu0 0.0
      %1453 = vmatprep.subr.mxu0 0.0
      %1454 = vmatpush1.msra.mxu0 0.0
      %1455 = vmatprep.subr.mxu0 0.0
      %1456 = vmatpush1.msra.mxu0 0.0
      %1457 = vmatprep.subr.mxu0 0.0
      %1458 = vmatpush1.msra.mxu0 0.0
      %1459 = vmatprep.subr.mxu0 0.0
      %1460 = vmatpush1.msra.mxu0 0.0
      %1461 = vmatprep.subr.mxu0 0.0
      %1462 = vmatpush1.msra.mxu0 0.0
      %1463 = vmatprep.subr.mxu0 0.0
      %1464 = vmatpush1.msra.mxu0 0.0
      %1465 = vmatprep.subr.mxu0 0.0
      %1466 = vmatpush1.msra.mxu0 0.0
      %1467 = vmatprep.subr.mxu0 0.0
      %1468 = vmatpush1.msra.mxu0 0.0
      %1469 = vmatprep.subr.mxu0 0.0
      %1470 = vmatpush1.msra.mxu0 0.0
      %1471 = vmatprep.subr.mxu0 0.0
      %1472 = vmatpush1.msra.mxu0 0.0
      %1473 = vmatprep.subr.mxu0 0.0
      %1474 = vmatpush1.msra.mxu0 0.0
      %1475 = vmatprep.subr.mxu0 0.0
      %1476 = vmatpush1.msra.mxu0 0.0
      %1477 = vmatprep.subr.mxu0 0.0
      %1478 = vmatpush1.msra.mxu0 0.0
      %1479 = vmatprep.subr.mxu0 0.0
      %1480 = vmatpush1.msra.mxu0 0.0
      %1481 = vmatprep.subr.mxu0 0.0
      %1482 = vmatpush1.msra.mxu0 0.0
      %1483 = vmatprep.subr.mxu0 0.0
      %1484 = vmatpush1.msra.mxu0 0.0
      %1485 = vmatprep.mubr.f32.mxu0 0.0
      %1486 = vmatmul.mubr.f32.gmra.mrb[0].mxu0 %v1225
      %v1487 = vpop.f32.mrb[0].mxu0
      %v1488 = vadd.f32 %v1420, %v1487
      %v1489 = vpop.f32.mrb[0].mxu0
      %1490 = vmatprep.mubr.f32.mxu0 0.0
      %1491 = vmatmul.mubr.f32.gmra.mrb[0].mxu0 %v1228
      %v1492 = vpop.f32.mrb[0].mxu0
      %v1493 = vadd.f32 %v1420, %v1492
      %v1494 = vpop.f32.mrb[0].mxu0
      %1495 = vmatprep.mubr.f32.mxu0 0.0
      %1496 = vmatmul.mubr.f32.gmra.mrb[0].mxu0 %v1231
      %v1497 = vpop.f32.mrb[0].mxu0
      %v1498 = vadd.f32 %v1420, %v1497
      %v1499 = vpop.f32.mrb[0].mxu0
      %1500 = vmatprep.mubr.f32.mxu0 0.0
      %1501 = vmatmul.mubr.f32.gmra.mrb[0].mxu0 %v1234
      %v1502 = vpop.f32.mrb[0].mxu0
      %v1503 = vadd.f32 %v1420, %v1502
      %v1504 = vpop.f32.mrb[0].mxu0
      %1505 = vmatprep.mubr.f32.mxu0 0.0
      %1506 = vmatmul.mubr.f32.gmra.mrb[0].mxu0 %v1237
      %v1507 = vpop.f32.mrb[0].mxu0
      %v1508 = vadd.f32 %v1420, %v1507
      %v1509 = vpop.f32.mrb[0].mxu0
      %1510 = vmatprep.mubr.f32.mxu0 0.0
      %1511 = vmatmul.mubr.f32.gmra.mrb[0].mxu0 %v1240
      %v1512 = vpop.f32.mrb[0].mxu0
      %v1513 = vadd.f32 %v1420, %v1512
      %v1514 = vpop.f32.mrb[0].mxu0
      %1515 = vmatprep.mubr.f32.mxu0 0.0
      %1516 = vmatmul.mubr.f32.gmra.mrb[0].mxu0 %v1243
      %v1517 = vpop.f32.mrb[0].mxu0
      %v1518 = vadd.f32 %v1420, %v1517
      %v1519 = vpop.f32.mrb[0].mxu0
      %1520 = vmatprep.mubr.f32.mxu0 0.0
      %1521 = vmatmul.mubr.f32.gmra.mrb[0].mxu0 %v1246
      %v1522 = vpop.f32.mrb[0].mxu0
      %v1523 = vadd.f32 %v1420, %v1522
      %v1524 = vpop.f32.mrb[0].mxu0
      %1525 = vmatprep.mubr.f32.mxu0 0.0
      %1526 = vmatmul.mubr.f32.gmra.mrb[0].mxu0 %v1249
      %v1527 = vpop.f32.mrb[0].mxu0
      %v1528 = vadd.f32 %v1420, %v1527
      %v1529 = vpop.f32.mrb[0].mxu0
      %1530 = vmatprep.mubr.f32.mxu0 0.0
      %1531 = vmatmul.mubr.f32.gmra.mrb[0].mxu0 %v1252
      %v1532 = vpop.f32.mrb[0].mxu0
      %v1533 = vadd.f32 %v1420, %v1532
      %v1534 = vpop.f32.mrb[0].mxu0
      %1535 = vmatprep.mubr.f32.mxu0 0.0
      %1536 = vmatmul.mubr.f32.gmra.mrb[0].mxu0 %v1255
      %v1537 = vpop.f32.mrb[0].mxu0
      %v1538 = vadd.f32 %v1420, %v1537
      %v1539 = vpop.f32.mrb[0].mxu0
      %1540 = vmatprep.mubr.f32.mxu0 0.0
      %1541 = vmatmul.mubr.f32.gmra.mrb[0].mxu0 %v1258
      %v1542 = vpop.f32.mrb[0].mxu0
      %v1543 = vadd.f32 %v1420, %v1542
      %v1544 = vpop.f32.mrb[0].mxu0
      %1545 = vmatprep.mubr.f32.mxu0 0.0
      %1546 = vmatmul.mubr.f32.gmra.mrb[0].mxu0 %v1261
      %v1547 = vpop.f32.mrb[0].mxu0
      %v1548 = vadd.f32 %v1420, %v1547
      %v1549 = vpop.f32.mrb[0].mxu0
      %1550 = vmatprep.mubr.f32.mxu0 0.0
      %1551 = vmatmul.mubr.f32.gmra.mrb[0].mxu0 %v1264
      %v1552 = vpop.f32.mrb[0].mxu0
      %v1553 = vadd.f32 %v1420, %v1552
      %v1554 = vpop.f32.mrb[0].mxu0
      %1555 = vmatprep.mubr.f32.mxu0 0.0
      %1556 = vmatmul.mubr.f32.gmra.mrb[0].mxu0 %v1267
      %v1557 = vpop.f32.mrb[0].mxu0
      %v1558 = vadd.f32 %v1420, %v1557
      %v1559 = vpop.f32.mrb[0].mxu0
      %1560 = vmatprep.mubr.f32.mxu0 0.0
      %1561 = vmatmul.mubr.f32.gmra.mrb[0].mxu0 %v1270
      %v1562 = vpop.f32.mrb[0].mxu0
      %v1563 = vadd.f32 %v1420, %v1562
      %v1564 = vpop.f32.mrb[0].mxu0
      %1565 = vdwg.mxu0
      %v1566 = vlaneseq
      %v1567 = vshrl.u32 %v1566, 7
      %v1568 = vsub.s32 2, %v1567
      %v1569 = vrot.slane %v1219, %v1568
      %1570 = vmatprep.subr.mxu0 0.0
      %1571 = vmatpush1.msra.mxu0 %v1215
      %1572 = vmatprep.subr.mxu0 0.0
      %1573 = vmatpush1.msra.mxu0 %v1216
      %1574 = vmatprep.subr.mxu0 0.0
      %1575 = vmatpush1.msra.mxu0 %v1217
      %1576 = vmatprep.subr.mxu0 0.0
      %1577 = vmatpush1.msra.mxu0 %v1218
      %1578 = vmatprep.subr.mxu0 0.0
      %1579 = vmatpush1.msra.mxu0 0.0
      %1580 = vmatprep.subr.mxu0 0.0
      %1581 = vmatpush1.msra.mxu0 0.0
      %1582 = vmatprep.subr.mxu0 0.0
      %1583 = vmatpush1.msra.mxu0 0.0
      %1584 = vmatprep.subr.mxu0 0.0
      %1585 = vmatpush1.msra.mxu0 0.0
      %1586 = vmatprep.subr.mxu0 0.0
      %1587 = vmatpush1.msra.mxu0 0.0
      %1588 = vmatprep.subr.mxu0 0.0
      %1589 = vmatpush1.msra.mxu0 0.0
      %1590 = vmatprep.subr.mxu0 0.0
      %1591 = vmatpush1.msra.mxu0 0.0
      %1592 = vmatprep.subr.mxu0 0.0
      %1593 = vmatpush1.msra.mxu0 0.0
      %1594 = vmatprep.subr.mxu0 0.0
      %1595 = vmatpush1.msra.mxu0 0.0
      %1596 = vmatprep.subr.mxu0 0.0
      %1597 = vmatpush1.msra.mxu0 0.0
      %1598 = vmatprep.subr.mxu0 0.0
      %1599 = vmatpush1.msra.mxu0 0.0
      %1600 = vmatprep.subr.mxu0 0.0
      %1601 = vmatpush1.msra.mxu0 0.0
      %1602 = vmatprep.subr.mxu0 0.0
      %1603 = vmatpush1.msra.mxu0 0.0
      %1604 = vmatprep.subr.mxu0 0.0
      %1605 = vmatpush1.msra.mxu0 0.0
      %1606 = vmatprep.subr.mxu0 0.0
      %1607 = vmatpush1.msra.mxu0 0.0
      %1608 = vmatprep.subr.mxu0 0.0
      %1609 = vmatpush1.msra.mxu0 0.0
      %1610 = vmatprep.subr.mxu0 0.0
      %1611 = vmatpush1.msra.mxu0 0.0
      %1612 = vmatprep.subr.mxu0 0.0
      %1613 = vmatpush1.msra.mxu0 0.0
      %1614 = vmatprep.subr.mxu0 0.0
      %1615 = vmatpush1.msra.mxu0 0.0
      %1616 = vmatprep.subr.mxu0 0.0
      %1617 = vmatpush1.msra.mxu0 0.0
      %1618 = vmatprep.subr.mxu0 0.0
      %1619 = vmatpush1.msra.mxu0 0.0
      %1620 = vmatprep.subr.mxu0 0.0
      %1621 = vmatpush1.msra.mxu0 0.0
      %1622 = vmatprep.subr.mxu0 0.0
      %1623 = vmatpush1.msra.mxu0 0.0
      %1624 = vmatprep.subr.mxu0 0.0
      %1625 = vmatpush1.msra.mxu0 0.0
      %1626 = vmatprep.subr.mxu0 0.0
      %1627 = vmatpush1.msra.mxu0 0.0
      %1628 = vmatprep.subr.mxu0 0.0
      %1629 = vmatpush1.msra.mxu0 0.0
      %1630 = vmatprep.subr.mxu0 0.0
      %1631 = vmatpush1.msra.mxu0 0.0
      %1632 = vmatprep.subr.mxu0 0.0
      %1633 = vmatpush1.msra.mxu0 0.0
      %1634 = vmatprep.mubr.f32.mxu0 0.0
      %1635 = vmatmul.mubr.f32.gmra.mrb[0].mxu0 %v1225
      %v1636 = vpop.f32.mrb[0].mxu0
      %v1637 = vadd.f32 %v1569, %v1636
      %v1638 = vpop.f32.mrb[0].mxu0
      %1639 = vmatprep.mubr.f32.mxu0 0.0
      %1640 = vmatmul.mubr.f32.gmra.mrb[0].mxu0 %v1228
      %v1641 = vpop.f32.mrb[0].mxu0
      %v1642 = vadd.f32 %v1569, %v1641
      %v1643 = vpop.f32.mrb[0].mxu0
      %1644 = vmatprep.mubr.f32.mxu0 0.0
      %1645 = vmatmul.mubr.f32.gmra.mrb[0].mxu0 %v1231
      %v1646 = vpop.f32.mrb[0].mxu0
      %v1647 = vadd.f32 %v1569, %v1646
      %v1648 = vpop.f32.mrb[0].mxu0
      %1649 = vmatprep.mubr.f32.mxu0 0.0
      %1650 = vmatmul.mubr.f32.gmra.mrb[0].mxu0 %v1234
      %v1651 = vpop.f32.mrb[0].mxu0
      %v1652 = vadd.f32 %v1569, %v1651
      %v1653 = vpop.f32.mrb[0].mxu0
      %1654 = vmatprep.mubr.f32.mxu0 0.0
      %1655 = vmatmul.mubr.f32.gmra.mrb[0].mxu0 %v1237
      %v1656 = vpop.f32.mrb[0].mxu0
      %v1657 = vadd.f32 %v1569, %v1656
      %v1658 = vpop.f32.mrb[0].mxu0
      %1659 = vmatprep.mubr.f32.mxu0 0.0
      %1660 = vmatmul.mubr.f32.gmra.mrb[0].mxu0 %v1240
      %v1661 = vpop.f32.mrb[0].mxu0
      %v1662 = vadd.f32 %v1569, %v1661
      %v1663 = vpop.f32.mrb[0].mxu0
      %1664 = vmatprep.mubr.f32.mxu0 0.0
      %1665 = vmatmul.mubr.f32.gmra.mrb[0].mxu0 %v1243
      %v1666 = vpop.f32.mrb[0].mxu0
      %v1667 = vadd.f32 %v1569, %v1666
      %v1668 = vpop.f32.mrb[0].mxu0
      %1669 = vmatprep.mubr.f32.mxu0 0.0
      %1670 = vmatmul.mubr.f32.gmra.mrb[0].mxu0 %v1246
      %v1671 = vpop.f32.mrb[0].mxu0
      %v1672 = vadd.f32 %v1569, %v1671
      %v1673 = vpop.f32.mrb[0].mxu0
      %1674 = vmatprep.mubr.f32.mxu0 0.0
      %1675 = vmatmul.mubr.f32.gmra.mrb[0].mxu0 %v1249
      %v1676 = vpop.f32.mrb[0].mxu0
      %v1677 = vadd.f32 %v1569, %v1676
      %v1678 = vpop.f32.mrb[0].mxu0
      %1679 = vmatprep.mubr.f32.mxu0 0.0
      %1680 = vmatmul.mubr.f32.gmra.mrb[0].mxu0 %v1252
      %v1681 = vpop.f32.mrb[0].mxu0
      %v1682 = vadd.f32 %v1569, %v1681
      %v1683 = vpop.f32.mrb[0].mxu0
      %1684 = vmatprep.mubr.f32.mxu0 0.0
      %1685 = vmatmul.mubr.f32.gmra.mrb[0].mxu0 %v1255
      %v1686 = vpop.f32.mrb[0].mxu0
      %v1687 = vadd.f32 %v1569, %v1686
      %v1688 = vpop.f32.mrb[0].mxu0
      %1689 = vmatprep.mubr.f32.mxu0 0.0
      %1690 = vmatmul.mubr.f32.gmra.mrb[0].mxu0 %v1258
      %v1691 = vpop.f32.mrb[0].mxu0
      %v1692 = vadd.f32 %v1569, %v1691
      %v1693 = vpop.f32.mrb[0].mxu0
      %1694 = vmatprep.mubr.f32.mxu0 0.0
      %1695 = vmatmul.mubr.f32.gmra.mrb[0].mxu0 %v1261
      %v1696 = vpop.f32.mrb[0].mxu0
      %v1697 = vadd.f32 %v1569, %v1696
      %v1698 = vpop.f32.mrb[0].mxu0
      %1699 = vmatprep.mubr.f32.mxu0 0.0
      %1700 = vmatmul.mubr.f32.gmra.mrb[0].mxu0 %v1264
      %v1701 = vpop.f32.mrb[0].mxu0
      %v1702 = vadd.f32 %v1569, %v1701
      %v1703 = vpop.f32.mrb[0].mxu0
      %1704 = vmatprep.mubr.f32.mxu0 0.0
      %1705 = vmatmul.mubr.f32.gmra.mrb[0].mxu0 %v1267
      %v1706 = vpop.f32.mrb[0].mxu0
      %v1707 = vadd.f32 %v1569, %v1706
      %v1708 = vpop.f32.mrb[0].mxu0
      %1709 = vmatprep.mubr.f32.mxu0 0.0
      %1710 = vmatmul.mubr.f32.gmra.mrb[0].mxu0 %v1270
      %v1711 = vpop.f32.mrb[0].mxu0
      %v1712 = vadd.f32 %v1569, %v1711
      %v1713 = vpop.f32.mrb[0].mxu0
      %1714 = vdwg.mxu0
      %vm1715 = vcmask 130048
      %v1717 = vsel %vm1715, %v1339, 0
      %v1720 = vsel %vm1715, %v1344, 0
      %v1723 = vsel %vm1715, %v1349, 0
      %v1726 = vsel %vm1715, %v1354, 0
      %v1729 = vsel %vm1715, %v1359, 0
      %v1732 = vsel %vm1715, %v1364, 0
      %v1735 = vsel %vm1715, %v1369, 0
      %v1738 = vsel %vm1715, %v1374, 0
      %v1741 = vsel %vm1715, %v1379, 0
      %v1744 = vsel %vm1715, %v1384, 0
      %v1747 = vsel %vm1715, %v1389, 0
      %v1750 = vsel %vm1715, %v1394, 0
      %v1753 = vsel %vm1715, %v1399, 0
      %v1756 = vsel %vm1715, %v1404, 0
      %v1759 = vsel %vm1715, %v1409, 0
      %v1762 = vsel %vm1715, %v1414, 0
      %v1765 = vsel %vm1715, %v1488, 0
      %v1768 = vsel %vm1715, %v1493, 0
      %v1771 = vsel %vm1715, %v1498, 0
      %v1774 = vsel %vm1715, %v1503, 0
      %v1777 = vsel %vm1715, %v1508, 0
      %v1780 = vsel %vm1715, %v1513, 0
      %v1783 = vsel %vm1715, %v1518, 0
      %v1786 = vsel %vm1715, %v1523, 0
      %v1789 = vsel %vm1715, %v1528, 0
      %v1792 = vsel %vm1715, %v1533, 0
      %v1795 = vsel %vm1715, %v1538, 0
      %v1798 = vsel %vm1715, %v1543, 0
      %v1801 = vsel %vm1715, %v1548, 0
      %v1804 = vsel %vm1715, %v1553, 0
      %v1807 = vsel %vm1715, %v1558, 0
      %v1810 = vsel %vm1715, %v1563, 0
      %1812 = vmatprep.subr.mxu0 0.0
      %1813 = vmatpush1.xpose.msra.mxu0 %v1765
      %1814 = vmatprep.subr.mxu0 0.0
      %1815 = vmatpush1.xpose.msra.mxu0 %v1768
      %1816 = vmatprep.subr.mxu0 0.0
      %1817 = vmatpush1.xpose.msra.mxu0 %v1771
      %1818 = vmatprep.subr.mxu0 0.0
      %1819 = vmatpush1.xpose.msra.mxu0 %v1774
      %1820 = vmatprep.subr.mxu0 0.0
      %1821 = vmatpush1.xpose.msra.mxu0 %v1777
      %1822 = vmatprep.subr.mxu0 0.0
      %1823 = vmatpush1.xpose.msra.mxu0 %v1780
      %1824 = vmatprep.subr.mxu0 0.0
      %1825 = vmatpush1.xpose.msra.mxu0 %v1783
      %1826 = vmatprep.subr.mxu0 0.0
      %1827 = vmatpush1.xpose.msra.mxu0 %v1786
      %1828 = vmatprep.subr.mxu0 0.0
      %1829 = vmatpush1.xpose.msra.mxu0 %v1789
      %1830 = vmatprep.subr.mxu0 0.0
      %1831 = vmatpush1.xpose.msra.mxu0 %v1792
      %1832 = vmatprep.subr.mxu0 0.0
      %1833 = vmatpush1.xpose.msra.mxu0 %v1795
      %1834 = vmatprep.subr.mxu0 0.0
      %1835 = vmatpush1.xpose.msra.mxu0 %v1798
      %1836 = vmatprep.subr.mxu0 0.0
      %1837 = vmatpush1.xpose.msra.mxu0 %v1801
      %1838 = vmatprep.subr.mxu0 0.0
      %1839 = vmatpush1.xpose.msra.mxu0 %v1804
      %1840 = vmatprep.subr.mxu0 0.0
      %1841 = vmatpush1.xpose.msra.mxu0 %v1807
      %1842 = vmatprep.subr.mxu0 0.0
      %1843 = vmatpush1.xpose.msra.mxu0 %v1810
      %1844 = vmatprep.subr.mxu0 0.0
      %1845 = vmatpush1.xpose.msra.mxu0 0.0
      %1846 = vmatprep.subr.mxu0 0.0
      %1847 = vmatpush1.xpose.msra.mxu0 0.0
      %1848 = vmatprep.subr.mxu0 0.0
      %1849 = vmatpush1.xpose.msra.mxu0 0.0
      %1850 = vmatprep.subr.mxu0 0.0
      %1851 = vmatpush1.xpose.msra.mxu0 0.0
      %1852 = vmatprep.subr.mxu0 0.0
      %1853 = vmatpush1.xpose.msra.mxu0 0.0
      %1854 = vmatprep.subr.mxu0 0.0
      %1855 = vmatpush1.xpose.msra.mxu0 0.0
      %1856 = vmatprep.subr.mxu0 0.0
      %1857 = vmatpush1.xpose.msra.mxu0 0.0
      %1858 = vmatprep.subr.mxu0 0.0
      %1859 = vmatpush1.xpose.msra.mxu0 0.0
      %1860 = vmatprep.subr.mxu0 0.0
      %1861 = vmatpush1.xpose.msra.mxu0 0.0
      %1862 = vmatprep.subr.mxu0 0.0
      %1863 = vmatpush1.xpose.msra.mxu0 0.0
      %1864 = vmatprep.subr.mxu0 0.0
      %1865 = vmatpush1.xpose.msra.mxu0 0.0
      %1866 = vmatprep.subr.mxu0 0.0
      %1867 = vmatpush1.xpose.msra.mxu0 0.0
      %1868 = vmatprep.subr.mxu0 0.0
      %1869 = vmatpush1.xpose.msra.mxu0 0.0
      %1870 = vmatprep.subr.mxu0 0.0
      %1871 = vmatpush1.xpose.msra.mxu0 0.0
      %1872 = vmatprep.subr.mxu0 0.0
      %1873 = vmatpush1.xpose.msra.mxu0 0.0
      %1874 = vmatprep.subr.mxu0 0.0
      %1875 = vmatpush1.xpose.msra.mxu0 0.0
      %1876 = vmatprep.mubr.f32.mxu0 0.0
      %1877 = vmatmul.mubr.f32.gmra.mrb[0].mxu0 %v1717
      %v1878 = vpop.f32.mrb[0].mxu0
      %v1879 = vadd.f32 %v1191, %v1878
      %v1880 = vpop.f32.mrb[0].mxu0
      %1881 = vmatprep.mubr.f32.mxu0 0.0
      %1882 = vmatmul.mubr.f32.gmra.mrb[0].mxu0 %v1720
      %v1883 = vpop.f32.mrb[0].mxu0
      %v1884 = vadd.f32 %v1192, %v1883
      %v1885 = vpop.f32.mrb[0].mxu0
      %1886 = vmatprep.mubr.f32.mxu0 0.0
      %1887 = vmatmul.mubr.f32.gmra.mrb[0].mxu0 %v1723
      %v1888 = vpop.f32.mrb[0].mxu0
      %v1889 = vadd.f32 %v1193, %v1888
      %v1890 = vpop.f32.mrb[0].mxu0
      %1891 = vmatprep.mubr.f32.mxu0 0.0
      %1892 = vmatmul.mubr.f32.gmra.mrb[0].mxu0 %v1726
      %v1893 = vpop.f32.mrb[0].mxu0
      %v1894 = vadd.f32 %v1194, %v1893
      %v1895 = vpop.f32.mrb[0].mxu0
      %1896 = vmatprep.mubr.f32.mxu0 0.0
      %1897 = vmatmul.mubr.f32.gmra.mrb[0].mxu0 %v1729
      %v1898 = vpop.f32.mrb[0].mxu0
      %v1899 = vadd.f32 %v1195, %v1898
      %v1900 = vpop.f32.mrb[0].mxu0
      %1901 = vmatprep.mubr.f32.mxu0 0.0
      %1902 = vmatmul.mubr.f32.gmra.mrb[0].mxu0 %v1732
      %v1903 = vpop.f32.mrb[0].mxu0
      %v1904 = vadd.f32 %v1196, %v1903
      %v1905 = vpop.f32.mrb[0].mxu0
      %1906 = vmatprep.mubr.f32.mxu0 0.0
      %1907 = vmatmul.mubr.f32.gmra.mrb[0].mxu0 %v1735
      %v1908 = vpop.f32.mrb[0].mxu0
      %v1909 = vadd.f32 %v1197, %v1908
      %v1910 = vpop.f32.mrb[0].mxu0
      %1911 = vmatprep.mubr.f32.mxu0 0.0
      %1912 = vmatmul.mubr.f32.gmra.mrb[0].mxu0 %v1738
      %v1913 = vpop.f32.mrb[0].mxu0
      %v1914 = vadd.f32 %v1198, %v1913
      %v1915 = vpop.f32.mrb[0].mxu0
      %1916 = vmatprep.mubr.f32.mxu0 0.0
      %1917 = vmatmul.mubr.f32.gmra.mrb[0].mxu0 %v1741
      %v1918 = vpop.f32.mrb[0].mxu0
      %v1919 = vadd.f32 %v1199, %v1918
      %v1920 = vpop.f32.mrb[0].mxu0
      %1921 = vmatprep.mubr.f32.mxu0 0.0
      %1922 = vmatmul.mubr.f32.gmra.mrb[0].mxu0 %v1744
      %v1923 = vpop.f32.mrb[0].mxu0
      %v1924 = vadd.f32 %v1200, %v1923
      %v1925 = vpop.f32.mrb[0].mxu0
      %1926 = vmatprep.mubr.f32.mxu0 0.0
      %1927 = vmatmul.mubr.f32.gmra.mrb[0].mxu0 %v1747
      %v1928 = vpop.f32.mrb[0].mxu0
      %v1929 = vadd.f32 %v1201, %v1928
      %v1930 = vpop.f32.mrb[0].mxu0
      %1931 = vmatprep.mubr.f32.mxu0 0.0
      %1932 = vmatmul.mubr.f32.gmra.mrb[0].mxu0 %v1750
      %v1933 = vpop.f32.mrb[0].mxu0
      %v1934 = vadd.f32 %v1202, %v1933
      %v1935 = vpop.f32.mrb[0].mxu0
      %1936 = vmatprep.mubr.f32.mxu0 0.0
      %1937 = vmatmul.mubr.f32.gmra.mrb[0].mxu0 %v1753
      %v1938 = vpop.f32.mrb[0].mxu0
      %v1939 = vadd.f32 %v1203, %v1938
      %v1940 = vpop.f32.mrb[0].mxu0
      %1941 = vmatprep.mubr.f32.mxu0 0.0
      %1942 = vmatmul.mubr.f32.gmra.mrb[0].mxu0 %v1756
      %v1943 = vpop.f32.mrb[0].mxu0
      %v1944 = vadd.f32 %v1204, %v1943
      %v1945 = vpop.f32.mrb[0].mxu0
      %1946 = vmatprep.mubr.f32.mxu0 0.0
      %1947 = vmatmul.mubr.f32.gmra.mrb[0].mxu0 %v1759
      %v1948 = vpop.f32.mrb[0].mxu0
      %v1949 = vadd.f32 %v1205, %v1948
      %v1950 = vpop.f32.mrb[0].mxu0
      %1951 = vmatprep.mubr.f32.mxu0 0.0
      %1952 = vmatmul.mubr.f32.gmra.mrb[0].mxu0 %v1762
      %v1953 = vpop.f32.mrb[0].mxu0
      %v1954 = vadd.f32 %v1206, %v1953
      %v1955 = vpop.f32.mrb[0].mxu0
      %1956 = vdwg.mxu0
      %1957 = vmax.xlane.f32.xlu0 %v1879
      %v1958 = vpop.xlane.xlu0 %1957
      %1959 = vmax.xlane.f32.xlu0 %v1884
      %v1960 = vpop.xlane.xlu0 %1959
      %1961 = vmax.xlane.f32.xlu0 %v1889
      %v1962 = vpop.xlane.xlu0 %1961
      %1963 = vmax.xlane.f32.xlu0 %v1894
      %v1964 = vpop.xlane.xlu0 %1963
      %1965 = vmax.xlane.f32.xlu0 %v1899
      %v1966 = vpop.xlane.xlu0 %1965
      %1967 = vmax.xlane.f32.xlu0 %v1904
      %v1968 = vpop.xlane.xlu0 %1967
      %1969 = vmax.xlane.f32.xlu0 %v1909
      %v1970 = vpop.xlane.xlu0 %1969
      %1971 = vmax.xlane.f32.xlu0 %v1914
      %v1972 = vpop.xlane.xlu0 %1971
      %1973 = vmax.xlane.f32.xlu0 %v1919
      %v1974 = vpop.xlane.xlu0 %1973
      %1975 = vmax.xlane.f32.xlu0 %v1924
      %v1976 = vpop.xlane.xlu0 %1975
      %1977 = vmax.xlane.f32.xlu0 %v1929
      %v1978 = vpop.xlane.xlu0 %1977
      %1979 = vmax.xlane.f32.xlu0 %v1934
      %v1980 = vpop.xlane.xlu0 %1979
      %1981 = vmax.xlane.f32.xlu0 %v1939
      %v1982 = vpop.xlane.xlu0 %1981
      %1983 = vmax.xlane.f32.xlu0 %v1944
      %v1984 = vpop.xlane.xlu0 %1983
      %1985 = vmax.xlane.f32.xlu0 %v1949
      %v1986 = vpop.xlane.xlu0 %1985
      %1987 = vmax.xlane.f32.xlu0 %v1954
      %v1988 = vpop.xlane.xlu0 %1987
      %v1989 = vsub.f32 %v1879, %v1958
      %v1990 = vsub.f32 %v1884, %v1960
      %v1991 = vsub.f32 %v1889, %v1962
      %v1992 = vsub.f32 %v1894, %v1964
      %v1993 = vsub.f32 %v1899, %v1966
      %v1994 = vsub.f32 %v1904, %v1968
      %v1995 = vsub.f32 %v1909, %v1970
      %v1996 = vsub.f32 %v1914, %v1972
      %v1997 = vsub.f32 %v1919, %v1974
      %v1998 = vsub.f32 %v1924, %v1976
      %v1999 = vsub.f32 %v1929, %v1978
      %v2000 = vsub.f32 %v1934, %v1980
      %v2001 = vsub.f32 %v1939, %v1982
      %v2002 = vsub.f32 %v1944, %v1984
      %v2003 = vsub.f32 %v1949, %v1986
      %v2004 = vsub.f32 %v1954, %v1988
      %v2005 = vmul.f32 %v1989, 1.442695
      %v2006 = vpow.pop %v2005
      %v2007 = vmul.f32 %v1990, 1.442695
      %v2008 = vpow.pop %v2007
      %v2009 = vmul.f32 %v1991, 1.442695
      %v2010 = vpow.pop %v2009
      %v2011 = vmul.f32 %v1992, 1.442695
      %v2012 = vpow.pop %v2011
      %v2013 = vmul.f32 %v1993, 1.442695
      %v2014 = vpow.pop %v2013
      %v2015 = vmul.f32 %v1994, 1.442695
      %v2016 = vpow.pop %v2015
      %v2017 = vmul.f32 %v1995, 1.442695
      %v2018 = vpow.pop %v2017
      %v2019 = vmul.f32 %v1996, 1.442695
      %v2020 = vpow.pop %v2019
      %v2021 = vmul.f32 %v1997, 1.442695
      %v2022 = vpow.pop %v2021
      %v2023 = vmul.f32 %v1998, 1.442695
      %v2024 = vpow.pop %v2023
      %v2025 = vmul.f32 %v1999, 1.442695
      %v2026 = vpow.pop %v2025
      %v2027 = vmul.f32 %v2000, 1.442695
      %v2028 = vpow.pop %v2027
      %v2029 = vmul.f32 %v2001, 1.442695
      %v2030 = vpow.pop %v2029
      %v2031 = vmul.f32 %v2002, 1.442695
      %v2032 = vpow.pop %v2031
      %v2033 = vmul.f32 %v2003, 1.442695
      %v2034 = vpow.pop %v2033
      %v2035 = vmul.f32 %v2004, 1.442695
      %v2036 = vpow.pop %v2035
      %2037 = vadd.xlane.f32.xlu0 %v2006
      %v2038 = vpop.xlane.xlu0 %2037
      %2039 = vadd.xlane.f32.xlu0 %v2008
      %v2040 = vpop.xlane.xlu0 %2039
      %2041 = vadd.xlane.f32.xlu0 %v2010
      %v2042 = vpop.xlane.xlu0 %2041
      %2043 = vadd.xlane.f32.xlu0 %v2012
      %v2044 = vpop.xlane.xlu0 %2043
      %2045 = vadd.xlane.f32.xlu0 %v2014
      %v2046 = vpop.xlane.xlu0 %2045
      %2047 = vadd.xlane.f32.xlu0 %v2016
      %v2048 = vpop.xlane.xlu0 %2047
      %2049 = vadd.xlane.f32.xlu0 %v2018
      %v2050 = vpop.xlane.xlu0 %2049
      %2051 = vadd.xlane.f32.xlu0 %v2020
      %v2052 = vpop.xlane.xlu0 %2051
      %2053 = vadd.xlane.f32.xlu0 %v2022
      %v2054 = vpop.xlane.xlu0 %2053
      %2055 = vadd.xlane.f32.xlu0 %v2024
      %v2056 = vpop.xlane.xlu0 %2055
      %2057 = vadd.xlane.f32.xlu0 %v2026
      %v2058 = vpop.xlane.xlu0 %2057
      %2059 = vadd.xlane.f32.xlu0 %v2028
      %v2060 = vpop.xlane.xlu0 %2059
      %2061 = vadd.xlane.f32.xlu0 %v2030
      %v2062 = vpop.xlane.xlu0 %2061
      %2063 = vadd.xlane.f32.xlu0 %v2032
      %v2064 = vpop.xlane.xlu0 %2063
      %2065 = vadd.xlane.f32.xlu0 %v2034
      %v2066 = vpop.xlane.xlu0 %2065
      %2067 = vadd.xlane.f32.xlu0 %v2036
      %v2068 = vpop.xlane.xlu0 %2067
      %v2069 = vrcp.pop %v2038
      %v2070 = vrcp.pop %v2040
      %v2071 = vrcp.pop %v2042
      %v2072 = vrcp.pop %v2044
      %v2073 = vrcp.pop %v2046
      %v2074 = vrcp.pop %v2048
      %v2075 = vrcp.pop %v2050
      %v2076 = vrcp.pop %v2052
      %v2077 = vrcp.pop %v2054
      %v2078 = vrcp.pop %v2056
      %v2079 = vrcp.pop %v2058
      %v2080 = vrcp.pop %v2060
      %v2081 = vrcp.pop %v2062
      %v2082 = vrcp.pop %v2064
      %v2083 = vrcp.pop %v2066
      %v2084 = vrcp.pop %v2068
      %v2085 = vmul.f32 %v2006, %v2069
      %v2086 = vmul.f32 %v2008, %v2070
      %v2087 = vmul.f32 %v2010, %v2071
      %v2088 = vmul.f32 %v2012, %v2072
      %v2089 = vmul.f32 %v2014, %v2073
      %v2090 = vmul.f32 %v2016, %v2074
      %v2091 = vmul.f32 %v2018, %v2075
      %v2092 = vmul.f32 %v2020, %v2076
      %v2093 = vmul.f32 %v2022, %v2077
      %v2094 = vmul.f32 %v2024, %v2078
      %v2095 = vmul.f32 %v2026, %v2079
      %v2096 = vmul.f32 %v2028, %v2080
      %v2097 = vmul.f32 %v2030, %v2081
      %v2098 = vmul.f32 %v2032, %v2082
      %v2099 = vmul.f32 %v2034, %v2083
      %v2100 = vmul.f32 %v2036, %v2084
      %2101 = vmatprep.subr.mxu0 0.0
      %2102 = vmatpush1.msra.mxu0 %v1637
      %2103 = vmatprep.subr.mxu0 0.0
      %2104 = vmatpush1.msra.mxu0 %v1642
      %2105 = vmatprep.subr.mxu0 0.0
      %2106 = vmatpush1.msra.mxu0 %v1647
      %2107 = vmatprep.subr.mxu0 0.0
      %2108 = vmatpush1.msra.mxu0 %v1652
      %2109 = vmatprep.subr.mxu0 0.0
      %2110 = vmatpush1.msra.mxu0 %v1657
      %2111 = vmatprep.subr.mxu0 0.0
      %2112 = vmatpush1.msra.mxu0 %v1662
      %2113 = vmatprep.subr.mxu0 0.0
      %2114 = vmatpush1.msra.mxu0 %v1667
      %2115 = vmatprep.subr.mxu0 0.0
      %2116 = vmatpush1.msra.mxu0 %v1672
      %2117 = vmatprep.subr.mxu0 0.0
      %2118 = vmatpush1.msra.mxu0 %v1677
      %2119 = vmatprep.subr.mxu0 0.0
      %2120 = vmatpush1.msra.mxu0 %v1682
      %2121 = vmatprep.subr.mxu0 0.0
      %2122 = vmatpush1.msra.mxu0 %v1687
      %2123 = vmatprep.subr.mxu0 0.0
      %2124 = vmatpush1.msra.mxu0 %v1692
      %2125 = vmatprep.subr.mxu0 0.0
      %2126 = vmatpush1.msra.mxu0 %v1697
      %2127 = vmatprep.subr.mxu0 0.0
      %2128 = vmatpush1.msra.mxu0 %v1702
      %2129 = vmatprep.subr.mxu0 0.0
      %2130 = vmatpush1.msra.mxu0 %v1707
      %2131 = vmatprep.subr.mxu0 0.0
      %2132 = vmatpush1.msra.mxu0 %v1712
      %2133 = vmatprep.subr.mxu0 0.0
      %2134 = vmatpush1.msra.mxu0 0.0
      %2135 = vmatprep.subr.mxu0 0.0
      %2136 = vmatpush1.msra.mxu0 0.0
      %2137 = vmatprep.subr.mxu0 0.0
      %2138 = vmatpush1.msra.mxu0 0.0
      %2139 = vmatprep.subr.mxu0 0.0
      %2140 = vmatpush1.msra.mxu0 0.0
      %2141 = vmatprep.subr.mxu0 0.0
      %2142 = vmatpush1.msra.mxu0 0.0
      %2143 = vmatprep.subr.mxu0 0.0
      %2144 = vmatpush1.msra.mxu0 0.0
      %2145 = vmatprep.subr.mxu0 0.0
      %2146 = vmatpush1.msra.mxu0 0.0
      %2147 = vmatprep.subr.mxu0 0.0
      %2148 = vmatpush1.msra.mxu0 0.0
      %2149 = vmatprep.subr.mxu0 0.0
      %2150 = vmatpush1.msra.mxu0 0.0
      %2151 = vmatprep.subr.mxu0 0.0
      %2152 = vmatpush1.msra.mxu0 0.0
      %2153 = vmatprep.subr.mxu0 0.0
      %2154 = vmatpush1.msra.mxu0 0.0
      %2155 = vmatprep.subr.mxu0 0.0
      %2156 = vmatpush1.msra.mxu0 0.0
      %2157 = vmatprep.subr.mxu0 0.0
      %2158 = vmatpush1.msra.mxu0 0.0
      %2159 = vmatprep.subr.mxu0 0.0
      %2160 = vmatpush1.msra.mxu0 0.0
      %2161 = vmatprep.subr.mxu0 0.0
      %2162 = vmatpush1.msra.mxu0 0.0
      %2163 = vmatprep.subr.mxu0 0.0
      %2164 = vmatpush1.msra.mxu0 0.0
      %2165 = vmatprep.mubr.f32.mxu0 0.0
      %2166 = vmatmul.mubr.f32.gmra.mrb[0].mxu0 %v2085
      %v2167 = vpop.f32.mrb[0].mxu0
      %v2168 = vadd.f32 0.0, %v2167
      %v2169 = vpop.f32.mrb[0].mxu0
      %2170 = vmatprep.mubr.f32.mxu0 0.0
      %2171 = vmatmul.mubr.f32.gmra.mrb[0].mxu0 %v2086
      %v2172 = vpop.f32.mrb[0].mxu0
      %v2173 = vadd.f32 0.0, %v2172
      %v2174 = vpop.f32.mrb[0].mxu0
      %2175 = vmatprep.mubr.f32.mxu0 0.0
      %2176 = vmatmul.mubr.f32.gmra.mrb[0].mxu0 %v2087
      %v2177 = vpop.f32.mrb[0].mxu0
      %v2178 = vadd.f32 0.0, %v2177
      %v2179 = vpop.f32.mrb[0].mxu0
      %2180 = vmatprep.mubr.f32.mxu0 0.0
      %2181 = vmatmul.mubr.f32.gmra.mrb[0].mxu0 %v2088
      %v2182 = vpop.f32.mrb[0].mxu0
      %v2183 = vadd.f32 0.0, %v2182
      %v2184 = vpop.f32.mrb[0].mxu0
      %2185 = vmatprep.mubr.f32.mxu0 0.0
      %2186 = vmatmul.mubr.f32.gmra.mrb[0].mxu0 %v2089
      %v2187 = vpop.f32.mrb[0].mxu0
      %v2188 = vadd.f32 0.0, %v2187
      %v2189 = vpop.f32.mrb[0].mxu0
      %2190 = vmatprep.mubr.f32.mxu0 0.0
      %2191 = vmatmul.mubr.f32.gmra.mrb[0].mxu0 %v2090
      %v2192 = vpop.f32.mrb[0].mxu0
      %v2193 = vadd.f32 0.0, %v2192
      %v2194 = vpop.f32.mrb[0].mxu0
      %2195 = vmatprep.mubr.f32.mxu0 0.0
      %2196 = vmatmul.mubr.f32.gmra.mrb[0].mxu0 %v2091
      %v2197 = vpop.f32.mrb[0].mxu0
      %v2198 = vadd.f32 0.0, %v2197
      %v2199 = vpop.f32.mrb[0].mxu0
      %2200 = vmatprep.mubr.f32.mxu0 0.0
      %2201 = vmatmul.mubr.f32.gmra.mrb[0].mxu0 %v2092
      %v2202 = vpop.f32.mrb[0].mxu0
      %v2203 = vadd.f32 0.0, %v2202
      %v2204 = vpop.f32.mrb[0].mxu0
      %2205 = vmatprep.mubr.f32.mxu0 0.0
      %2206 = vmatmul.mubr.f32.gmra.mrb[0].mxu0 %v2093
      %v2207 = vpop.f32.mrb[0].mxu0
      %v2208 = vadd.f32 0.0, %v2207
      %v2209 = vpop.f32.mrb[0].mxu0
      %2210 = vmatprep.mubr.f32.mxu0 0.0
      %2211 = vmatmul.mubr.f32.gmra.mrb[0].mxu0 %v2094
      %v2212 = vpop.f32.mrb[0].mxu0
      %v2213 = vadd.f32 0.0, %v2212
      %v2214 = vpop.f32.mrb[0].mxu0
      %2215 = vmatprep.mubr.f32.mxu0 0.0
      %2216 = vmatmul.mubr.f32.gmra.mrb[0].mxu0 %v2095
      %v2217 = vpop.f32.mrb[0].mxu0
      %v2218 = vadd.f32 0.0, %v2217
      %v2219 = vpop.f32.mrb[0].mxu0
      %2220 = vmatprep.mubr.f32.mxu0 0.0
      %2221 = vmatmul.mubr.f32.gmra.mrb[0].mxu0 %v2096
      %v2222 = vpop.f32.mrb[0].mxu0
      %v2223 = vadd.f32 0.0, %v2222
      %v2224 = vpop.f32.mrb[0].mxu0
      %2225 = vmatprep.mubr.f32.mxu0 0.0
      %2226 = vmatmul.mubr.f32.gmra.mrb[0].mxu0 %v2097
      %v2227 = vpop.f32.mrb[0].mxu0
      %v2228 = vadd.f32 0.0, %v2227
      %v2229 = vpop.f32.mrb[0].mxu0
      %2230 = vmatprep.mubr.f32.mxu0 0.0
      %2231 = vmatmul.mubr.f32.gmra.mrb[0].mxu0 %v2098
      %v2232 = vpop.f32.mrb[0].mxu0
      %v2233 = vadd.f32 0.0, %v2232
      %v2234 = vpop.f32.mrb[0].mxu0
      %2235 = vmatprep.mubr.f32.mxu0 0.0
      %2236 = vmatmul.mubr.f32.gmra.mrb[0].mxu0 %v2099
      %v2237 = vpop.f32.mrb[0].mxu0
      %v2238 = vadd.f32 0.0, %v2237
      %v2239 = vpop.f32.mrb[0].mxu0
      %2240 = vmatprep.mubr.f32.mxu0 0.0
      %2241 = vmatmul.mubr.f32.gmra.mrb[0].mxu0 %v2100
      %v2242 = vpop.f32.mrb[0].mxu0
      %v2243 = vadd.f32 0.0, %v2242
      %v2244 = vpop.f32.mrb[0].mxu0
      %2245 = vdwg.mxu0
      %v2246 = vld [vmem:[%s6] sm:$0xff]
      %v2247 = vld [vmem:[%s6 + $0x8] sm:$0xff]
      %v2248 = vld [vmem:[%s5 + $0x68] sm:$0xff]
      %v2249 = vld [vmem:[%s5 + $0x70] sm:$0xff]
      %v2250 = vld [vmem:[%s5 + $0x78] sm:$0xff]
      %v2251 = vld [vmem:[%s5 + $0x80] sm:$0xff]
      %v2252 = vld [vmem:[%s5 + $0x88] sm:$0xff]
      %v2253 = vld [vmem:[%s5 + $0x90] sm:$0xff]
      %v2254 = vld [vmem:[%s5 + $0x98] sm:$0xff]
      %v2255 = vld [vmem:[%s5 + $0xa0] sm:$0xff]
      %v2256 = vld [vmem:[%s5 + $0xa8] sm:$0xff]
      %v2257 = vld [vmem:[%s5 + $0xb0] sm:$0xff]
      %v2258 = vld [vmem:[%s5 + $0xb8] sm:$0xff]
      %v2259 = vld [vmem:[%s5 + $0xc0] sm:$0xff]
      %v2260 = vld [vmem:[%s5 + $0xc8] sm:$0xff]
      %v2261 = vlaneseq
      %v2262 = vshrl.u32 %v2261, 7
      %v2263 = vsub.s32 0, %v2262
      %v2264 = vrot.slane %v2260, %v2263
      %2265 = vmatprep.subr.mxu0 0.0
      %2266 = vmatpush1.msra.mxu0 %v2248
      %2267 = vmatprep.subr.mxu0 0.0
      %2268 = vmatpush1.msra.mxu0 %v2249
      %2269 = vmatprep.subr.mxu0 0.0
      %2270 = vmatpush1.msra.mxu0 %v2250
      %2271 = vmatprep.subr.mxu0 0.0
      %2272 = vmatpush1.msra.mxu0 %v2251
      %2273 = vmatprep.subr.mxu0 0.0
      %2274 = vmatpush1.msra.mxu0 0.0
      %2275 = vmatprep.subr.mxu0 0.0
      %2276 = vmatpush1.msra.mxu0 0.0
      %2277 = vmatprep.subr.mxu0 0.0
      %2278 = vmatpush1.msra.mxu0 0.0
      %2279 = vmatprep.subr.mxu0 0.0
      %2280 = vmatpush1.msra.mxu0 0.0
      %2281 = vmatprep.subr.mxu0 0.0
      %2282 = vmatpush1.msra.mxu0 0.0
      %2283 = vmatprep.subr.mxu0 0.0
      %2284 = vmatpush1.msra.mxu0 0.0
      %2285 = vmatprep.subr.mxu0 0.0
      %2286 = vmatpush1.msra.mxu0 0.0
      %2287 = vmatprep.subr.mxu0 0.0
      %2288 = vmatpush1.msra.mxu0 0.0
      %2289 = vmatprep.subr.mxu0 0.0
      %2290 = vmatpush1.msra.mxu0 0.0
      %2291 = vmatprep.subr.mxu0 0.0
      %2292 = vmatpush1.msra.mxu0 0.0
      %2293 = vmatprep.subr.mxu0 0.0
      %2294 = vmatpush1.msra.mxu0 0.0
      %2295 = vmatprep.subr.mxu0 0.0
      %2296 = vmatpush1.msra.mxu0 0.0
      %2297 = vmatprep.subr.mxu0 0.0
      %2298 = vmatpush1.msra.mxu0 0.0
      %2299 = vmatprep.subr.mxu0 0.0
      %2300 = vmatpush1.msra.mxu0 0.0
      %2301 = vmatprep.subr.mxu0 0.0
      %2302 = vmatpush1.msra.mxu0 0.0
      %2303 = vmatprep.subr.mxu0 0.0
      %2304 = vmatpush1.msra.mxu0 0.0
      %2305 = vmatprep.subr.mxu0 0.0
      %2306 = vmatpush1.msra.mxu0 0.0
      %2307 = vmatprep.subr.mxu0 0.0
      %2308 = vmatpush1.msra.mxu0 0.0
      %2309 = vmatprep.subr.mxu0 0.0
      %2310 = vmatpush1.msra.mxu0 0.0
      %2311 = vmatprep.subr.mxu0 0.0
      %2312 = vmatpush1.msra.mxu0 0.0
      %2313 = vmatprep.subr.mxu0 0.0
      %2314 = vmatpush1.msra.mxu0 0.0
      %2315 = vmatprep.subr.mxu0 0.0
      %2316 = vmatpush1.msra.mxu0 0.0
      %2317 = vmatprep.subr.mxu0 0.0
      %2318 = vmatpush1.msra.mxu0 0.0
      %2319 = vmatprep.subr.mxu0 0.0
      %2320 = vmatpush1.msra.mxu0 0.0
      %2321 = vmatprep.subr.mxu0 0.0
      %2322 = vmatpush1.msra.mxu0 0.0
      %2323 = vmatprep.subr.mxu0 0.0
      %2324 = vmatpush1.msra.mxu0 0.0
      %2325 = vmatprep.subr.mxu0 0.0
      %2326 = vmatpush1.msra.mxu0 0.0
      %2327 = vmatprep.subr.mxu0 0.0
      %2328 = vmatpush1.msra.mxu0 0.0
      %2329 = vmatprep.mubr.f32.mxu0 0.0
      %2330 = vmatmul.mubr.f32.gmra.mrb[0].mxu0 %v1225
      %v2331 = vpop.f32.mrb[0].mxu0
      %v2332 = vadd.f32 %v2264, %v2331
      %v2333 = vpop.f32.mrb[0].mxu0
      %2334 = vmatprep.mubr.f32.mxu0 0.0
      %2335 = vmatmul.mubr.f32.gmra.mrb[0].mxu0 %v1228
      %v2336 = vpop.f32.mrb[0].mxu0
      %v2337 = vadd.f32 %v2264, %v2336
      %v2338 = vpop.f32.mrb[0].mxu0
      %2339 = vmatprep.mubr.f32.mxu0 0.0
      %2340 = vmatmul.mubr.f32.gmra.mrb[0].mxu0 %v1231
      %v2341 = vpop.f32.mrb[0].mxu0
      %v2342 = vadd.f32 %v2264, %v2341
      %v2343 = vpop.f32.mrb[0].mxu0
      %2344 = vmatprep.mubr.f32.mxu0 0.0
      %2345 = vmatmul.mubr.f32.gmra.mrb[0].mxu0 %v1234
      %v2346 = vpop.f32.mrb[0].mxu0
      %v2347 = vadd.f32 %v2264, %v2346
      %v2348 = vpop.f32.mrb[0].mxu0
      %2349 = vmatprep.mubr.f32.mxu0 0.0
      %2350 = vmatmul.mubr.f32.gmra.mrb[0].mxu0 %v1237
      %v2351 = vpop.f32.mrb[0].mxu0
      %v2352 = vadd.f32 %v2264, %v2351
      %v2353 = vpop.f32.mrb[0].mxu0
      %2354 = vmatprep.mubr.f32.mxu0 0.0
      %2355 = vmatmul.mubr.f32.gmra.mrb[0].mxu0 %v1240
      %v2356 = vpop.f32.mrb[0].mxu0
      %v2357 = vadd.f32 %v2264, %v2356
      %v2358 = vpop.f32.mrb[0].mxu0
      %2359 = vmatprep.mubr.f32.mxu0 0.0
      %2360 = vmatmul.mubr.f32.gmra.mrb[0].mxu0 %v1243
      %v2361 = vpop.f32.mrb[0].mxu0
      %v2362 = vadd.f32 %v2264, %v2361
      %v2363 = vpop.f32.mrb[0].mxu0
      %2364 = vmatprep.mubr.f32.mxu0 0.0
      %2365 = vmatmul.mubr.f32.gmra.mrb[0].mxu0 %v1246
      %v2366 = vpop.f32.mrb[0].mxu0
      %v2367 = vadd.f32 %v2264, %v2366
      %v2368 = vpop.f32.mrb[0].mxu0
      %2369 = vmatprep.mubr.f32.mxu0 0.0
      %2370 = vmatmul.mubr.f32.gmra.mrb[0].mxu0 %v1249
      %v2371 = vpop.f32.mrb[0].mxu0
      %v2372 = vadd.f32 %v2264, %v2371
      %v2373 = vpop.f32.mrb[0].mxu0
      %2374 = vmatprep.mubr.f32.mxu0 0.0
      %2375 = vmatmul.mubr.f32.gmra.mrb[0].mxu0 %v1252
      %v2376 = vpop.f32.mrb[0].mxu0
      %v2377 = vadd.f32 %v2264, %v2376
      %v2378 = vpop.f32.mrb[0].mxu0
      %2379 = vmatprep.mubr.f32.mxu0 0.0
      %2380 = vmatmul.mubr.f32.gmra.mrb[0].mxu0 %v1255
      %v2381 = vpop.f32.mrb[0].mxu0
      %v2382 = vadd.f32 %v2264, %v2381
      %v2383 = vpop.f32.mrb[0].mxu0
      %2384 = vmatprep.mubr.f32.mxu0 0.0
      %2385 = vmatmul.mubr.f32.gmra.mrb[0].mxu0 %v1258
      %v2386 = vpop.f32.mrb[0].mxu0
      %v2387 = vadd.f32 %v2264, %v2386
      %v2388 = vpop.f32.mrb[0].mxu0
      %2389 = vmatprep.mubr.f32.mxu0 0.0
      %2390 = vmatmul.mubr.f32.gmra.mrb[0].mxu0 %v1261
      %v2391 = vpop.f32.mrb[0].mxu0
      %v2392 = vadd.f32 %v2264, %v2391
      %v2393 = vpop.f32.mrb[0].mxu0
      %2394 = vmatprep.mubr.f32.mxu0 0.0
      %2395 = vmatmul.mubr.f32.gmra.mrb[0].mxu0 %v1264
      %v2396 = vpop.f32.mrb[0].mxu0
      %v2397 = vadd.f32 %v2264, %v2396
      %v2398 = vpop.f32.mrb[0].mxu0
      %2399 = vmatprep.mubr.f32.mxu0 0.0
      %2400 = vmatmul.mubr.f32.gmra.mrb[0].mxu0 %v1267
      %v2401 = vpop.f32.mrb[0].mxu0
      %v2402 = vadd.f32 %v2264, %v2401
      %v2403 = vpop.f32.mrb[0].mxu0
      %2404 = vmatprep.mubr.f32.mxu0 0.0
      %2405 = vmatmul.mubr.f32.gmra.mrb[0].mxu0 %v1270
      %v2406 = vpop.f32.mrb[0].mxu0
      %v2407 = vadd.f32 %v2264, %v2406
      %v2408 = vpop.f32.mrb[0].mxu0
      %2409 = vdwg.mxu0
      %v2410 = vlaneseq
      %v2411 = vshrl.u32 %v2410, 7
      %v2412 = vsub.s32 1, %v2411
      %v2413 = vrot.slane %v2260, %v2412
      %2414 = vmatprep.subr.mxu0 0.0
      %2415 = vmatpush1.msra.mxu0 %v2252
      %2416 = vmatprep.subr.mxu0 0.0
      %2417 = vmatpush1.msra.mxu0 %v2253
      %2418 = vmatprep.subr.mxu0 0.0
      %2419 = vmatpush1.msra.mxu0 %v2254
      %2420 = vmatprep.subr.mxu0 0.0
      %2421 = vmatpush1.msra.mxu0 %v2255
      %2422 = vmatprep.subr.mxu0 0.0
      %2423 = vmatpush1.msra.mxu0 0.0
      %2424 = vmatprep.subr.mxu0 0.0
      %2425 = vmatpush1.msra.mxu0 0.0
      %2426 = vmatprep.subr.mxu0 0.0
      %2427 = vmatpush1.msra.mxu0 0.0
      %2428 = vmatprep.subr.mxu0 0.0
      %2429 = vmatpush1.msra.mxu0 0.0
      %2430 = vmatprep.subr.mxu0 0.0
      %2431 = vmatpush1.msra.mxu0 0.0
      %2432 = vmatprep.subr.mxu0 0.0
      %2433 = vmatpush1.msra.mxu0 0.0
      %2434 = vmatprep.subr.mxu0 0.0
      %2435 = vmatpush1.msra.mxu0 0.0
      %2436 = vmatprep.subr.mxu0 0.0
      %2437 = vmatpush1.msra.mxu0 0.0
      %2438 = vmatprep.subr.mxu0 0.0
      %2439 = vmatpush1.msra.mxu0 0.0
      %2440 = vmatprep.subr.mxu0 0.0
      %2441 = vmatpush1.msra.mxu0 0.0
      %2442 = vmatprep.subr.mxu0 0.0
      %2443 = vmatpush1.msra.mxu0 0.0
      %2444 = vmatprep.subr.mxu0 0.0
      %2445 = vmatpush1.msra.mxu0 0.0
      %2446 = vmatprep.subr.mxu0 0.0
      %2447 = vmatpush1.msra.mxu0 0.0
      %2448 = vmatprep.subr.mxu0 0.0
      %2449 = vmatpush1.msra.mxu0 0.0
      %2450 = vmatprep.subr.mxu0 0.0
      %2451 = vmatpush1.msra.mxu0 0.0
      %2452 = vmatprep.subr.mxu0 0.0
      %2453 = vmatpush1.msra.mxu0 0.0
      %2454 = vmatprep.subr.mxu0 0.0
      %2455 = vmatpush1.msra.mxu0 0.0
      %2456 = vmatprep.subr.mxu0 0.0
      %2457 = vmatpush1.msra.mxu0 0.0
      %2458 = vmatprep.subr.mxu0 0.0
      %2459 = vmatpush1.msra.mxu0 0.0
      %2460 = vmatprep.subr.mxu0 0.0
      %2461 = vmatpush1.msra.mxu0 0.0
      %2462 = vmatprep.subr.mxu0 0.0
      %2463 = vmatpush1.msra.mxu0 0.0
      %2464 = vmatprep.subr.mxu0 0.0
      %2465 = vmatpush1.msra.mxu0 0.0
      %2466 = vmatprep.subr.mxu0 0.0
      %2467 = vmatpush1.msra.mxu0 0.0
      %2468 = vmatprep.subr.mxu0 0.0
      %2469 = vmatpush1.msra.mxu0 0.0
      %2470 = vmatprep.subr.mxu0 0.0
      %2471 = vmatpush1.msra.mxu0 0.0
      %2472 = vmatprep.subr.mxu0 0.0
      %2473 = vmatpush1.msra.mxu0 0.0
      %2474 = vmatprep.subr.mxu0 0.0
      %2475 = vmatpush1.msra.mxu0 0.0
      %2476 = vmatprep.subr.mxu0 0.0
      %2477 = vmatpush1.msra.mxu0 0.0
      %2478 = vmatprep.mubr.f32.mxu0 0.0
      %2479 = vmatmul.mubr.f32.gmra.mrb[0].mxu0 %v1225
      %v2480 = vpop.f32.mrb[0].mxu0
      %v2481 = vadd.f32 %v2413, %v2480
      %v2482 = vpop.f32.mrb[0].mxu0
      %2483 = vmatprep.mubr.f32.mxu0 0.0
      %2484 = vmatmul.mubr.f32.gmra.mrb[0].mxu0 %v1228
      %v2485 = vpop.f32.mrb[0].mxu0
      %v2486 = vadd.f32 %v2413, %v2485
      %v2487 = vpop.f32.mrb[0].mxu0
      %2488 = vmatprep.mubr.f32.mxu0 0.0
      %2489 = vmatmul.mubr.f32.gmra.mrb[0].mxu0 %v1231
      %v2490 = vpop.f32.mrb[0].mxu0
      %v2491 = vadd.f32 %v2413, %v2490
      %v2492 = vpop.f32.mrb[0].mxu0
      %2493 = vmatprep.mubr.f32.mxu0 0.0
      %2494 = vmatmul.mubr.f32.gmra.mrb[0].mxu0 %v1234
      %v2495 = vpop.f32.mrb[0].mxu0
      %v2496 = vadd.f32 %v2413, %v2495
      %v2497 = vpop.f32.mrb[0].mxu0
      %2498 = vmatprep.mubr.f32.mxu0 0.0
      %2499 = vmatmul.mubr.f32.gmra.mrb[0].mxu0 %v1237
      %v2500 = vpop.f32.mrb[0].mxu0
      %v2501 = vadd.f32 %v2413, %v2500
      %v2502 = vpop.f32.mrb[0].mxu0
      %2503 = vmatprep.mubr.f32.mxu0 0.0
      %2504 = vmatmul.mubr.f32.gmra.mrb[0].mxu0 %v1240
      %v2505 = vpop.f32.mrb[0].mxu0
      %v2506 = vadd.f32 %v2413, %v2505
      %v2507 = vpop.f32.mrb[0].mxu0
      %2508 = vmatprep.mubr.f32.mxu0 0.0
      %2509 = vmatmul.mubr.f32.gmra.mrb[0].mxu0 %v1243
      %v2510 = vpop.f32.mrb[0].mxu0
      %v2511 = vadd.f32 %v2413, %v2510
      %v2512 = vpop.f32.mrb[0].mxu0
      %2513 = vmatprep.mubr.f32.mxu0 0.0
      %2514 = vmatmul.mubr.f32.gmra.mrb[0].mxu0 %v1246
      %v2515 = vpop.f32.mrb[0].mxu0
      %v2516 = vadd.f32 %v2413, %v2515
      %v2517 = vpop.f32.mrb[0].mxu0
      %2518 = vmatprep.mubr.f32.mxu0 0.0
      %2519 = vmatmul.mubr.f32.gmra.mrb[0].mxu0 %v1249
      %v2520 = vpop.f32.mrb[0].mxu0
      %v2521 = vadd.f32 %v2413, %v2520
      %v2522 = vpop.f32.mrb[0].mxu0
      %2523 = vmatprep.mubr.f32.mxu0 0.0
      %2524 = vmatmul.mubr.f32.gmra.mrb[0].mxu0 %v1252
      %v2525 = vpop.f32.mrb[0].mxu0
      %v2526 = vadd.f32 %v2413, %v2525
      %v2527 = vpop.f32.mrb[0].mxu0
      %2528 = vmatprep.mubr.f32.mxu0 0.0
      %2529 = vmatmul.mubr.f32.gmra.mrb[0].mxu0 %v1255
      %v2530 = vpop.f32.mrb[0].mxu0
      %v2531 = vadd.f32 %v2413, %v2530
      %v2532 = vpop.f32.mrb[0].mxu0
      %2533 = vmatprep.mubr.f32.mxu0 0.0
      %2534 = vmatmul.mubr.f32.gmra.mrb[0].mxu0 %v1258
      %v2535 = vpop.f32.mrb[0].mxu0
      %v2536 = vadd.f32 %v2413, %v2535
      %v2537 = vpop.f32.mrb[0].mxu0
      %2538 = vmatprep.mubr.f32.mxu0 0.0
      %2539 = vmatmul.mubr.f32.gmra.mrb[0].mxu0 %v1261
      %v2540 = vpop.f32.mrb[0].mxu0
      %v2541 = vadd.f32 %v2413, %v2540
      %v2542 = vpop.f32.mrb[0].mxu0
      %2543 = vmatprep.mubr.f32.mxu0 0.0
      %2544 = vmatmul.mubr.f32.gmra.mrb[0].mxu0 %v1264
      %v2545 = vpop.f32.mrb[0].mxu0
      %v2546 = vadd.f32 %v2413, %v2545
      %v2547 = vpop.f32.mrb[0].mxu0
      %2548 = vmatprep.mubr.f32.mxu0 0.0
      %2549 = vmatmul.mubr.f32.gmra.mrb[0].mxu0 %v1267
      %v2550 = vpop.f32.mrb[0].mxu0
      %v2551 = vadd.f32 %v2413, %v2550
      %v2552 = vpop.f32.mrb[0].mxu0
      %2553 = vmatprep.mubr.f32.mxu0 0.0
      %2554 = vmatmul.mubr.f32.gmra.mrb[0].mxu0 %v1270
      %v2555 = vpop.f32.mrb[0].mxu0
      %v2556 = vadd.f32 %v2413, %v2555
      %v2557 = vpop.f32.mrb[0].mxu0
      %2558 = vdwg.mxu0
      %v2559 = vlaneseq
      %v2560 = vshrl.u32 %v2559, 7
      %v2561 = vsub.s32 2, %v2560
      %v2562 = vrot.slane %v2260, %v2561
      %2563 = vmatprep.subr.mxu0 0.0
      %2564 = vmatpush1.msra.mxu0 %v2256
      %2565 = vmatprep.subr.mxu0 0.0
      %2566 = vmatpush1.msra.mxu0 %v2257
      %2567 = vmatprep.subr.mxu0 0.0
      %2568 = vmatpush1.msra.mxu0 %v2258
      %2569 = vmatprep.subr.mxu0 0.0
      %2570 = vmatpush1.msra.mxu0 %v2259
      %2571 = vmatprep.subr.mxu0 0.0
      %2572 = vmatpush1.msra.mxu0 0.0
      %2573 = vmatprep.subr.mxu0 0.0
      %2574 = vmatpush1.msra.mxu0 0.0
      %2575 = vmatprep.subr.mxu0 0.0
      %2576 = vmatpush1.msra.mxu0 0.0
      %2577 = vmatprep.subr.mxu0 0.0
      %2578 = vmatpush1.msra.mxu0 0.0
      %2579 = vmatprep.subr.mxu0 0.0
      %2580 = vmatpush1.msra.mxu0 0.0
      %2581 = vmatprep.subr.mxu0 0.0
      %2582 = vmatpush1.msra.mxu0 0.0
      %2583 = vmatprep.subr.mxu0 0.0
      %2584 = vmatpush1.msra.mxu0 0.0
      %2585 = vmatprep.subr.mxu0 0.0
      %2586 = vmatpush1.msra.mxu0 0.0
      %2587 = vmatprep.subr.mxu0 0.0
      %2588 = vmatpush1.msra.mxu0 0.0
      %2589 = vmatprep.subr.mxu0 0.0
      %2590 = vmatpush1.msra.mxu0 0.0
      %2591 = vmatprep.subr.mxu0 0.0
      %2592 = vmatpush1.msra.mxu0 0.0
      %2593 = vmatprep.subr.mxu0 0.0
      %2594 = vmatpush1.msra.mxu0 0.0
      %2595 = vmatprep.subr.mxu0 0.0
      %2596 = vmatpush1.msra.mxu0 0.0
      %2597 = vmatprep.subr.mxu0 0.0
      %2598 = vmatpush1.msra.mxu0 0.0
      %2599 = vmatprep.subr.mxu0 0.0
      %2600 = vmatpush1.msra.mxu0 0.0
      %2601 = vmatprep.subr.mxu0 0.0
      %2602 = vmatpush1.msra.mxu0 0.0
      %2603 = vmatprep.subr.mxu0 0.0
      %2604 = vmatpush1.msra.mxu0 0.0
      %2605 = vmatprep.subr.mxu0 0.0
      %2606 = vmatpush1.msra.mxu0 0.0
      %2607 = vmatprep.subr.mxu0 0.0
      %2608 = vmatpush1.msra.mxu0 0.0
      %2609 = vmatprep.subr.mxu0 0.0
      %2610 = vmatpush1.msra.mxu0 0.0
      %2611 = vmatprep.subr.mxu0 0.0
      %2612 = vmatpush1.msra.mxu0 0.0
      %2613 = vmatprep.subr.mxu0 0.0
      %2614 = vmatpush1.msra.mxu0 0.0
      %2615 = vmatprep.subr.mxu0 0.0
      %2616 = vmatpush1.msra.mxu0 0.0
      %2617 = vmatprep.subr.mxu0 0.0
      %2618 = vmatpush1.msra.mxu0 0.0
      %2619 = vmatprep.subr.mxu0 0.0
      %2620 = vmatpush1.msra.mxu0 0.0
      %2621 = vmatprep.subr.mxu0 0.0
      %2622 = vmatpush1.msra.mxu0 0.0
      %2623 = vmatprep.subr.mxu0 0.0
      %2624 = vmatpush1.msra.mxu0 0.0
      %2625 = vmatprep.subr.mxu0 0.0
      %2626 = vmatpush1.msra.mxu0 0.0
      %2627 = vmatprep.mubr.f32.mxu0 0.0
      %2628 = vmatmul.mubr.f32.gmra.mrb[0].mxu0 %v1225
      %v2629 = vpop.f32.mrb[0].mxu0
      %v2630 = vadd.f32 %v2562, %v2629
      %v2631 = vpop.f32.mrb[0].mxu0
      %2632 = vmatprep.mubr.f32.mxu0 0.0
      %2633 = vmatmul.mubr.f32.gmra.mrb[0].mxu0 %v1228
      %v2634 = vpop.f32.mrb[0].mxu0
      %v2635 = vadd.f32 %v2562, %v2634
      %v2636 = vpop.f32.mrb[0].mxu0
      %2637 = vmatprep.mubr.f32.mxu0 0.0
      %2638 = vmatmul.mubr.f32.gmra.mrb[0].mxu0 %v1231
      %v2639 = vpop.f32.mrb[0].mxu0
      %v2640 = vadd.f32 %v2562, %v2639
      %v2641 = vpop.f32.mrb[0].mxu0
      %2642 = vmatprep.mubr.f32.mxu0 0.0
      %2643 = vmatmul.mubr.f32.gmra.mrb[0].mxu0 %v1234
      %v2644 = vpop.f32.mrb[0].mxu0
      %v2645 = vadd.f32 %v2562, %v2644
      %v2646 = vpop.f32.mrb[0].mxu0
      %2647 = vmatprep.mubr.f32.mxu0 0.0
      %2648 = vmatmul.mubr.f32.gmra.mrb[0].mxu0 %v1237
      %v2649 = vpop.f32.mrb[0].mxu0
      %v2650 = vadd.f32 %v2562, %v2649
      %v2651 = vpop.f32.mrb[0].mxu0
      %2652 = vmatprep.mubr.f32.mxu0 0.0
      %2653 = vmatmul.mubr.f32.gmra.mrb[0].mxu0 %v1240
      %v2654 = vpop.f32.mrb[0].mxu0
      %v2655 = vadd.f32 %v2562, %v2654
      %v2656 = vpop.f32.mrb[0].mxu0
      %2657 = vmatprep.mubr.f32.mxu0 0.0
      %2658 = vmatmul.mubr.f32.gmra.mrb[0].mxu0 %v1243
      %v2659 = vpop.f32.mrb[0].mxu0
      %v2660 = vadd.f32 %v2562, %v2659
      %v2661 = vpop.f32.mrb[0].mxu0
      %2662 = vmatprep.mubr.f32.mxu0 0.0
      %2663 = vmatmul.mubr.f32.gmra.mrb[0].mxu0 %v1246
      %v2664 = vpop.f32.mrb[0].mxu0
      %v2665 = vadd.f32 %v2562, %v2664
      %v2666 = vpop.f32.mrb[0].mxu0
      %2667 = vmatprep.mubr.f32.mxu0 0.0
      %2668 = vmatmul.mubr.f32.gmra.mrb[0].mxu0 %v1249
      %v2669 = vpop.f32.mrb[0].mxu0
      %v2670 = vadd.f32 %v2562, %v2669
      %v2671 = vpop.f32.mrb[0].mxu0
      %2672 = vmatprep.mubr.f32.mxu0 0.0
      %2673 = vmatmul.mubr.f32.gmra.mrb[0].mxu0 %v1252
      %v2674 = vpop.f32.mrb[0].mxu0
      %v2675 = vadd.f32 %v2562, %v2674
      %v2676 = vpop.f32.mrb[0].mxu0
      %2677 = vmatprep.mubr.f32.mxu0 0.0
      %2678 = vmatmul.mubr.f32.gmra.mrb[0].mxu0 %v1255
      %v2679 = vpop.f32.mrb[0].mxu0
      %v2680 = vadd.f32 %v2562, %v2679
      %v2681 = vpop.f32.mrb[0].mxu0
      %2682 = vmatprep.mubr.f32.mxu0 0.0
      %2683 = vmatmul.mubr.f32.gmra.mrb[0].mxu0 %v1258
      %v2684 = vpop.f32.mrb[0].mxu0
      %v2685 = vadd.f32 %v2562, %v2684
      %v2686 = vpop.f32.mrb[0].mxu0
      %2687 = vmatprep.mubr.f32.mxu0 0.0
      %2688 = vmatmul.mubr.f32.gmra.mrb[0].mxu0 %v1261
      %v2689 = vpop.f32.mrb[0].mxu0
      %v2690 = vadd.f32 %v2562, %v2689
      %v2691 = vpop.f32.mrb[0].mxu0
      %2692 = vmatprep.mubr.f32.mxu0 0.0
      %2693 = vmatmul.mubr.f32.gmra.mrb[0].mxu0 %v1264
      %v2694 = vpop.f32.mrb[0].mxu0
      %v2695 = vadd.f32 %v2562, %v2694
      %v2696 = vpop.f32.mrb[0].mxu0
      %2697 = vmatprep.mubr.f32.mxu0 0.0
      %2698 = vmatmul.mubr.f32.gmra.mrb[0].mxu0 %v1267
      %v2699 = vpop.f32.mrb[0].mxu0
      %v2700 = vadd.f32 %v2562, %v2699
      %v2701 = vpop.f32.mrb[0].mxu0
      %2702 = vmatprep.mubr.f32.mxu0 0.0
      %2703 = vmatmul.mubr.f32.gmra.mrb[0].mxu0 %v1270
      %v2704 = vpop.f32.mrb[0].mxu0
      %v2705 = vadd.f32 %v2562, %v2704
      %v2706 = vpop.f32.mrb[0].mxu0
      %2707 = vdwg.mxu0
      %v2709 = vsel %vm1715, %v2332, 0
      %v2712 = vsel %vm1715, %v2337, 0
      %v2715 = vsel %vm1715, %v2342, 0
      %v2718 = vsel %vm1715, %v2347, 0
      %v2721 = vsel %vm1715, %v2352, 0
      %v2724 = vsel %vm1715, %v2357, 0
      %v2727 = vsel %vm1715, %v2362, 0
      %v2730 = vsel %vm1715, %v2367, 0
      %v2733 = vsel %vm1715, %v2372, 0
      %v2736 = vsel %vm1715, %v2377, 0
      %v2739 = vsel %vm1715, %v2382, 0
      %v2742 = vsel %vm1715, %v2387, 0
      %v2745 = vsel %vm1715, %v2392, 0
      %v2748 = vsel %vm1715, %v2397, 0
      %v2751 = vsel %vm1715, %v2402, 0
      %v2754 = vsel %vm1715, %v2407, 0
      %v2757 = vsel %vm1715, %v2481, 0
      %v2760 = vsel %vm1715, %v2486, 0
      %v2763 = vsel %vm1715, %v2491, 0
      %v2766 = vsel %vm1715, %v2496, 0
      %v2769 = vsel %vm1715, %v2501, 0
      %v2772 = vsel %vm1715, %v2506, 0
      %v2775 = vsel %vm1715, %v2511, 0
      %v2778 = vsel %vm1715, %v2516, 0
      %v2781 = vsel %vm1715, %v2521, 0
      %v2784 = vsel %vm1715, %v2526, 0
      %v2787 = vsel %vm1715, %v2531, 0
      %v2790 = vsel %vm1715, %v2536, 0
      %v2793 = vsel %vm1715, %v2541, 0
      %v2796 = vsel %vm1715, %v2546, 0
      %v2799 = vsel %vm1715, %v2551, 0
      %v2802 = vsel %vm1715, %v2556, 0
      %2804 = vmatprep.subr.mxu0 0.0
      %2805 = vmatpush1.xpose.msra.mxu0 %v2757
      %2806 = vmatprep.subr.mxu0 0.0
      %2807 = vmatpush1.xpose.msra.mxu0 %v2760
      %2808 = vmatprep.subr.mxu0 0.0
      %2809 = vmatpush1.xpose.msra.mxu0 %v2763
      %2810 = vmatprep.subr.mxu0 0.0
      %2811 = vmatpush1.xpose.msra.mxu0 %v2766
      %2812 = vmatprep.subr.mxu0 0.0
      %2813 = vmatpush1.xpose.msra.mxu0 %v2769
      %2814 = vmatprep.subr.mxu0 0.0
      %2815 = vmatpush1.xpose.msra.mxu0 %v2772
      %2816 = vmatprep.subr.mxu0 0.0
      %2817 = vmatpush1.xpose.msra.mxu0 %v2775
      %2818 = vmatprep.subr.mxu0 0.0
      %2819 = vmatpush1.xpose.msra.mxu0 %v2778
      %2820 = vmatprep.subr.mxu0 0.0
      %2821 = vmatpush1.xpose.msra.mxu0 %v2781
      %2822 = vmatprep.subr.mxu0 0.0
      %2823 = vmatpush1.xpose.msra.mxu0 %v2784
      %2824 = vmatprep.subr.mxu0 0.0
      %2825 = vmatpush1.xpose.msra.mxu0 %v2787
      %2826 = vmatprep.subr.mxu0 0.0
      %2827 = vmatpush1.xpose.msra.mxu0 %v2790
      %2828 = vmatprep.subr.mxu0 0.0
      %2829 = vmatpush1.xpose.msra.mxu0 %v2793
      %2830 = vmatprep.subr.mxu0 0.0
      %2831 = vmatpush1.xpose.msra.mxu0 %v2796
      %2832 = vmatprep.subr.mxu0 0.0
      %2833 = vmatpush1.xpose.msra.mxu0 %v2799
      %2834 = vmatprep.subr.mxu0 0.0
      %2835 = vmatpush1.xpose.msra.mxu0 %v2802
      %2836 = vmatprep.subr.mxu0 0.0
      %2837 = vmatpush1.xpose.msra.mxu0 0.0
      %2838 = vmatprep.subr.mxu0 0.0
      %2839 = vmatpush1.xpose.msra.mxu0 0.0
      %2840 = vmatprep.subr.mxu0 0.0
      %2841 = vmatpush1.xpose.msra.mxu0 0.0
      %2842 = vmatprep.subr.mxu0 0.0
      %2843 = vmatpush1.xpose.msra.mxu0 0.0
      %2844 = vmatprep.subr.mxu0 0.0
      %2845 = vmatpush1.xpose.msra.mxu0 0.0
      %2846 = vmatprep.subr.mxu0 0.0
      %2847 = vmatpush1.xpose.msra.mxu0 0.0
      %2848 = vmatprep.subr.mxu0 0.0
      %2849 = vmatpush1.xpose.msra.mxu0 0.0
      %2850 = vmatprep.subr.mxu0 0.0
      %2851 = vmatpush1.xpose.msra.mxu0 0.0
      %2852 = vmatprep.subr.mxu0 0.0
      %2853 = vmatpush1.xpose.msra.mxu0 0.0
      %2854 = vmatprep.subr.mxu0 0.0
      %2855 = vmatpush1.xpose.msra.mxu0 0.0
      %2856 = vmatprep.subr.mxu0 0.0
      %2857 = vmatpush1.xpose.msra.mxu0 0.0
      %2858 = vmatprep.subr.mxu0 0.0
      %2859 = vmatpush1.xpose.msra.mxu0 0.0
      %2860 = vmatprep.subr.mxu0 0.0
      %2861 = vmatpush1.xpose.msra.mxu0 0.0
      %2862 = vmatprep.subr.mxu0 0.0
      %2863 = vmatpush1.xpose.msra.mxu0 0.0
      %2864 = vmatprep.subr.mxu0 0.0
      %2865 = vmatpush1.xpose.msra.mxu0 0.0
      %2866 = vmatprep.subr.mxu0 0.0
      %2867 = vmatpush1.xpose.msra.mxu0 0.0
      %2868 = vmatprep.mubr.f32.mxu0 0.0
      %2869 = vmatmul.mubr.f32.gmra.mrb[0].mxu0 %v2709
      %v2870 = vpop.f32.mrb[0].mxu0
      %v2871 = vadd.f32 %v1191, %v2870
      %v2872 = vpop.f32.mrb[0].mxu0
      %2873 = vmatprep.mubr.f32.mxu0 0.0
      %2874 = vmatmul.mubr.f32.gmra.mrb[0].mxu0 %v2712
      %v2875 = vpop.f32.mrb[0].mxu0
      %v2876 = vadd.f32 %v1192, %v2875
      %v2877 = vpop.f32.mrb[0].mxu0
      %2878 = vmatprep.mubr.f32.mxu0 0.0
      %2879 = vmatmul.mubr.f32.gmra.mrb[0].mxu0 %v2715
      %v2880 = vpop.f32.mrb[0].mxu0
      %v2881 = vadd.f32 %v1193, %v2880
      %v2882 = vpop.f32.mrb[0].mxu0
      %2883 = vmatprep.mubr.f32.mxu0 0.0
      %2884 = vmatmul.mubr.f32.gmra.mrb[0].mxu0 %v2718
      %v2885 = vpop.f32.mrb[0].mxu0
      %v2886 = vadd.f32 %v1194, %v2885
      %v2887 = vpop.f32.mrb[0].mxu0
      %2888 = vmatprep.mubr.f32.mxu0 0.0
      %2889 = vmatmul.mubr.f32.gmra.mrb[0].mxu0 %v2721
      %v2890 = vpop.f32.mrb[0].mxu0
      %v2891 = vadd.f32 %v1195, %v2890
      %v2892 = vpop.f32.mrb[0].mxu0
      %2893 = vmatprep.mubr.f32.mxu0 0.0
      %2894 = vmatmul.mubr.f32.gmra.mrb[0].mxu0 %v2724
      %v2895 = vpop.f32.mrb[0].mxu0
      %v2896 = vadd.f32 %v1196, %v2895
      %v2897 = vpop.f32.mrb[0].mxu0
      %2898 = vmatprep.mubr.f32.mxu0 0.0
      %2899 = vmatmul.mubr.f32.gmra.mrb[0].mxu0 %v2727
      %v2900 = vpop.f32.mrb[0].mxu0
      %v2901 = vadd.f32 %v1197, %v2900
      %v2902 = vpop.f32.mrb[0].mxu0
      %2903 = vmatprep.mubr.f32.mxu0 0.0
      %2904 = vmatmul.mubr.f32.gmra.mrb[0].mxu0 %v2730
      %v2905 = vpop.f32.mrb[0].mxu0
      %v2906 = vadd.f32 %v1198, %v2905
      %v2907 = vpop.f32.mrb[0].mxu0
      %2908 = vmatprep.mubr.f32.mxu0 0.0
      %2909 = vmatmul.mubr.f32.gmra.mrb[0].mxu0 %v2733
      %v2910 = vpop.f32.mrb[0].mxu0
      %v2911 = vadd.f32 %v1199, %v2910
      %v2912 = vpop.f32.mrb[0].mxu0
      %2913 = vmatprep.mubr.f32.mxu0 0.0
      %2914 = vmatmul.mubr.f32.gmra.mrb[0].mxu0 %v2736
      %v2915 = vpop.f32.mrb[0].mxu0
      %v2916 = vadd.f32 %v1200, %v2915
      %v2917 = vpop.f32.mrb[0].mxu0
      %2918 = vmatprep.mubr.f32.mxu0 0.0
      %2919 = vmatmul.mubr.f32.gmra.mrb[0].mxu0 %v2739
      %v2920 = vpop.f32.mrb[0].mxu0
      %v2921 = vadd.f32 %v1201, %v2920
      %v2922 = vpop.f32.mrb[0].mxu0
      %2923 = vmatprep.mubr.f32.mxu0 0.0
      %2924 = vmatmul.mubr.f32.gmra.mrb[0].mxu0 %v2742
      %v2925 = vpop.f32.mrb[0].mxu0
      %v2926 = vadd.f32 %v1202, %v2925
      %v2927 = vpop.f32.mrb[0].mxu0
      %2928 = vmatprep.mubr.f32.mxu0 0.0
      %2929 = vmatmul.mubr.f32.gmra.mrb[0].mxu0 %v2745
      %v2930 = vpop.f32.mrb[0].mxu0
      %v2931 = vadd.f32 %v1203, %v2930
      %v2932 = vpop.f32.mrb[0].mxu0
      %2933 = vmatprep.mubr.f32.mxu0 0.0
      %2934 = vmatmul.mubr.f32.gmra.mrb[0].mxu0 %v2748
      %v2935 = vpop.f32.mrb[0].mxu0
      %v2936 = vadd.f32 %v1204, %v2935
      %v2937 = vpop.f32.mrb[0].mxu0
      %2938 = vmatprep.mubr.f32.mxu0 0.0
      %2939 = vmatmul.mubr.f32.gmra.mrb[0].mxu0 %v2751
      %v2940 = vpop.f32.mrb[0].mxu0
      %v2941 = vadd.f32 %v1205, %v2940
      %v2942 = vpop.f32.mrb[0].mxu0
      %2943 = vmatprep.mubr.f32.mxu0 0.0
      %2944 = vmatmul.mubr.f32.gmra.mrb[0].mxu0 %v2754
      %v2945 = vpop.f32.mrb[0].mxu0
      %v2946 = vadd.f32 %v1206, %v2945
      %v2947 = vpop.f32.mrb[0].mxu0
      %2948 = vdwg.mxu0
      %2949 = vmax.xlane.f32.xlu0 %v2871
      %v2950 = vpop.xlane.xlu0 %2949
      %2951 = vmax.xlane.f32.xlu0 %v2876
      %v2952 = vpop.xlane.xlu0 %2951
      %2953 = vmax.xlane.f32.xlu0 %v2881
      %v2954 = vpop.xlane.xlu0 %2953
      %2955 = vmax.xlane.f32.xlu0 %v2886
      %v2956 = vpop.xlane.xlu0 %2955
      %2957 = vmax.xlane.f32.xlu0 %v2891
      %v2958 = vpop.xlane.xlu0 %2957
      %2959 = vmax.xlane.f32.xlu0 %v2896
      %v2960 = vpop.xlane.xlu0 %2959
      %2961 = vmax.xlane.f32.xlu0 %v2901
      %v2962 = vpop.xlane.xlu0 %2961
      %2963 = vmax.xlane.f32.xlu0 %v2906
      %v2964 = vpop.xlane.xlu0 %2963
      %2965 = vmax.xlane.f32.xlu0 %v2911
      %v2966 = vpop.xlane.xlu0 %2965
      %2967 = vmax.xlane.f32.xlu0 %v2916
      %v2968 = vpop.xlane.xlu0 %2967
      %2969 = vmax.xlane.f32.xlu0 %v2921
      %v2970 = vpop.xlane.xlu0 %2969
      %2971 = vmax.xlane.f32.xlu0 %v2926
      %v2972 = vpop.xlane.xlu0 %2971
      %2973 = vmax.xlane.f32.xlu0 %v2931
      %v2974 = vpop.xlane.xlu0 %2973
      %2975 = vmax.xlane.f32.xlu0 %v2936
      %v2976 = vpop.xlane.xlu0 %2975
      %2977 = vmax.xlane.f32.xlu0 %v2941
      %v2978 = vpop.xlane.xlu0 %2977
      %2979 = vmax.xlane.f32.xlu0 %v2946
      %v2980 = vpop.xlane.xlu0 %2979
      %v2981 = vsub.f32 %v2871, %v2950
      %v2982 = vsub.f32 %v2876, %v2952
      %v2983 = vsub.f32 %v2881, %v2954
      %v2984 = vsub.f32 %v2886, %v2956
      %v2985 = vsub.f32 %v2891, %v2958
      %v2986 = vsub.f32 %v2896, %v2960
      %v2987 = vsub.f32 %v2901, %v2962
      %v2988 = vsub.f32 %v2906, %v2964
      %v2989 = vsub.f32 %v2911, %v2966
      %v2990 = vsub.f32 %v2916, %v2968
      %v2991 = vsub.f32 %v2921, %v2970
      %v2992 = vsub.f32 %v2926, %v2972
      %v2993 = vsub.f32 %v2931, %v2974
      %v2994 = vsub.f32 %v2936, %v2976
      %v2995 = vsub.f32 %v2941, %v2978
      %v2996 = vsub.f32 %v2946, %v2980
      %v2997 = vmul.f32 %v2981, 1.442695
      %v2998 = vpow.pop %v2997
      %v2999 = vmul.f32 %v2982, 1.442695
      %v3000 = vpow.pop %v2999
      %v3001 = vmul.f32 %v2983, 1.442695
      %v3002 = vpow.pop %v3001
      %v3003 = vmul.f32 %v2984, 1.442695
      %v3004 = vpow.pop %v3003
      %v3005 = vmul.f32 %v2985, 1.442695
      %v3006 = vpow.pop %v3005
      %v3007 = vmul.f32 %v2986, 1.442695
      %v3008 = vpow.pop %v3007
      %v3009 = vmul.f32 %v2987, 1.442695
      %v3010 = vpow.pop %v3009
      %v3011 = vmul.f32 %v2988, 1.442695
      %v3012 = vpow.pop %v3011
      %v3013 = vmul.f32 %v2989, 1.442695
      %v3014 = vpow.pop %v3013
      %v3015 = vmul.f32 %v2990, 1.442695
      %v3016 = vpow.pop %v3015
      %v3017 = vmul.f32 %v2991, 1.442695
      %v3018 = vpow.pop %v3017
      %v3019 = vmul.f32 %v2992, 1.442695
      %v3020 = vpow.pop %v3019
      %v3021 = vmul.f32 %v2993, 1.442695
      %v3022 = vpow.pop %v3021
      %v3023 = vmul.f32 %v2994, 1.442695
      %v3024 = vpow.pop %v3023
      %v3025 = vmul.f32 %v2995, 1.442695
      %v3026 = vpow.pop %v3025
      %v3027 = vmul.f32 %v2996, 1.442695
      %v3028 = vpow.pop %v3027
      %3029 = vadd.xlane.f32.xlu0 %v2998
      %v3030 = vpop.xlane.xlu0 %3029
      %3031 = vadd.xlane.f32.xlu0 %v3000
      %v3032 = vpop.xlane.xlu0 %3031
      %3033 = vadd.xlane.f32.xlu0 %v3002
      %v3034 = vpop.xlane.xlu0 %3033
      %3035 = vadd.xlane.f32.xlu0 %v3004
      %v3036 = vpop.xlane.xlu0 %3035
      %3037 = vadd.xlane.f32.xlu0 %v3006
      %v3038 = vpop.xlane.xlu0 %3037
      %3039 = vadd.xlane.f32.xlu0 %v3008
      %v3040 = vpop.xlane.xlu0 %3039
      %3041 = vadd.xlane.f32.xlu0 %v3010
      %v3042 = vpop.xlane.xlu0 %3041
      %3043 = vadd.xlane.f32.xlu0 %v3012
      %v3044 = vpop.xlane.xlu0 %3043
      %3045 = vadd.xlane.f32.xlu0 %v3014
      %v3046 = vpop.xlane.xlu0 %3045
      %3047 = vadd.xlane.f32.xlu0 %v3016
      %v3048 = vpop.xlane.xlu0 %3047
      %3049 = vadd.xlane.f32.xlu0 %v3018
      %v3050 = vpop.xlane.xlu0 %3049
      %3051 = vadd.xlane.f32.xlu0 %v3020
      %v3052 = vpop.xlane.xlu0 %3051
      %3053 = vadd.xlane.f32.xlu0 %v3022
      %v3054 = vpop.xlane.xlu0 %3053
      %3055 = vadd.xlane.f32.xlu0 %v3024
      %v3056 = vpop.xlane.xlu0 %3055
      %3057 = vadd.xlane.f32.xlu0 %v3026
      %v3058 = vpop.xlane.xlu0 %3057
      %3059 = vadd.xlane.f32.xlu0 %v3028
      %v3060 = vpop.xlane.xlu0 %3059
      %v3061 = vrcp.pop %v3030
      %v3062 = vrcp.pop %v3032
      %v3063 = vrcp.pop %v3034
      %v3064 = vrcp.pop %v3036
      %v3065 = vrcp.pop %v3038
      %v3066 = vrcp.pop %v3040
      %v3067 = vrcp.pop %v3042
      %v3068 = vrcp.pop %v3044
      %v3069 = vrcp.pop %v3046
      %v3070 = vrcp.pop %v3048
      %v3071 = vrcp.pop %v3050
      %v3072 = vrcp.pop %v3052
      %v3073 = vrcp.pop %v3054
      %v3074 = vrcp.pop %v3056
      %v3075 = vrcp.pop %v3058
      %v3076 = vrcp.pop %v3060
      %v3077 = vmul.f32 %v2998, %v3061
      %v3078 = vmul.f32 %v3000, %v3062
      %v3079 = vmul.f32 %v3002, %v3063
      %v3080 = vmul.f32 %v3004, %v3064
      %v3081 = vmul.f32 %v3006, %v3065
      %v3082 = vmul.f32 %v3008, %v3066
      %v3083 = vmul.f32 %v3010, %v3067
      %v3084 = vmul.f32 %v3012, %v3068
      %v3085 = vmul.f32 %v3014, %v3069
      %v3086 = vmul.f32 %v3016, %v3070
      %v3087 = vmul.f32 %v3018, %v3071
      %v3088 = vmul.f32 %v3020, %v3072
      %v3089 = vmul.f32 %v3022, %v3073
      %v3090 = vmul.f32 %v3024, %v3074
      %v3091 = vmul.f32 %v3026, %v3075
      %v3092 = vmul.f32 %v3028, %v3076
      %3093 = vmatprep.subr.mxu0 0.0
      %3094 = vmatpush1.msra.mxu0 %v2630
      %3095 = vmatprep.subr.mxu0 0.0
      %3096 = vmatpush1.msra.mxu0 %v2635
      %3097 = vmatprep.subr.mxu0 0.0
      %3098 = vmatpush1.msra.mxu0 %v2640
      %3099 = vmatprep.subr.mxu0 0.0
      %3100 = vmatpush1.msra.mxu0 %v2645
      %3101 = vmatprep.subr.mxu0 0.0
      %3102 = vmatpush1.msra.mxu0 %v2650
      %3103 = vmatprep.subr.mxu0 0.0
      %3104 = vmatpush1.msra.mxu0 %v2655
      %3105 = vmatprep.subr.mxu0 0.0
      %3106 = vmatpush1.msra.mxu0 %v2660
      %3107 = vmatprep.subr.mxu0 0.0
      %3108 = vmatpush1.msra.mxu0 %v2665
      %3109 = vmatprep.subr.mxu0 0.0
      %3110 = vmatpush1.msra.mxu0 %v2670
      %3111 = vmatprep.subr.mxu0 0.0
      %3112 = vmatpush1.msra.mxu0 %v2675
      %3113 = vmatprep.subr.mxu0 0.0
      %3114 = vmatpush1.msra.mxu0 %v2680
      %3115 = vmatprep.subr.mxu0 0.0
      %3116 = vmatpush1.msra.mxu0 %v2685
      %3117 = vmatprep.subr.mxu0 0.0
      %3118 = vmatpush1.msra.mxu0 %v2690
      %3119 = vmatprep.subr.mxu0 0.0
      %3120 = vmatpush1.msra.mxu0 %v2695
      %3121 = vmatprep.subr.mxu0 0.0
      %3122 = vmatpush1.msra.mxu0 %v2700
      %3123 = vmatprep.subr.mxu0 0.0
      %3124 = vmatpush1.msra.mxu0 %v2705
      %3125 = vmatprep.subr.mxu0 0.0
      %3126 = vmatpush1.msra.mxu0 0.0
      %3127 = vmatprep.subr.mxu0 0.0
      %3128 = vmatpush1.msra.mxu0 0.0
      %3129 = vmatprep.subr.mxu0 0.0
      %3130 = vmatpush1.msra.mxu0 0.0
      %3131 = vmatprep.subr.mxu0 0.0
      %3132 = vmatpush1.msra.mxu0 0.0
      %3133 = vmatprep.subr.mxu0 0.0
      %3134 = vmatpush1.msra.mxu0 0.0
      %3135 = vmatprep.subr.mxu0 0.0
      %3136 = vmatpush1.msra.mxu0 0.0
      %3137 = vmatprep.subr.mxu0 0.0
      %3138 = vmatpush1.msra.mxu0 0.0
      %3139 = vmatprep.subr.mxu0 0.0
      %3140 = vmatpush1.msra.mxu0 0.0
      %3141 = vmatprep.subr.mxu0 0.0
      %3142 = vmatpush1.msra.mxu0 0.0
      %3143 = vmatprep.subr.mxu0 0.0
      %3144 = vmatpush1.msra.mxu0 0.0
      %3145 = vmatprep.subr.mxu0 0.0
      %3146 = vmatpush1.msra.mxu0 0.0
      %3147 = vmatprep.subr.mxu0 0.0
      %3148 = vmatpush1.msra.mxu0 0.0
      %3149 = vmatprep.subr.mxu0 0.0
      %3150 = vmatpush1.msra.mxu0 0.0
      %3151 = vmatprep.subr.mxu0 0.0
      %3152 = vmatpush1.msra.mxu0 0.0
      %3153 = vmatprep.subr.mxu0 0.0
      %3154 = vmatpush1.msra.mxu0 0.0
      %3155 = vmatprep.subr.mxu0 0.0
      %3156 = vmatpush1.msra.mxu0 0.0
      %3157 = vmatprep.mubr.f32.mxu0 0.0
      %3158 = vmatmul.mubr.f32.gmra.mrb[0].mxu0 %v3077
      %v3159 = vpop.f32.mrb[0].mxu0
      %v3160 = vadd.f32 0.0, %v3159
      %v3161 = vpop.f32.mrb[0].mxu0
      %3162 = vmatprep.mubr.f32.mxu0 0.0
      %3163 = vmatmul.mubr.f32.gmra.mrb[0].mxu0 %v3078
      %v3164 = vpop.f32.mrb[0].mxu0
      %v3165 = vadd.f32 0.0, %v3164
      %v3166 = vpop.f32.mrb[0].mxu0
      %3167 = vmatprep.mubr.f32.mxu0 0.0
      %3168 = vmatmul.mubr.f32.gmra.mrb[0].mxu0 %v3079
      %v3169 = vpop.f32.mrb[0].mxu0
      %v3170 = vadd.f32 0.0, %v3169
      %v3171 = vpop.f32.mrb[0].mxu0
      %3172 = vmatprep.mubr.f32.mxu0 0.0
      %3173 = vmatmul.mubr.f32.gmra.mrb[0].mxu0 %v3080
      %v3174 = vpop.f32.mrb[0].mxu0
      %v3175 = vadd.f32 0.0, %v3174
      %v3176 = vpop.f32.mrb[0].mxu0
      %3177 = vmatprep.mubr.f32.mxu0 0.0
      %3178 = vmatmul.mubr.f32.gmra.mrb[0].mxu0 %v3081
      %v3179 = vpop.f32.mrb[0].mxu0
      %v3180 = vadd.f32 0.0, %v3179
      %v3181 = vpop.f32.mrb[0].mxu0
      %3182 = vmatprep.mubr.f32.mxu0 0.0
      %3183 = vmatmul.mubr.f32.gmra.mrb[0].mxu0 %v3082
      %v3184 = vpop.f32.mrb[0].mxu0
      %v3185 = vadd.f32 0.0, %v3184
      %v3186 = vpop.f32.mrb[0].mxu0
      %3187 = vmatprep.mubr.f32.mxu0 0.0
      %3188 = vmatmul.mubr.f32.gmra.mrb[0].mxu0 %v3083
      %v3189 = vpop.f32.mrb[0].mxu0
      %v3190 = vadd.f32 0.0, %v3189
      %v3191 = vpop.f32.mrb[0].mxu0
      %3192 = vmatprep.mubr.f32.mxu0 0.0
      %3193 = vmatmul.mubr.f32.gmra.mrb[0].mxu0 %v3084
      %v3194 = vpop.f32.mrb[0].mxu0
      %v3195 = vadd.f32 0.0, %v3194
      %v3196 = vpop.f32.mrb[0].mxu0
      %3197 = vmatprep.mubr.f32.mxu0 0.0
      %3198 = vmatmul.mubr.f32.gmra.mrb[0].mxu0 %v3085
      %v3199 = vpop.f32.mrb[0].mxu0
      %v3200 = vadd.f32 0.0, %v3199
      %v3201 = vpop.f32.mrb[0].mxu0
      %3202 = vmatprep.mubr.f32.mxu0 0.0
      %3203 = vmatmul.mubr.f32.gmra.mrb[0].mxu0 %v3086
      %v3204 = vpop.f32.mrb[0].mxu0
      %v3205 = vadd.f32 0.0, %v3204
      %v3206 = vpop.f32.mrb[0].mxu0
      %3207 = vmatprep.mubr.f32.mxu0 0.0
      %3208 = vmatmul.mubr.f32.gmra.mrb[0].mxu0 %v3087
      %v3209 = vpop.f32.mrb[0].mxu0
      %v3210 = vadd.f32 0.0, %v3209
      %v3211 = vpop.f32.mrb[0].mxu0
      %3212 = vmatprep.mubr.f32.mxu0 0.0
      %3213 = vmatmul.mubr.f32.gmra.mrb[0].mxu0 %v3088
      %v3214 = vpop.f32.mrb[0].mxu0
      %v3215 = vadd.f32 0.0, %v3214
      %v3216 = vpop.f32.mrb[0].mxu0
      %3217 = vmatprep.mubr.f32.mxu0 0.0
      %3218 = vmatmul.mubr.f32.gmra.mrb[0].mxu0 %v3089
      %v3219 = vpop.f32.mrb[0].mxu0
      %v3220 = vadd.f32 0.0, %v3219
      %v3221 = vpop.f32.mrb[0].mxu0
      %3222 = vmatprep.mubr.f32.mxu0 0.0
      %3223 = vmatmul.mubr.f32.gmra.mrb[0].mxu0 %v3090
      %v3224 = vpop.f32.mrb[0].mxu0
      %v3225 = vadd.f32 0.0, %v3224
      %v3226 = vpop.f32.mrb[0].mxu0
      %3227 = vmatprep.mubr.f32.mxu0 0.0
      %3228 = vmatmul.mubr.f32.gmra.mrb[0].mxu0 %v3091
      %v3229 = vpop.f32.mrb[0].mxu0
      %v3230 = vadd.f32 0.0, %v3229
      %v3231 = vpop.f32.mrb[0].mxu0
      %3232 = vmatprep.mubr.f32.mxu0 0.0
      %3233 = vmatmul.mubr.f32.gmra.mrb[0].mxu0 %v3092
      %v3234 = vpop.f32.mrb[0].mxu0
      %v3235 = vadd.f32 0.0, %v3234
      %v3236 = vpop.f32.mrb[0].mxu0
      %3237 = vdwg.mxu0
      %v3238 = vld [vmem:[%s6 + $0x10] sm:$0xff]
      %v3239 = vld [vmem:[%s6 + $0x18] sm:$0xff]
      %v3241 = vsel %vm1715, %v3160, 0
      %v3244 = vsel %vm1715, %v3165, 0
      %v3247 = vsel %vm1715, %v3170, 0
      %v3250 = vsel %vm1715, %v3175, 0
      %v3253 = vsel %vm1715, %v3180, 0
      %v3256 = vsel %vm1715, %v3185, 0
      %v3259 = vsel %vm1715, %v3190, 0
      %v3262 = vsel %vm1715, %v3195, 0
      %v3265 = vsel %vm1715, %v3200, 0
      %v3268 = vsel %vm1715, %v3205, 0
      %v3271 = vsel %vm1715, %v3210, 0
      %v3274 = vsel %vm1715, %v3215, 0
      %v3277 = vsel %vm1715, %v3220, 0
      %v3280 = vsel %vm1715, %v3225, 0
      %v3283 = vsel %vm1715, %v3230, 0
      %v3286 = vsel %vm1715, %v3235, 0
      %3288 = vmatprep.subr.mxu0 0.0
      %3289 = vmatpush1.msra.mxu0 %v3238
      %3290 = vmatprep.subr.mxu0 0.0
      %3291 = vmatpush1.msra.mxu0 %v3239
      %3292 = vmatprep.subr.mxu0 0.0
      %3293 = vmatpush1.msra.mxu0 0.0
      %3294 = vmatprep.subr.mxu0 0.0
      %3295 = vmatpush1.msra.mxu0 0.0
      %3296 = vmatprep.subr.mxu0 0.0
      %3297 = vmatpush1.msra.mxu0 0.0
      %3298 = vmatprep.subr.mxu0 0.0
      %3299 = vmatpush1.msra.mxu0 0.0
      %3300 = vmatprep.subr.mxu0 0.0
      %3301 = vmatpush1.msra.mxu0 0.0
      %3302 = vmatprep.subr.mxu0 0.0
      %3303 = vmatpush1.msra.mxu0 0.0
      %3304 = vmatprep.subr.mxu0 0.0
      %3305 = vmatpush1.msra.mxu0 0.0
      %3306 = vmatprep.subr.mxu0 0.0
      %3307 = vmatpush1.msra.mxu0 0.0
      %3308 = vmatprep.subr.mxu0 0.0
      %3309 = vmatpush1.msra.mxu0 0.0
      %3310 = vmatprep.subr.mxu0 0.0
      %3311 = vmatpush1.msra.mxu0 0.0
      %3312 = vmatprep.subr.mxu0 0.0
      %3313 = vmatpush1.msra.mxu0 0.0
      %3314 = vmatprep.subr.mxu0 0.0
      %3315 = vmatpush1.msra.mxu0 0.0
      %3316 = vmatprep.subr.mxu0 0.0
      %3317 = vmatpush1.msra.mxu0 0.0
      %3318 = vmatprep.subr.mxu0 0.0
      %3319 = vmatpush1.msra.mxu0 0.0
      %3320 = vmatprep.subr.mxu0 0.0
      %3321 = vmatpush1.msra.mxu0 0.0
      %3322 = vmatprep.subr.mxu0 0.0
      %3323 = vmatpush1.msra.mxu0 0.0
      %3324 = vmatprep.subr.mxu0 0.0
      %3325 = vmatpush1.msra.mxu0 0.0
      %3326 = vmatprep.subr.mxu0 0.0
      %3327 = vmatpush1.msra.mxu0 0.0
      %3328 = vmatprep.subr.mxu0 0.0
      %3329 = vmatpush1.msra.mxu0 0.0
      %3330 = vmatprep.subr.mxu0 0.0
      %3331 = vmatpush1.msra.mxu0 0.0
      %3332 = vmatprep.subr.mxu0 0.0
      %3333 = vmatpush1.msra.mxu0 0.0
      %3334 = vmatprep.subr.mxu0 0.0
      %3335 = vmatpush1.msra.mxu0 0.0
      %3336 = vmatprep.subr.mxu0 0.0
      %3337 = vmatpush1.msra.mxu0 0.0
      %3338 = vmatprep.subr.mxu0 0.0
      %3339 = vmatpush1.msra.mxu0 0.0
      %3340 = vmatprep.subr.mxu0 0.0
      %3341 = vmatpush1.msra.mxu0 0.0
      %3342 = vmatprep.subr.mxu0 0.0
      %3343 = vmatpush1.msra.mxu0 0.0
      %3344 = vmatprep.subr.mxu0 0.0
      %3345 = vmatpush1.msra.mxu0 0.0
      %3346 = vmatprep.subr.mxu0 0.0
      %3347 = vmatpush1.msra.mxu0 0.0
      %3348 = vmatprep.subr.mxu0 0.0
      %3349 = vmatpush1.msra.mxu0 0.0
      %3350 = vmatprep.subr.mxu0 0.0
      %3351 = vmatpush1.msra.mxu0 0.0
      %3352 = vmatprep.mubr.f32.mxu0 0.0
      %3353 = vmatmul.mubr.f32.gmra.mrb[0].mxu0 %v3241
      %v3354 = vpop.f32.mrb[0].mxu0
      %v3355 = vadd.f32 0.0, %v3354
      %v3356 = vpop.f32.mrb[0].mxu0
      %3357 = vmatprep.mubr.f32.mxu0 0.0
      %3358 = vmatmul.mubr.f32.gmra.mrb[0].mxu0 %v3244
      %v3359 = vpop.f32.mrb[0].mxu0
      %v3360 = vadd.f32 0.0, %v3359
      %v3361 = vpop.f32.mrb[0].mxu0
      %3362 = vmatprep.mubr.f32.mxu0 0.0
      %3363 = vmatmul.mubr.f32.gmra.mrb[0].mxu0 %v3247
      %v3364 = vpop.f32.mrb[0].mxu0
      %v3365 = vadd.f32 0.0, %v3364
      %v3366 = vpop.f32.mrb[0].mxu0
      %3367 = vmatprep.mubr.f32.mxu0 0.0
      %3368 = vmatmul.mubr.f32.gmra.mrb[0].mxu0 %v3250
      %v3369 = vpop.f32.mrb[0].mxu0
      %v3370 = vadd.f32 0.0, %v3369
      %v3371 = vpop.f32.mrb[0].mxu0
      %3372 = vmatprep.mubr.f32.mxu0 0.0
      %3373 = vmatmul.mubr.f32.gmra.mrb[0].mxu0 %v3253
      %v3374 = vpop.f32.mrb[0].mxu0
      %v3375 = vadd.f32 0.0, %v3374
      %v3376 = vpop.f32.mrb[0].mxu0
      %3377 = vmatprep.mubr.f32.mxu0 0.0
      %3378 = vmatmul.mubr.f32.gmra.mrb[0].mxu0 %v3256
      %v3379 = vpop.f32.mrb[0].mxu0
      %v3380 = vadd.f32 0.0, %v3379
      %v3381 = vpop.f32.mrb[0].mxu0
      %3382 = vmatprep.mubr.f32.mxu0 0.0
      %3383 = vmatmul.mubr.f32.gmra.mrb[0].mxu0 %v3259
      %v3384 = vpop.f32.mrb[0].mxu0
      %v3385 = vadd.f32 0.0, %v3384
      %v3386 = vpop.f32.mrb[0].mxu0
      %3387 = vmatprep.mubr.f32.mxu0 0.0
      %3388 = vmatmul.mubr.f32.gmra.mrb[0].mxu0 %v3262
      %v3389 = vpop.f32.mrb[0].mxu0
      %v3390 = vadd.f32 0.0, %v3389
      %v3391 = vpop.f32.mrb[0].mxu0
      %3392 = vmatprep.mubr.f32.mxu0 0.0
      %3393 = vmatmul.mubr.f32.gmra.mrb[0].mxu0 %v3265
      %v3394 = vpop.f32.mrb[0].mxu0
      %v3395 = vadd.f32 0.0, %v3394
      %v3396 = vpop.f32.mrb[0].mxu0
      %3397 = vmatprep.mubr.f32.mxu0 0.0
      %3398 = vmatmul.mubr.f32.gmra.mrb[0].mxu0 %v3268
      %v3399 = vpop.f32.mrb[0].mxu0
      %v3400 = vadd.f32 0.0, %v3399
      %v3401 = vpop.f32.mrb[0].mxu0
      %3402 = vmatprep.mubr.f32.mxu0 0.0
      %3403 = vmatmul.mubr.f32.gmra.mrb[0].mxu0 %v3271
      %v3404 = vpop.f32.mrb[0].mxu0
      %v3405 = vadd.f32 0.0, %v3404
      %v3406 = vpop.f32.mrb[0].mxu0
      %3407 = vmatprep.mubr.f32.mxu0 0.0
      %3408 = vmatmul.mubr.f32.gmra.mrb[0].mxu0 %v3274
      %v3409 = vpop.f32.mrb[0].mxu0
      %v3410 = vadd.f32 0.0, %v3409
      %v3411 = vpop.f32.mrb[0].mxu0
      %3412 = vmatprep.mubr.f32.mxu0 0.0
      %3413 = vmatmul.mubr.f32.gmra.mrb[0].mxu0 %v3277
      %v3414 = vpop.f32.mrb[0].mxu0
      %v3415 = vadd.f32 0.0, %v3414
      %v3416 = vpop.f32.mrb[0].mxu0
      %3417 = vmatprep.mubr.f32.mxu0 0.0
      %3418 = vmatmul.mubr.f32.gmra.mrb[0].mxu0 %v3280
      %v3419 = vpop.f32.mrb[0].mxu0
      %v3420 = vadd.f32 0.0, %v3419
      %v3421 = vpop.f32.mrb[0].mxu0
      %3422 = vmatprep.mubr.f32.mxu0 0.0
      %3423 = vmatmul.mubr.f32.gmra.mrb[0].mxu0 %v3283
      %v3424 = vpop.f32.mrb[0].mxu0
      %v3425 = vadd.f32 0.0, %v3424
      %v3426 = vpop.f32.mrb[0].mxu0
      %3427 = vmatprep.mubr.f32.mxu0 0.0
      %3428 = vmatmul.mubr.f32.gmra.mrb[0].mxu0 %v3286
      %v3429 = vpop.f32.mrb[0].mxu0
      %v3430 = vadd.f32 0.0, %v3429
      %v3431 = vpop.f32.mrb[0].mxu0
      %3432 = vdwg.mxu0
      %v3434 = vsel %vm1715, %v2168, 0
      %v3437 = vsel %vm1715, %v2173, 0
      %v3440 = vsel %vm1715, %v2178, 0
      %v3443 = vsel %vm1715, %v2183, 0
      %v3446 = vsel %vm1715, %v2188, 0
      %v3449 = vsel %vm1715, %v2193, 0
      %v3452 = vsel %vm1715, %v2198, 0
      %v3455 = vsel %vm1715, %v2203, 0
      %v3458 = vsel %vm1715, %v2208, 0
      %v3461 = vsel %vm1715, %v2213, 0
      %v3464 = vsel %vm1715, %v2218, 0
      %v3467 = vsel %vm1715, %v2223, 0
      %v3470 = vsel %vm1715, %v2228, 0
      %v3473 = vsel %vm1715, %v2233, 0
      %v3476 = vsel %vm1715, %v2238, 0
      %v3479 = vsel %vm1715, %v2243, 0
      %3481 = vmatprep.subr.mxu0 0.0
      %3482 = vmatpush1.msra.mxu0 %v2246
      %3483 = vmatprep.subr.mxu0 0.0
      %3484 = vmatpush1.msra.mxu0 %v2247
      %3485 = vmatprep.subr.mxu0 0.0
      %3486 = vmatpush1.msra.mxu0 0.0
      %3487 = vmatprep.subr.mxu0 0.0
      %3488 = vmatpush1.msra.mxu0 0.0
      %3489 = vmatprep.subr.mxu0 0.0
      %3490 = vmatpush1.msra.mxu0 0.0
      %3491 = vmatprep.subr.mxu0 0.0
      %3492 = vmatpush1.msra.mxu0 0.0
      %3493 = vmatprep.subr.mxu0 0.0
      %3494 = vmatpush1.msra.mxu0 0.0
      %3495 = vmatprep.subr.mxu0 0.0
      %3496 = vmatpush1.msra.mxu0 0.0
      %3497 = vmatprep.subr.mxu0 0.0
      %3498 = vmatpush1.msra.mxu0 0.0
      %3499 = vmatprep.subr.mxu0 0.0
      %3500 = vmatpush1.msra.mxu0 0.0
      %3501 = vmatprep.subr.mxu0 0.0
      %3502 = vmatpush1.msra.mxu0 0.0
      %3503 = vmatprep.subr.mxu0 0.0
      %3504 = vmatpush1.msra.mxu0 0.0
      %3505 = vmatprep.subr.mxu0 0.0
      %3506 = vmatpush1.msra.mxu0 0.0
      %3507 = vmatprep.subr.mxu0 0.0
      %3508 = vmatpush1.msra.mxu0 0.0
      %3509 = vmatprep.subr.mxu0 0.0
      %3510 = vmatpush1.msra.mxu0 0.0
      %3511 = vmatprep.subr.mxu0 0.0
      %3512 = vmatpush1.msra.mxu0 0.0
      %3513 = vmatprep.subr.mxu0 0.0
      %3514 = vmatpush1.msra.mxu0 0.0
      %3515 = vmatprep.subr.mxu0 0.0
      %3516 = vmatpush1.msra.mxu0 0.0
      %3517 = vmatprep.subr.mxu0 0.0
      %3518 = vmatpush1.msra.mxu0 0.0
      %3519 = vmatprep.subr.mxu0 0.0
      %3520 = vmatpush1.msra.mxu0 0.0
      %3521 = vmatprep.subr.mxu0 0.0
      %3522 = vmatpush1.msra.mxu0 0.0
      %3523 = vmatprep.subr.mxu0 0.0
      %3524 = vmatpush1.msra.mxu0 0.0
      %3525 = vmatprep.subr.mxu0 0.0
      %3526 = vmatpush1.msra.mxu0 0.0
      %3527 = vmatprep.subr.mxu0 0.0
      %3528 = vmatpush1.msra.mxu0 0.0
      %3529 = vmatprep.subr.mxu0 0.0
      %3530 = vmatpush1.msra.mxu0 0.0
      %3531 = vmatprep.subr.mxu0 0.0
      %3532 = vmatpush1.msra.mxu0 0.0
      %3533 = vmatprep.subr.mxu0 0.0
      %3534 = vmatpush1.msra.mxu0 0.0
      %3535 = vmatprep.subr.mxu0 0.0
      %3536 = vmatpush1.msra.mxu0 0.0
      %3537 = vmatprep.subr.mxu0 0.0
      %3538 = vmatpush1.msra.mxu0 0.0
      %3539 = vmatprep.subr.mxu0 0.0
      %3540 = vmatpush1.msra.mxu0 0.0
      %3541 = vmatprep.subr.mxu0 0.0
      %3542 = vmatpush1.msra.mxu0 0.0
      %3543 = vmatprep.subr.mxu0 0.0
      %3544 = vmatpush1.msra.mxu0 0.0
      %3545 = vmatprep.mubr.f32.mxu0 0.0
      %3546 = vmatmul.mubr.f32.gmra.mrb[0].mxu0 %v3434
      %v3547 = vpop.f32.mrb[0].mxu0
      %v3548 = vadd.f32 %v3355, %v3547
      %v3549 = vpop.f32.mrb[0].mxu0
      %3550 = vmatprep.mubr.f32.mxu0 0.0
      %3551 = vmatmul.mubr.f32.gmra.mrb[0].mxu0 %v3437
      %v3552 = vpop.f32.mrb[0].mxu0
      %v3553 = vadd.f32 %v3360, %v3552
      %v3554 = vpop.f32.mrb[0].mxu0
      %3555 = vmatprep.mubr.f32.mxu0 0.0
      %3556 = vmatmul.mubr.f32.gmra.mrb[0].mxu0 %v3440
      %v3557 = vpop.f32.mrb[0].mxu0
      %v3558 = vadd.f32 %v3365, %v3557
      %v3559 = vpop.f32.mrb[0].mxu0
      %3560 = vmatprep.mubr.f32.mxu0 0.0
      %3561 = vmatmul.mubr.f32.gmra.mrb[0].mxu0 %v3443
      %v3562 = vpop.f32.mrb[0].mxu0
      %v3563 = vadd.f32 %v3370, %v3562
      %v3564 = vpop.f32.mrb[0].mxu0
      %3565 = vmatprep.mubr.f32.mxu0 0.0
      %3566 = vmatmul.mubr.f32.gmra.mrb[0].mxu0 %v3446
      %v3567 = vpop.f32.mrb[0].mxu0
      %v3568 = vadd.f32 %v3375, %v3567
      %v3569 = vpop.f32.mrb[0].mxu0
      %3570 = vmatprep.mubr.f32.mxu0 0.0
      %3571 = vmatmul.mubr.f32.gmra.mrb[0].mxu0 %v3449
      %v3572 = vpop.f32.mrb[0].mxu0
      %v3573 = vadd.f32 %v3380, %v3572
      %v3574 = vpop.f32.mrb[0].mxu0
      %3575 = vmatprep.mubr.f32.mxu0 0.0
      %3576 = vmatmul.mubr.f32.gmra.mrb[0].mxu0 %v3452
      %v3577 = vpop.f32.mrb[0].mxu0
      %v3578 = vadd.f32 %v3385, %v3577
      %v3579 = vpop.f32.mrb[0].mxu0
      %3580 = vmatprep.mubr.f32.mxu0 0.0
      %3581 = vmatmul.mubr.f32.gmra.mrb[0].mxu0 %v3455
      %v3582 = vpop.f32.mrb[0].mxu0
      %v3583 = vadd.f32 %v3390, %v3582
      %v3584 = vpop.f32.mrb[0].mxu0
      %3585 = vmatprep.mubr.f32.mxu0 0.0
      %3586 = vmatmul.mubr.f32.gmra.mrb[0].mxu0 %v3458
      %v3587 = vpop.f32.mrb[0].mxu0
      %v3588 = vadd.f32 %v3395, %v3587
      %v3589 = vpop.f32.mrb[0].mxu0
      %3590 = vmatprep.mubr.f32.mxu0 0.0
      %3591 = vmatmul.mubr.f32.gmra.mrb[0].mxu0 %v3461
      %v3592 = vpop.f32.mrb[0].mxu0
      %v3593 = vadd.f32 %v3400, %v3592
      %v3594 = vpop.f32.mrb[0].mxu0
      %3595 = vmatprep.mubr.f32.mxu0 0.0
      %3596 = vmatmul.mubr.f32.gmra.mrb[0].mxu0 %v3464
      %v3597 = vpop.f32.mrb[0].mxu0
      %v3598 = vadd.f32 %v3405, %v3597
      %v3599 = vpop.f32.mrb[0].mxu0
      %3600 = vmatprep.mubr.f32.mxu0 0.0
      %3601 = vmatmul.mubr.f32.gmra.mrb[0].mxu0 %v3467
      %v3602 = vpop.f32.mrb[0].mxu0
      %v3603 = vadd.f32 %v3410, %v3602
      %v3604 = vpop.f32.mrb[0].mxu0
      %3605 = vmatprep.mubr.f32.mxu0 0.0
      %3606 = vmatmul.mubr.f32.gmra.mrb[0].mxu0 %v3470
      %v3607 = vpop.f32.mrb[0].mxu0
      %v3608 = vadd.f32 %v3415, %v3607
      %v3609 = vpop.f32.mrb[0].mxu0
      %3610 = vmatprep.mubr.f32.mxu0 0.0
      %3611 = vmatmul.mubr.f32.gmra.mrb[0].mxu0 %v3473
      %v3612 = vpop.f32.mrb[0].mxu0
      %v3613 = vadd.f32 %v3420, %v3612
      %v3614 = vpop.f32.mrb[0].mxu0
      %3615 = vmatprep.mubr.f32.mxu0 0.0
      %3616 = vmatmul.mubr.f32.gmra.mrb[0].mxu0 %v3476
      %v3617 = vpop.f32.mrb[0].mxu0
      %v3618 = vadd.f32 %v3425, %v3617
      %v3619 = vpop.f32.mrb[0].mxu0
      %3620 = vmatprep.mubr.f32.mxu0 0.0
      %3621 = vmatmul.mubr.f32.gmra.mrb[0].mxu0 %v3479
      %v3622 = vpop.f32.mrb[0].mxu0
      %v3623 = vadd.f32 %v3430, %v3622
      %v3624 = vpop.f32.mrb[0].mxu0
      %3625 = vdwg.mxu0
      %v3626 = vld [vmem:[%s4 + $0x2] sm:$0x1]
      %v3627 = vlaneseq
      %v3628 = vshrl.u32 %v3627, 7
      %v3629 = vsub.s32 0, %v3628
      %v3630 = vrot.slane %v3626, %v3629
      %v3631 = vadd.f32 %v3548, %v3630
      %v3632 = vadd.f32 %v3553, %v3630
      %v3633 = vadd.f32 %v3558, %v3630
      %v3634 = vadd.f32 %v3563, %v3630
      %v3635 = vadd.f32 %v3568, %v3630
      %v3636 = vadd.f32 %v3573, %v3630
      %v3637 = vadd.f32 %v3578, %v3630
      %v3638 = vadd.f32 %v3583, %v3630
      %v3639 = vadd.f32 %v3588, %v3630
      %v3640 = vadd.f32 %v3593, %v3630
      %v3641 = vadd.f32 %v3598, %v3630
      %v3642 = vadd.f32 %v3603, %v3630
      %v3643 = vadd.f32 %v3608, %v3630
      %v3644 = vadd.f32 %v3613, %v3630
      %v3645 = vadd.f32 %v3618, %v3630
      %v3646 = vadd.f32 %v3623, %v3630
      %v3647 = vadd.f32 %v1119, %v3631
      %v3648 = vadd.f32 %v1120, %v3632
      %v3649 = vadd.f32 %v1121, %v3633
      %v3650 = vadd.f32 %v1122, %v3634
      %v3651 = vadd.f32 %v1123, %v3635
      %v3652 = vadd.f32 %v1124, %v3636
      %v3653 = vadd.f32 %v1125, %v3637
      %v3654 = vadd.f32 %v1126, %v3638
      %v3655 = vadd.f32 %v1127, %v3639
      %v3656 = vadd.f32 %v1128, %v3640
      %v3657 = vadd.f32 %v1129, %v3641
      %v3658 = vadd.f32 %v1130, %v3642
      %v3659 = vadd.f32 %v1131, %v3643
      %v3660 = vadd.f32 %v1132, %v3644
      %v3661 = vadd.f32 %v1133, %v3645
      %v3662 = vadd.f32 %v1134, %v3646
      %v3663 = vld [vmem:[%s4 + $0x3] sm:$0x1]
      %v3664 = vld [vmem:[%s4 + $0x4] sm:$0x1]
      %v3665 = vsel %vm885, %v3647, 0.0
      %3666 = vadd.xlane.f32.xlu0 %v3665
      %v3667 = vpop.xlane.xlu0 %3666
      %v3668 = vsel %vm885, %v3648, 0.0
      %3669 = vadd.xlane.f32.xlu0 %v3668
      %v3670 = vpop.xlane.xlu0 %3669
      %v3671 = vsel %vm885, %v3649, 0.0
      %3672 = vadd.xlane.f32.xlu0 %v3671
      %v3673 = vpop.xlane.xlu0 %3672
      %v3674 = vsel %vm885, %v3650, 0.0
      %3675 = vadd.xlane.f32.xlu0 %v3674
      %v3676 = vpop.xlane.xlu0 %3675
      %v3677 = vsel %vm885, %v3651, 0.0
      %3678 = vadd.xlane.f32.xlu0 %v3677
      %v3679 = vpop.xlane.xlu0 %3678
      %v3680 = vsel %vm885, %v3652, 0.0
      %3681 = vadd.xlane.f32.xlu0 %v3680
      %v3682 = vpop.xlane.xlu0 %3681
      %v3683 = vsel %vm885, %v3653, 0.0
      %3684 = vadd.xlane.f32.xlu0 %v3683
      %v3685 = vpop.xlane.xlu0 %3684
      %v3686 = vsel %vm885, %v3654, 0.0
      %3687 = vadd.xlane.f32.xlu0 %v3686
      %v3688 = vpop.xlane.xlu0 %3687
      %v3689 = vsel %vm885, %v3655, 0.0
      %3690 = vadd.xlane.f32.xlu0 %v3689
      %v3691 = vpop.xlane.xlu0 %3690
      %v3692 = vsel %vm885, %v3656, 0.0
      %3693 = vadd.xlane.f32.xlu0 %v3692
      %v3694 = vpop.xlane.xlu0 %3693
      %v3695 = vsel %vm885, %v3657, 0.0
      %3696 = vadd.xlane.f32.xlu0 %v3695
      %v3697 = vpop.xlane.xlu0 %3696
      %v3698 = vsel %vm885, %v3658, 0.0
      %3699 = vadd.xlane.f32.xlu0 %v3698
      %v3700 = vpop.xlane.xlu0 %3699
      %v3701 = vsel %vm885, %v3659, 0.0
      %3702 = vadd.xlane.f32.xlu0 %v3701
      %v3703 = vpop.xlane.xlu0 %3702
      %v3704 = vsel %vm885, %v3660, 0.0
      %3705 = vadd.xlane.f32.xlu0 %v3704
      %v3706 = vpop.xlane.xlu0 %3705
      %v3707 = vsel %vm885, %v3661, 0.0
      %3708 = vadd.xlane.f32.xlu0 %v3707
      %v3709 = vpop.xlane.xlu0 %3708
      %v3710 = vsel %vm885, %v3662, 0.0
      %3711 = vadd.xlane.f32.xlu0 %v3710
      %v3712 = vpop.xlane.xlu0 %3711
      %v3713 = vmul.f32 %v3667, %v934
      %v3714 = vmul.f32 %v3670, %v934
      %v3715 = vmul.f32 %v3673, %v934
      %v3716 = vmul.f32 %v3676, %v934
      %v3717 = vmul.f32 %v3679, %v934
      %v3718 = vmul.f32 %v3682, %v934
      %v3719 = vmul.f32 %v3685, %v934
      %v3720 = vmul.f32 %v3688, %v934
      %v3721 = vmul.f32 %v3691, %v934
      %v3722 = vmul.f32 %v3694, %v934
      %v3723 = vmul.f32 %v3697, %v934
      %v3724 = vmul.f32 %v3700, %v934
      %v3725 = vmul.f32 %v3703, %v934
      %v3726 = vmul.f32 %v3706, %v934
      %v3727 = vmul.f32 %v3709, %v934
      %v3728 = vmul.f32 %v3712, %v934
      %v3729 = vsub.f32 %v3647, %v3713
      %v3730 = vsub.f32 %v3648, %v3714
      %v3731 = vsub.f32 %v3649, %v3715
      %v3732 = vsub.f32 %v3650, %v3716
      %v3733 = vsub.f32 %v3651, %v3717
      %v3734 = vsub.f32 %v3652, %v3718
      %v3735 = vsub.f32 %v3653, %v3719
      %v3736 = vsub.f32 %v3654, %v3720
      %v3737 = vsub.f32 %v3655, %v3721
      %v3738 = vsub.f32 %v3656, %v3722
      %v3739 = vsub.f32 %v3657, %v3723
      %v3740 = vsub.f32 %v3658, %v3724
      %v3741 = vsub.f32 %v3659, %v3725
      %v3742 = vsub.f32 %v3660, %v3726
      %v3743 = vsub.f32 %v3661, %v3727
      %v3744 = vsub.f32 %v3662, %v3728
      %v3745 = vmul.f32 %v3729, %v3729
      %v3746 = vmul.f32 %v3730, %v3730
      %v3747 = vmul.f32 %v3731, %v3731
      %v3748 = vmul.f32 %v3732, %v3732
      %v3749 = vmul.f32 %v3733, %v3733
      %v3750 = vmul.f32 %v3734, %v3734
      %v3751 = vmul.f32 %v3735, %v3735
      %v3752 = vmul.f32 %v3736, %v3736
      %v3753 = vmul.f32 %v3737, %v3737
      %v3754 = vmul.f32 %v3738, %v3738
      %v3755 = vmul.f32 %v3739, %v3739
      %v3756 = vmul.f32 %v3740, %v3740
      %v3757 = vmul.f32 %v3741, %v3741
      %v3758 = vmul.f32 %v3742, %v3742
      %v3759 = vmul.f32 %v3743, %v3743
      %v3760 = vmul.f32 %v3744, %v3744
      %v3761 = vsel %vm885, %v3745, 0.0
      %3762 = vadd.xlane.f32.xlu0 %v3761
      %v3763 = vpop.xlane.xlu0 %3762
      %v3764 = vsel %vm885, %v3746, 0.0
      %3765 = vadd.xlane.f32.xlu0 %v3764
      %v3766 = vpop.xlane.xlu0 %3765
      %v3767 = vsel %vm885, %v3747, 0.0
      %3768 = vadd.xlane.f32.xlu0 %v3767
      %v3769 = vpop.xlane.xlu0 %3768
      %v3770 = vsel %vm885, %v3748, 0.0
      %3771 = vadd.xlane.f32.xlu0 %v3770
      %v3772 = vpop.xlane.xlu0 %3771
      %v3773 = vsel %vm885, %v3749, 0.0
      %3774 = vadd.xlane.f32.xlu0 %v3773
      %v3775 = vpop.xlane.xlu0 %3774
      %v3776 = vsel %vm885, %v3750, 0.0
      %3777 = vadd.xlane.f32.xlu0 %v3776
      %v3778 = vpop.xlane.xlu0 %3777
      %v3779 = vsel %vm885, %v3751, 0.0
      %3780 = vadd.xlane.f32.xlu0 %v3779
      %v3781 = vpop.xlane.xlu0 %3780
      %v3782 = vsel %vm885, %v3752, 0.0
      %3783 = vadd.xlane.f32.xlu0 %v3782
      %v3784 = vpop.xlane.xlu0 %3783
      %v3785 = vsel %vm885, %v3753, 0.0
      %3786 = vadd.xlane.f32.xlu0 %v3785
      %v3787 = vpop.xlane.xlu0 %3786
      %v3788 = vsel %vm885, %v3754, 0.0
      %3789 = vadd.xlane.f32.xlu0 %v3788
      %v3790 = vpop.xlane.xlu0 %3789
      %v3791 = vsel %vm885, %v3755, 0.0
      %3792 = vadd.xlane.f32.xlu0 %v3791
      %v3793 = vpop.xlane.xlu0 %3792
      %v3794 = vsel %vm885, %v3756, 0.0
      %3795 = vadd.xlane.f32.xlu0 %v3794
      %v3796 = vpop.xlane.xlu0 %3795
      %v3797 = vsel %vm885, %v3757, 0.0
      %3798 = vadd.xlane.f32.xlu0 %v3797
      %v3799 = vpop.xlane.xlu0 %3798
      %v3800 = vsel %vm885, %v3758, 0.0
      %3801 = vadd.xlane.f32.xlu0 %v3800
      %v3802 = vpop.xlane.xlu0 %3801
      %v3803 = vsel %vm885, %v3759, 0.0
      %3804 = vadd.xlane.f32.xlu0 %v3803
      %v3805 = vpop.xlane.xlu0 %3804
      %v3806 = vsel %vm885, %v3760, 0.0
      %3807 = vadd.xlane.f32.xlu0 %v3806
      %v3808 = vpop.xlane.xlu0 %3807
      %v3809 = vmul.f32 %v3763, %v934
      %v3810 = vmul.f32 %v3766, %v934
      %v3811 = vmul.f32 %v3769, %v934
      %v3812 = vmul.f32 %v3772, %v934
      %v3813 = vmul.f32 %v3775, %v934
      %v3814 = vmul.f32 %v3778, %v934
      %v3815 = vmul.f32 %v3781, %v934
      %v3816 = vmul.f32 %v3784, %v934
      %v3817 = vmul.f32 %v3787, %v934
      %v3818 = vmul.f32 %v3790, %v934
      %v3819 = vmul.f32 %v3793, %v934
      %v3820 = vmul.f32 %v3796, %v934
      %v3821 = vmul.f32 %v3799, %v934
      %v3822 = vmul.f32 %v3802, %v934
      %v3823 = vmul.f32 %v3805, %v934
      %v3824 = vmul.f32 %v3808, %v934
      %v3825 = vadd.f32 %v3809, 1e-12
      %v3826 = vadd.f32 %v3810, 1e-12
      %v3827 = vadd.f32 %v3811, 1e-12
      %v3828 = vadd.f32 %v3812, 1e-12
      %v3829 = vadd.f32 %v3813, 1e-12
      %v3830 = vadd.f32 %v3814, 1e-12
      %v3831 = vadd.f32 %v3815, 1e-12
      %v3832 = vadd.f32 %v3816, 1e-12
      %v3833 = vadd.f32 %v3817, 1e-12
      %v3834 = vadd.f32 %v3818, 1e-12
      %v3835 = vadd.f32 %v3819, 1e-12
      %v3836 = vadd.f32 %v3820, 1e-12
      %v3837 = vadd.f32 %v3821, 1e-12
      %v3838 = vadd.f32 %v3822, 1e-12
      %v3839 = vadd.f32 %v3823, 1e-12
      %v3840 = vadd.f32 %v3824, 1e-12
      %v3841 = vrsqrt.pop %v3825
      %v3842 = vrsqrt.pop %v3826
      %v3843 = vrsqrt.pop %v3827
      %v3844 = vrsqrt.pop %v3828
      %v3845 = vrsqrt.pop %v3829
      %v3846 = vrsqrt.pop %v3830
      %v3847 = vrsqrt.pop %v3831
      %v3848 = vrsqrt.pop %v3832
      %v3849 = vrsqrt.pop %v3833
      %v3850 = vrsqrt.pop %v3834
      %v3851 = vrsqrt.pop %v3835
      %v3852 = vrsqrt.pop %v3836
      %v3853 = vrsqrt.pop %v3837
      %v3854 = vrsqrt.pop %v3838
      %v3855 = vrsqrt.pop %v3839
      %v3856 = vrsqrt.pop %v3840
      %v3857 = vmul.f32 %v3729, %v3841
      %v3858 = vmul.f32 %v3730, %v3842
      %v3859 = vmul.f32 %v3731, %v3843
      %v3860 = vmul.f32 %v3732, %v3844
      %v3861 = vmul.f32 %v3733, %v3845
      %v3862 = vmul.f32 %v3734, %v3846
      %v3863 = vmul.f32 %v3735, %v3847
      %v3864 = vmul.f32 %v3736, %v3848
      %v3865 = vmul.f32 %v3737, %v3849
      %v3866 = vmul.f32 %v3738, %v3850
      %v3867 = vmul.f32 %v3739, %v3851
      %v3868 = vmul.f32 %v3740, %v3852
      %v3869 = vmul.f32 %v3741, %v3853
      %v3870 = vmul.f32 %v3742, %v3854
      %v3871 = vmul.f32 %v3743, %v3855
      %v3872 = vmul.f32 %v3744, %v3856
      %v3873 = vlaneseq
      %v3874 = vshrl.u32 %v3873, 7
      %v3875 = vsub.s32 0, %v3874
      %v3876 = vrot.slane %v3663, %v3875
      %v3877 = vmul.f32 %v3857, %v3876
      %v3878 = vmul.f32 %v3858, %v3876
      %v3879 = vmul.f32 %v3859, %v3876
      %v3880 = vmul.f32 %v3860, %v3876
      %v3881 = vmul.f32 %v3861, %v3876
      %v3882 = vmul.f32 %v3862, %v3876
      %v3883 = vmul.f32 %v3863, %v3876
      %v3884 = vmul.f32 %v3864, %v3876
      %v3885 = vmul.f32 %v3865, %v3876
      %v3886 = vmul.f32 %v3866, %v3876
      %v3887 = vmul.f32 %v3867, %v3876
      %v3888 = vmul.f32 %v3868, %v3876
      %v3889 = vmul.f32 %v3869, %v3876
      %v3890 = vmul.f32 %v3870, %v3876
      %v3891 = vmul.f32 %v3871, %v3876
      %v3892 = vmul.f32 %v3872, %v3876
      %v3893 = vlaneseq
      %v3894 = vshrl.u32 %v3893, 7
      %v3895 = vsub.s32 0, %v3894
      %v3896 = vrot.slane %v3664, %v3895
      %v3897 = vadd.f32 %v3877, %v3896
      %v3898 = vadd.f32 %v3878, %v3896
      %v3899 = vadd.f32 %v3879, %v3896
      %v3900 = vadd.f32 %v3880, %v3896
      %v3901 = vadd.f32 %v3881, %v3896
      %v3902 = vadd.f32 %v3882, %v3896
      %v3903 = vadd.f32 %v3883, %v3896
      %v3904 = vadd.f32 %v3884, %v3896
      %v3905 = vadd.f32 %v3885, %v3896
      %v3906 = vadd.f32 %v3886, %v3896
      %v3907 = vadd.f32 %v3887, %v3896
      %v3908 = vadd.f32 %v3888, %v3896
      %v3909 = vadd.f32 %v3889, %v3896
      %v3910 = vadd.f32 %v3890, %v3896
      %v3911 = vadd.f32 %v3891, %v3896
      %v3912 = vadd.f32 %v3892, %v3896
      %v3913 = vmul.u32 %v375, 8
      %v3914 = vmul.u32 %v376, 8
      %vm3915 = vcmp.eq.s32.totalorder %v373, %v3913
      %vm3916 = vcmp.eq.s32.totalorder %v373, %v3914
      %v3917 = vsel %vm3915, 1, 0
      %v3918 = vsel %vm3916, 1, 0
      %v3919 = vcvt.s32.f32 %v3917
      %v3920 = vcvt.s32.f32 %v3918
      %3921 = vmatprep.subr.mxu0 0.0
      %3922 = vmatpush1.msra.mxu0 %v3897
      %3923 = vmatprep.subr.mxu0 0.0
      %3924 = vmatpush1.msra.mxu0 %v3898
      %3925 = vmatprep.subr.mxu0 0.0
      %3926 = vmatpush1.msra.mxu0 %v3899
      %3927 = vmatprep.subr.mxu0 0.0
      %3928 = vmatpush1.msra.mxu0 %v3900
      %3929 = vmatprep.subr.mxu0 0.0
      %3930 = vmatpush1.msra.mxu0 %v3901
      %3931 = vmatprep.subr.mxu0 0.0
      %3932 = vmatpush1.msra.mxu0 %v3902
      %3933 = vmatprep.subr.mxu0 0.0
      %3934 = vmatpush1.msra.mxu0 %v3903
      %3935 = vmatprep.subr.mxu0 0.0
      %3936 = vmatpush1.msra.mxu0 %v3904
      %3937 = vmatprep.subr.mxu0 0.0
      %3938 = vmatpush1.msra.mxu0 %v3905
      %3939 = vmatprep.subr.mxu0 0.0
      %3940 = vmatpush1.msra.mxu0 %v3906
      %3941 = vmatprep.subr.mxu0 0.0
      %3942 = vmatpush1.msra.mxu0 %v3907
      %3943 = vmatprep.subr.mxu0 0.0
      %3944 = vmatpush1.msra.mxu0 %v3908
      %3945 = vmatprep.subr.mxu0 0.0
      %3946 = vmatpush1.msra.mxu0 %v3909
      %3947 = vmatprep.subr.mxu0 0.0
      %3948 = vmatpush1.msra.mxu0 %v3910
      %3949 = vmatprep.subr.mxu0 0.0
      %3950 = vmatpush1.msra.mxu0 %v3911
      %3951 = vmatprep.subr.mxu0 0.0
      %3952 = vmatpush1.msra.mxu0 %v3912
      %3953 = vmatprep.subr.mxu0 0.0
      %3954 = vmatpush1.msra.mxu0 0.0
      %3955 = vmatprep.subr.mxu0 0.0
      %3956 = vmatpush1.msra.mxu0 0.0
      %3957 = vmatprep.subr.mxu0 0.0
      %3958 = vmatpush1.msra.mxu0 0.0
      %3959 = vmatprep.subr.mxu0 0.0
      %3960 = vmatpush1.msra.mxu0 0.0
      %3961 = vmatprep.subr.mxu0 0.0
      %3962 = vmatpush1.msra.mxu0 0.0
      %3963 = vmatprep.subr.mxu0 0.0
      %3964 = vmatpush1.msra.mxu0 0.0
      %3965 = vmatprep.subr.mxu0 0.0
      %3966 = vmatpush1.msra.mxu0 0.0
      %3967 = vmatprep.subr.mxu0 0.0
      %3968 = vmatpush1.msra.mxu0 0.0
      %3969 = vmatprep.subr.mxu0 0.0
      %3970 = vmatpush1.msra.mxu0 0.0
      %3971 = vmatprep.subr.mxu0 0.0
      %3972 = vmatpush1.msra.mxu0 0.0
      %3973 = vmatprep.subr.mxu0 0.0
      %3974 = vmatpush1.msra.mxu0 0.0
      %3975 = vmatprep.subr.mxu0 0.0
      %3976 = vmatpush1.msra.mxu0 0.0
      %3977 = vmatprep.subr.mxu0 0.0
      %3978 = vmatpush1.msra.mxu0 0.0
      %3979 = vmatprep.subr.mxu0 0.0
      %3980 = vmatpush1.msra.mxu0 0.0
      %3981 = vmatprep.subr.mxu0 0.0
      %3982 = vmatpush1.msra.mxu0 0.0
      %3983 = vmatprep.subr.mxu0 0.0
      %3984 = vmatpush1.msra.mxu0 0.0
      %3985 = vmatprep.mubr.f32.mxu0 0.0
      %3986 = vmatmul.mubr.f32.gmra.mrb[0].mxu0 %v3919
      %v3987 = vpop.f32.mrb[0].mxu0
      %v3988 = vadd.f32 0.0, %v3987
      %v3989 = vpop.f32.mrb[0].mxu0
      %3990 = vmatprep.mubr.f32.mxu0 0.0
      %3991 = vmatmul.mubr.f32.gmra.mrb[0].mxu0 %v3920
      %v3992 = vpop.f32.mrb[0].mxu0
      %v3993 = vadd.f32 0.0, %v3992
      %v3994 = vpop.f32.mrb[0].mxu0
      %3995 = vdwg.mxu0
      %v3996 = vld [vmem:[%s7] sm:$0xff]
      %v3997 = vld [vmem:[%s7 + $0x8] sm:$0xff]
      %v3998 = vld [vmem:[%s7 + $0x10] sm:$0xff]
      %v3999 = vld [vmem:[%s7 + $0x18] sm:$0xff]
      %v4000 = vld [vmem:[%s7 + $0x20] sm:$0x1]
      %v4001 = vlaneseq
      %v4002 = vshrl.u32 %v4001, 7
      %v4003 = vsub.s32 0, %v4002
      %v4004 = vrot.slane %v4000, %v4003
      %v4006 = vsel %vm885, %v3988, 0
      %v4009 = vsel %vm885, %v3993, 0
      %4011 = vmatprep.subr.mxu0 0.0
      %4012 = vmatpush1.msra.mxu0 %v3996
      %4013 = vmatprep.subr.mxu0 0.0
      %4014 = vmatpush1.msra.mxu0 %v3997
      %4015 = vmatprep.subr.mxu0 0.0
      %4016 = vmatpush1.msra.mxu0 %v3998
      %4017 = vmatprep.subr.mxu0 0.0
      %4018 = vmatpush1.msra.mxu0 %v3999
      %4019 = vmatprep.subr.mxu0 0.0
      %4020 = vmatpush1.msra.mxu0 0.0
      %4021 = vmatprep.subr.mxu0 0.0
      %4022 = vmatpush1.msra.mxu0 0.0
      %4023 = vmatprep.subr.mxu0 0.0
      %4024 = vmatpush1.msra.mxu0 0.0
      %4025 = vmatprep.subr.mxu0 0.0
      %4026 = vmatpush1.msra.mxu0 0.0
      %4027 = vmatprep.subr.mxu0 0.0
      %4028 = vmatpush1.msra.mxu0 0.0
      %4029 = vmatprep.subr.mxu0 0.0
      %4030 = vmatpush1.msra.mxu0 0.0
      %4031 = vmatprep.subr.mxu0 0.0
      %4032 = vmatpush1.msra.mxu0 0.0
      %4033 = vmatprep.subr.mxu0 0.0
      %4034 = vmatpush1.msra.mxu0 0.0
      %4035 = vmatprep.subr.mxu0 0.0
      %4036 = vmatpush1.msra.mxu0 0.0
      %4037 = vmatprep.subr.mxu0 0.0
      %4038 = vmatpush1.msra.mxu0 0.0
      %4039 = vmatprep.subr.mxu0 0.0
      %4040 = vmatpush1.msra.mxu0 0.0
      %4041 = vmatprep.subr.mxu0 0.0
      %4042 = vmatpush1.msra.mxu0 0.0
      %4043 = vmatprep.subr.mxu0 0.0
      %4044 = vmatpush1.msra.mxu0 0.0
      %4045 = vmatprep.subr.mxu0 0.0
      %4046 = vmatpush1.msra.mxu0 0.0
      %4047 = vmatprep.subr.mxu0 0.0
      %4048 = vmatpush1.msra.mxu0 0.0
      %4049 = vmatprep.subr.mxu0 0.0
      %4050 = vmatpush1.msra.mxu0 0.0
      %4051 = vmatprep.subr.mxu0 0.0
      %4052 = vmatpush1.msra.mxu0 0.0
      %4053 = vmatprep.subr.mxu0 0.0
      %4054 = vmatpush1.msra.mxu0 0.0
      %4055 = vmatprep.subr.mxu0 0.0
      %4056 = vmatpush1.msra.mxu0 0.0
      %4057 = vmatprep.subr.mxu0 0.0
      %4058 = vmatpush1.msra.mxu0 0.0
      %4059 = vmatprep.subr.mxu0 0.0
      %4060 = vmatpush1.msra.mxu0 0.0
      %4061 = vmatprep.subr.mxu0 0.0
      %4062 = vmatpush1.msra.mxu0 0.0
      %4063 = vmatprep.subr.mxu0 0.0
      %4064 = vmatpush1.msra.mxu0 0.0
      %4065 = vmatprep.subr.mxu0 0.0
      %4066 = vmatpush1.msra.mxu0 0.0
      %4067 = vmatprep.subr.mxu0 0.0
      %4068 = vmatpush1.msra.mxu0 0.0
      %4069 = vmatprep.subr.mxu0 0.0
      %4070 = vmatpush1.msra.mxu0 0.0
      %4071 = vmatprep.subr.mxu0 0.0
      %4072 = vmatpush1.msra.mxu0 0.0
      %4073 = vmatprep.subr.mxu0 0.0
      %4074 = vmatpush1.msra.mxu0 0.0
      %4075 = vmatprep.mubr.f32.mxu0 0.0
      %4076 = vmatmul.mubr.f32.gmra.mrb[0].mxu0 %v4006
      %v4077 = vpop.f32.mrb[0].mxu0
      %v4078 = vadd.f32 %v4004, %v4077
      %v4079 = vpop.f32.mrb[0].mxu0
      %4080 = vmatprep.mubr.f32.mxu0 0.0
      %4081 = vmatmul.mubr.f32.gmra.mrb[0].mxu0 %v4009
      %v4082 = vpop.f32.mrb[0].mxu0
      %v4083 = vadd.f32 %v4004, %v4082
      %v4084 = vpop.f32.mrb[0].mxu0
      %4085 = vdwg.mxu0
      %v4086 = vmul.f32 %v4078, %v4078
      %v4087 = vmul.f32 %v4083, %v4083
      %v4088 = vmul.f32 %v4078, %v4086
      %v4089 = vmul.f32 %v4083, %v4087
      %v4090 = vmul.f32 %v4088, 0.044715
      %v4091 = vmul.f32 %v4089, 0.044715
      %v4092 = vadd.f32 %v4078, %v4090
      %v4093 = vadd.f32 %v4083, %v4091
      %v4094 = vmul.f32 %v4092, 0.7978846
      %v4095 = vmul.f32 %v4093, 0.7978846
      %v4096 = vtanh.pop %v4094
      %v4097 = vtanh.pop %v4095
      %v4098 = vadd.f32 %v4096, 1.0
      %v4099 = vadd.f32 %v4097, 1.0
      %v4100 = vmul.f32 %v4098, 0.5
      %v4101 = vmul.f32 %v4099, 0.5
      %v4102 = vmul.f32 %v4078, %v4100
      %v4103 = vmul.f32 %v4083, %v4101
      %v4104 = vld [vmem:[%s6 + $0x20] sm:$0xff]
      %v4105 = vld [vmem:[%s6 + $0x28] sm:$0xff]
      %v4106 = vld [vmem:[%s6 + $0x30] sm:$0xff]
      %v4107 = vld [vmem:[%s6 + $0x38] sm:$0xff]
      %v4108 = vld [vmem:[%s6 + $0x40] sm:$0xff]
      %v4109 = vld [vmem:[%s6 + $0x48] sm:$0xff]
      %v4110 = vld [vmem:[%s6 + $0x50] sm:$0xff]
      %v4111 = vld [vmem:[%s6 + $0x58] sm:$0xff]
      %v4112 = vld [vmem:[%s4 + $0x5] sm:$0x1]
      %v4113 = vlaneseq
      %v4114 = vshrl.u32 %v4113, 7
      %v4115 = vsub.s32 0, %v4114
      %v4116 = vrot.slane %v4112, %v4115
      %vm4117 = vcmask 523264
      %v4119 = vsel %vm4117, %v4102, 0
      %v4122 = vsel %vm4117, %v4103, 0
      %4124 = vmatprep.subr.mxu0 0.0
      %4125 = vmatpush1.msra.mxu0 %v4104
      %4126 = vmatprep.subr.mxu0 0.0
      %4127 = vmatpush1.msra.mxu0 %v4105
      %4128 = vmatprep.subr.mxu0 0.0
      %4129 = vmatpush1.msra.mxu0 %v4106
      %4130 = vmatprep.subr.mxu0 0.0
      %4131 = vmatpush1.msra.mxu0 %v4107
      %4132 = vmatprep.subr.mxu0 0.0
      %4133 = vmatpush1.msra.mxu0 %v4108
      %4134 = vmatprep.subr.mxu0 0.0
      %4135 = vmatpush1.msra.mxu0 %v4109
      %4136 = vmatprep.subr.mxu0 0.0
      %4137 = vmatpush1.msra.mxu0 %v4110
      %4138 = vmatprep.subr.mxu0 0.0
      %4139 = vmatpush1.msra.mxu0 %v4111
      %4140 = vmatprep.subr.mxu0 0.0
      %4141 = vmatpush1.msra.mxu0 0.0
      %4142 = vmatprep.subr.mxu0 0.0
      %4143 = vmatpush1.msra.mxu0 0.0
      %4144 = vmatprep.subr.mxu0 0.0
      %4145 = vmatpush1.msra.mxu0 0.0
      %4146 = vmatprep.subr.mxu0 0.0
      %4147 = vmatpush1.msra.mxu0 0.0
      %4148 = vmatprep.subr.mxu0 0.0
      %4149 = vmatpush1.msra.mxu0 0.0
      %4150 = vmatprep.subr.mxu0 0.0
      %4151 = vmatpush1.msra.mxu0 0.0
      %4152 = vmatprep.subr.mxu0 0.0
      %4153 = vmatpush1.msra.mxu0 0.0
      %4154 = vmatprep.subr.mxu0 0.0
      %4155 = vmatpush1.msra.mxu0 0.0
      %4156 = vmatprep.subr.mxu0 0.0
      %4157 = vmatpush1.msra.mxu0 0.0
      %4158 = vmatprep.subr.mxu0 0.0
      %4159 = vmatpush1.msra.mxu0 0.0
      %4160 = vmatprep.subr.mxu0 0.0
      %4161 = vmatpush1.msra.mxu0 0.0
      %4162 = vmatprep.subr.mxu0 0.0
      %4163 = vmatpush1.msra.mxu0 0.0
      %4164 = vmatprep.subr.mxu0 0.0
      %4165 = vmatpush1.msra.mxu0 0.0
      %4166 = vmatprep.subr.mxu0 0.0
      %4167 = vmatpush1.msra.mxu0 0.0
      %4168 = vmatprep.subr.mxu0 0.0
      %4169 = vmatpush1.msra.mxu0 0.0
      %4170 = vmatprep.subr.mxu0 0.0
      %4171 = vmatpush1.msra.mxu0 0.0
      %4172 = vmatprep.subr.mxu0 0.0
      %4173 = vmatpush1.msra.mxu0 0.0
      %4174 = vmatprep.subr.mxu0 0.0
      %4175 = vmatpush1.msra.mxu0 0.0
      %4176 = vmatprep.subr.mxu0 0.0
      %4177 = vmatpush1.msra.mxu0 0.0
      %4178 = vmatprep.subr.mxu0 0.0
      %4179 = vmatpush1.msra.mxu0 0.0
      %4180 = vmatprep.subr.mxu0 0.0
      %4181 = vmatpush1.msra.mxu0 0.0
      %4182 = vmatprep.subr.mxu0 0.0
      %4183 = vmatpush1.msra.mxu0 0.0
      %4184 = vmatprep.subr.mxu0 0.0
      %4185 = vmatpush1.msra.mxu0 0.0
      %4186 = vmatprep.subr.mxu0 0.0
      %4187 = vmatpush1.msra.mxu0 0.0
      %4188 = vmatprep.mubr.f32.mxu0 0.0
      %4189 = vmatmul.mubr.f32.gmra.mrb[0].mxu0 %v4119
      %v4190 = vpop.f32.mrb[0].mxu0
      %v4191 = vadd.f32 %v4116, %v4190
      %v4192 = vpop.f32.mrb[0].mxu0
      %4193 = vmatprep.mubr.f32.mxu0 0.0
      %4194 = vmatmul.mubr.f32.gmra.mrb[0].mxu0 %v4122
      %v4195 = vpop.f32.mrb[0].mxu0
      %v4196 = vadd.f32 %v4116, %v4195
      %v4197 = vpop.f32.mrb[0].mxu0
      %4198 = vdwg.mxu0
      %v4199 = vadd.f32 %v3988, %v4191
      %v4200 = vadd.f32 %v3993, %v4196
      %v4201 = vld [vmem:[%s4 + $0x6] sm:$0x1]
      %v4202 = vld [vmem:[%s4 + $0x7] sm:$0x1]
      %v4203 = vsel %vm885, %v4199, 0.0
      %4204 = vadd.xlane.f32.xlu0 %v4203
      %v4205 = vpop.xlane.xlu0 %4204
      %v4206 = vsel %vm885, %v4200, 0.0
      %4207 = vadd.xlane.f32.xlu0 %v4206
      %v4208 = vpop.xlane.xlu0 %4207
      %v4209 = vmul.f32 %v4205, %v934
      %v4210 = vmul.f32 %v4208, %v934
      %v4211 = vsub.f32 %v4199, %v4209
      %v4212 = vsub.f32 %v4200, %v4210
      %v4213 = vmul.f32 %v4211, %v4211
      %v4214 = vmul.f32 %v4212, %v4212
      %v4215 = vsel %vm885, %v4213, 0.0
      %4216 = vadd.xlane.f32.xlu0 %v4215
      %v4217 = vpop.xlane.xlu0 %4216
      %v4218 = vsel %vm885, %v4214, 0.0
      %4219 = vadd.xlane.f32.xlu0 %v4218
      %v4220 = vpop.xlane.xlu0 %4219
      %v4221 = vmul.f32 %v4217, %v934
      %v4222 = vmul.f32 %v4220, %v934
      %v4223 = vadd.f32 %v4221, 1e-12
      %v4224 = vadd.f32 %v4222, 1e-12
      %v4225 = vrsqrt.pop %v4223
      %v4226 = vrsqrt.pop %v4224
      %v4227 = vmul.f32 %v4211, %v4225
      %v4228 = vmul.f32 %v4212, %v4226
      %v4229 = vlaneseq
      %v4230 = vshrl.u32 %v4229, 7
      %v4231 = vsub.s32 0, %v4230
      %v4232 = vrot.slane %v4201, %v4231
      %v4233 = vmul.f32 %v4227, %v4232
      %v4234 = vmul.f32 %v4228, %v4232
      %v4235 = vlaneseq
      %v4236 = vshrl.u32 %v4235, 7
      %v4237 = vsub.s32 0, %v4236
      %v4238 = vrot.slane %v4202, %v4237
      %v4239 = vadd.f32 %v4233, %v4238
      %v4240 = vadd.f32 %v4234, %v4238
      %v4241 = vld [vmem:[%s6 + $0x60] sm:$0xff]
      %v4242 = vld [vmem:[%s6 + $0x68] sm:$0xff]
      %v4243 = vld [vmem:[%s6 + $0x70] sm:$0xff]
      %v4244 = vld [vmem:[%s6 + $0x78] sm:$0xff]
      %v4245 = vld [vmem:[%s4 + $0x8] sm:$0x1]
      %v4246 = vlaneseq
      %v4247 = vshrl.u32 %v4246, 7
      %v4248 = vsub.s32 0, %v4247
      %v4249 = vrot.slane %v4245, %v4248
      %v4251 = vsel %vm885, %v4239, 0
      %v4254 = vsel %vm885, %v4240, 0
      %4256 = vmatprep.subr.mxu0 0.0
      %4257 = vmatpush1.msra.mxu0 %v4241
      %4258 = vmatprep.subr.mxu0 0.0
      %4259 = vmatpush1.msra.mxu0 %v4242
      %4260 = vmatprep.subr.mxu0 0.0
      %4261 = vmatpush1.msra.mxu0 %v4243
      %4262 = vmatprep.subr.mxu0 0.0
      %4263 = vmatpush1.msra.mxu0 %v4244
      %4264 = vmatprep.subr.mxu0 0.0
      %4265 = vmatpush1.msra.mxu0 0.0
      %4266 = vmatprep.subr.mxu0 0.0
      %4267 = vmatpush1.msra.mxu0 0.0
      %4268 = vmatprep.subr.mxu0 0.0
      %4269 = vmatpush1.msra.mxu0 0.0
      %4270 = vmatprep.subr.mxu0 0.0
      %4271 = vmatpush1.msra.mxu0 0.0
      %4272 = vmatprep.subr.mxu0 0.0
      %4273 = vmatpush1.msra.mxu0 0.0
      %4274 = vmatprep.subr.mxu0 0.0
      %4275 = vmatpush1.msra.mxu0 0.0
      %4276 = vmatprep.subr.mxu0 0.0
      %4277 = vmatpush1.msra.mxu0 0.0
      %4278 = vmatprep.subr.mxu0 0.0
      %4279 = vmatpush1.msra.mxu0 0.0
      %4280 = vmatprep.subr.mxu0 0.0
      %4281 = vmatpush1.msra.mxu0 0.0
      %4282 = vmatprep.subr.mxu0 0.0
      %4283 = vmatpush1.msra.mxu0 0.0
      %4284 = vmatprep.subr.mxu0 0.0
      %4285 = vmatpush1.msra.mxu0 0.0
      %4286 = vmatprep.subr.mxu0 0.0
      %4287 = vmatpush1.msra.mxu0 0.0
      %4288 = vmatprep.subr.mxu0 0.0
      %4289 = vmatpush1.msra.mxu0 0.0
      %4290 = vmatprep.subr.mxu0 0.0
      %4291 = vmatpush1.msra.mxu0 0.0
      %4292 = vmatprep.subr.mxu0 0.0
      %4293 = vmatpush1.msra.mxu0 0.0
      %4294 = vmatprep.subr.mxu0 0.0
      %4295 = vmatpush1.msra.mxu0 0.0
      %4296 = vmatprep.subr.mxu0 0.0
      %4297 = vmatpush1.msra.mxu0 0.0
      %4298 = vmatprep.subr.mxu0 0.0
      %4299 = vmatpush1.msra.mxu0 0.0
      %4300 = vmatprep.subr.mxu0 0.0
      %4301 = vmatpush1.msra.mxu0 0.0
      %4302 = vmatprep.subr.mxu0 0.0
      %4303 = vmatpush1.msra.mxu0 0.0
      %4304 = vmatprep.subr.mxu0 0.0
      %4305 = vmatpush1.msra.mxu0 0.0
      %4306 = vmatprep.subr.mxu0 0.0
      %4307 = vmatpush1.msra.mxu0 0.0
      %4308 = vmatprep.subr.mxu0 0.0
      %4309 = vmatpush1.msra.mxu0 0.0
      %4310 = vmatprep.subr.mxu0 0.0
      %4311 = vmatpush1.msra.mxu0 0.0
      %4312 = vmatprep.subr.mxu0 0.0
      %4313 = vmatpush1.msra.mxu0 0.0
      %4314 = vmatprep.subr.mxu0 0.0
      %4315 = vmatpush1.msra.mxu0 0.0
      %4316 = vmatprep.subr.mxu0 0.0
      %4317 = vmatpush1.msra.mxu0 0.0
      %4318 = vmatprep.subr.mxu0 0.0
      %4319 = vmatpush1.msra.mxu0 0.0
      %4320 = vmatprep.mubr.f32.mxu0 0.0
      %4321 = vmatmul.mubr.f32.gmra.mrb[0].mxu0 %v4251
      %v4322 = vpop.f32.mrb[0].mxu0
      %v4323 = vadd.f32 %v4249, %v4322
      %v4324 = vpop.f32.mrb[0].mxu0
      %4325 = vmatprep.mubr.f32.mxu0 0.0
      %4326 = vmatmul.mubr.f32.gmra.mrb[0].mxu0 %v4254
      %v4327 = vpop.f32.mrb[0].mxu0
      %v4328 = vadd.f32 %v4249, %v4327
      %v4329 = vpop.f32.mrb[0].mxu0
      %4330 = vdwg.mxu0
      %v4331 = vtanh.pop %v4323
      %v4332 = vtanh.pop %v4328
      %v4333 = vld [vmem:[%s8] sm:$0xff]
      %v4334 = vld [vmem:[%s8 + $0x8] sm:$0xff]
      %v4335 = vld [vmem:[%s8 + $0x10] sm:$0xff]
      %v4336 = vld [vmem:[%s8 + $0x18] sm:$0xff]
      %v4337 = vld [vmem:[%s8 + $0x20] sm:$0x1]
      %v4338 = vlaneseq
      %v4339 = vshrl.u32 %v4338, 7
      %v4340 = vsub.s32 0, %v4339
      %v4341 = vrot.slane %v4337, %v4340
      %v4343 = vsel %vm885, %v4331, 0
      %v4346 = vsel %vm885, %v4332, 0
      %4348 = vmatprep.subr.mxu0 0.0
      %4349 = vmatpush1.msra.mxu0 %v4333
      %4350 = vmatprep.subr.mxu0 0.0
      %4351 = vmatpush1.msra.mxu0 %v4334
      %4352 = vmatprep.subr.mxu0 0.0
      %4353 = vmatpush1.msra.mxu0 %v4335
      %4354 = vmatprep.subr.mxu0 0.0
      %4355 = vmatpush1.msra.mxu0 %v4336
      %4356 = vmatprep.subr.mxu0 0.0
      %4357 = vmatpush1.msra.mxu0 0.0
      %4358 = vmatprep.subr.mxu0 0.0
      %4359 = vmatpush1.msra.mxu0 0.0
      %4360 = vmatprep.subr.mxu0 0.0
      %4361 = vmatpush1.msra.mxu0 0.0
      %4362 = vmatprep.subr.mxu0 0.0
      %4363 = vmatpush1.msra.mxu0 0.0
      %4364 = vmatprep.subr.mxu0 0.0
      %4365 = vmatpush1.msra.mxu0 0.0
      %4366 = vmatprep.subr.mxu0 0.0
      %4367 = vmatpush1.msra.mxu0 0.0
      %4368 = vmatprep.subr.mxu0 0.0
      %4369 = vmatpush1.msra.mxu0 0.0
      %4370 = vmatprep.subr.mxu0 0.0
      %4371 = vmatpush1.msra.mxu0 0.0
      %4372 = vmatprep.subr.mxu0 0.0
      %4373 = vmatpush1.msra.mxu0 0.0
      %4374 = vmatprep.subr.mxu0 0.0
      %4375 = vmatpush1.msra.mxu0 0.0
      %4376 = vmatprep.subr.mxu0 0.0
      %4377 = vmatpush1.msra.mxu0 0.0
      %4378 = vmatprep.subr.mxu0 0.0
      %4379 = vmatpush1.msra.mxu0 0.0
      %4380 = vmatprep.subr.mxu0 0.0
      %4381 = vmatpush1.msra.mxu0 0.0
      %4382 = vmatprep.subr.mxu0 0.0
      %4383 = vmatpush1.msra.mxu0 0.0
      %4384 = vmatprep.subr.mxu0 0.0
      %4385 = vmatpush1.msra.mxu0 0.0
      %4386 = vmatprep.subr.mxu0 0.0
      %4387 = vmatpush1.msra.mxu0 0.0
      %4388 = vmatprep.subr.mxu0 0.0
      %4389 = vmatpush1.msra.mxu0 0.0
      %4390 = vmatprep.subr.mxu0 0.0
      %4391 = vmatpush1.msra.mxu0 0.0
      %4392 = vmatprep.subr.mxu0 0.0
      %4393 = vmatpush1.msra.mxu0 0.0
      %4394 = vmatprep.subr.mxu0 0.0
      %4395 = vmatpush1.msra.mxu0 0.0
      %4396 = vmatprep.subr.mxu0 0.0
      %4397 = vmatpush1.msra.mxu0 0.0
      %4398 = vmatprep.subr.mxu0 0.0
      %4399 = vmatpush1.msra.mxu0 0.0
      %4400 = vmatprep.subr.mxu0 0.0
      %4401 = vmatpush1.msra.mxu0 0.0
      %4402 = vmatprep.subr.mxu0 0.0
      %4403 = vmatpush1.msra.mxu0 0.0
      %4404 = vmatprep.subr.mxu0 0.0
      %4405 = vmatpush1.msra.mxu0 0.0
      %4406 = vmatprep.subr.mxu0 0.0
      %4407 = vmatpush1.msra.mxu0 0.0
      %4408 = vmatprep.subr.mxu0 0.0
      %4409 = vmatpush1.msra.mxu0 0.0
      %4410 = vmatprep.subr.mxu0 0.0
      %4411 = vmatpush1.msra.mxu0 0.0
      %4412 = vmatprep.mubr.f32.mxu0 0.0
      %4413 = vmatmul.mubr.f32.gmra.mrb[0].mxu0 %v4343
      %v4414 = vpop.f32.mrb[0].mxu0
      %v4415 = vadd.f32 %v4341, %v4414
      %v4416 = vpop.f32.mrb[0].mxu0
      %4417 = vmatprep.mubr.f32.mxu0 0.0
      %4418 = vmatmul.mubr.f32.gmra.mrb[0].mxu0 %v4346
      %v4419 = vpop.f32.mrb[0].mxu0
      %v4420 = vadd.f32 %v4341, %v4419
      %v4421 = vpop.f32.mrb[0].mxu0
      %4422 = vdwg.mxu0
      %4423 = vst [vmem:[%s370] sm:$0xff] %v4415
      %4424 = vst [vmem:[%s370 + $0x8] sm:$0xff] %v4420
      %s4425 = smul.u32 2, %s20
      %p4426 = scmp.lt.s32.totalorder %s4425, 3
      %s4427 = scalar_select %p4426, %s4425, 3
      %s4428 = smul.addr %s4427, 8
      %s4429 = scalar_lea.vmem %s9, %s4428
      // Predicated region
      $region57: #{bert_classifier_forward.1} parent=55 // pred_check
        %p4430 = pneg %p242
      $region58: #{bert_classifier_forward.1} parent=55 // pred_check_branch
        %4432 = sbr.rel (%p4430) target = $region60
      $region59: #{bert_classifier_forward.1} parent=55 // pred_region
        %s4433 = smul.u32 2, %s20
      $region60: #{bert_classifier_forward.1} parent=55 // pred_fallthru
        _
    $region56: #{bert_classifier_forward.1} parent=5 // pred_fallthru
      _
    %p4434 = scmp.le.s32.totalorder 2, %s15
    // Predicated region
    $region61: #{bert_classifier_forward.1} parent=5 // pred_check
      %p4435 = pneg %p4434
    $region62: #{bert_classifier_forward.1} parent=5 // pred_check_branch
      %4437 = sbr.rel (%p4435) target = $region64
    $region63: #{bert_classifier_forward.1} parent=5 // pred_region
      %s4438 = ssub.s32 %s15, 2
      // Predicated region
      $region65: #{bert_classifier_forward.1} parent=63 // pred_check
        %p4439 = pneg %p248
      $region66: #{bert_classifier_forward.1} parent=63 // pred_check_branch
        %4441 = sbr.rel (%p4439) target = $region68
      $region67: #{bert_classifier_forward.1} parent=63 // pred_region
        %s4442 = smul.u32 2, %s21
        %p4443 = scmp.lt.s32.totalorder %s4442, 3
        %s4444 = scalar_select %p4443, %s4442, 3
        %s4445 = smul.addr %s4444, 8
        %s4446 = scalar_lea.vmem %s9, %s4445
      $region68: #{bert_classifier_forward.1} parent=63 // pred_fallthru
        _
    $region64: #{bert_classifier_forward.1} parent=5 // pred_fallthru
      _
  $region6: #{bert_classifier_forward.1} parent=0 // loop_footer
    %s19 = sadd.s32 1, %s15
  $region7: #{bert_classifier_forward.1} parent=0 // loop_footer_branch
    %14 = sbr.rel target = $region3
  $region8: #{bert_classifier_forward.1} parent=0 // loop_exit
    _

</llo_original>
